<compile_context>
chip_gen: v7x
topology: tpu7x:2x2x1
jax: 0.10.0
libtpu: 0.0.40
codegen_flags: <defaults>
</compile_context>

<pallas_src>
import jax
import jax.numpy as jnp
from jax.experimental import pallas as pl
from jax.experimental.pallas import tpu as pltpu

L_IN = 128              # sequence length implied by lin3 (1984 = 32 * 62)
L1 = L_IN - 2           # 126 after conv1 (kernel=3, stride=1)
L2 = L1 - 2             # 124 after conv2
L_PAIR = L2 - 1         # 123 width of the un-compacted pairwise max
L_POOL = L2 // 2        # 62 after MaxPool1d(2, 2)
FLAT = 32 * L_POOL      # 1984 = lin3 in_features
HIDDEN = 100
HIDDEN_PAD = 128        # lin3 hidden padded to a full lane width
N_CONV = 32


def _har_cnn_kernel(x_ref, w1_ref, b1_ref, w2_ref, b2_ref,
                    w3_ref, b3_ref, w4_ref, b4_ref, o_ref, q_ref):
    # x_ref : (NB, C, 128) f32          w1_ref: (3, 32, C) f32   b1_ref: (32, 1)
    # w2_ref: (3, 32, 32) f32           b2_ref: (32, 1)
    # w3_ref: (32, 123, 128) bf16  zero-stuffed per-channel lin3 weights
    # b3_ref: (1, 128) f32              w4_ref: (128, n_cls) bf16  b4_ref: (1, n_cls)
    # o_ref : (NB, n_cls) f32
    # q_ref : (NB*32, 123) f32 scratch; row i*32 + c = pairwise-max row of sample i, channel c
    nb = x_ref.shape[0]
    w1 = w1_ref[...]
    w2 = w2_ref[...]
    b1 = b1_ref[...]
    b2 = b2_ref[...]

    # ---- stage 1: conv1 + relu + conv2 + relu + pairwise max, per sample -------
    for i in range(nb):                       # static unroll (nb <= 8)
        xi = x_ref[i]                         # (C, 128)
        h1 = jnp.dot(w1[0], xi[:, 0:L1], preferred_element_type=jnp.float32)
        h1 = h1 + jnp.dot(w1[1], xi[:, 1:1 + L1], preferred_element_type=jnp.float32)
        h1 = h1 + jnp.dot(w1[2], xi[:, 2:2 + L1], preferred_element_type=jnp.float32)
        h1 = jnp.maximum(h1 + b1, 0.0)        # (32, 126)

        h2 = jnp.dot(w2[0], h1[:, 0:L2], preferred_element_type=jnp.float32)
        h2 = h2 + jnp.dot(w2[1], h1[:, 1:1 + L2], preferred_element_type=jnp.float32)
        h2 = h2 + jnp.dot(w2[2], h1[:, 2:2 + L2], preferred_element_type=jnp.float32)
        h2 = jnp.maximum(h2 + b2, 0.0)        # (32, 124)

        # Dropout(p=0.5): identity at inference time.
        # MaxPool1d(2,2): lane 2t of the pairwise max is the pooled value; odd lanes
        # are killed later by the zero-stuffed lin3 weights (no compaction needed).
        q_ref[i * N_CONV:(i + 1) * N_CONV, :] = jnp.maximum(h2[:, 0:L_PAIR], h2[:, 1:L2])

    # ---- stage 2: lin3 (pool + flatten folded into weights) + relu -------------
    acc = jnp.zeros((nb, HIDDEN_PAD), jnp.float32)
    for c in range(N_CONV):                   # static unroll over conv channels
        # rows {i*32 + c : i} -> (nb, 123): channel c of every sample in the block
        pc = q_ref[pl.ds(c, nb, stride=N_CONV), :]
        acc = acc + jnp.dot(pc.astype(jnp.bfloat16), w3_ref[c],
                            preferred_element_type=jnp.float32)
    h3 = jnp.maximum(acc + b3_ref[...], 0.0)  # (nb, 128); padded lanes stay 0

    # ---- stage 3: lin4 + softmax(dim=1) ----------------------------------------
    logits = jnp.dot(h3.astype(jnp.bfloat16), w4_ref[...],
                     preferred_element_type=jnp.float32) + b4_ref[...]
    mx = jnp.max(logits, axis=-1, keepdims=True)
    e = jnp.exp(logits - mx)
    o_ref[...] = e / jnp.sum(e, axis=-1, keepdims=True)


def har_cnn_forward(x, params, *, samples_per_step=8):
    """x: (B, C, 128) f32; params: output of prepare_params(). Returns (B, n_classes)."""
    w1, b1, w2, b2, w3z, b3, w4, b4 = params
    B, C, L = x.shape
    assert L == L_IN
    n_cls = w4.shape[1]

    nb = min(samples_per_step, B)
    Bp = ((B + nb - 1) // nb) * nb
    if Bp != B:
        x = jnp.pad(x, ((0, Bp - B), (0, 0), (0, 0)))

    out = pl.pallas_call(
        _har_cnn_kernel,
        out_shape=jax.ShapeDtypeStruct((Bp, n_cls), jnp.float32),
        grid=(Bp // nb,),
        in_specs=[
            pl.BlockSpec((nb, C, L_IN), lambda g: (g, 0, 0)),
            pl.BlockSpec((3, N_CONV, C), lambda g: (0, 0, 0)),
            pl.BlockSpec((N_CONV, 1), lambda g: (0, 0)),
            pl.BlockSpec((3, N_CONV, N_CONV), lambda g: (0, 0, 0)),
            pl.BlockSpec((N_CONV, 1), lambda g: (0, 0)),
            pl.BlockSpec((N_CONV, L_PAIR, HIDDEN_PAD), lambda g: (0, 0, 0)),
            pl.BlockSpec((1, HIDDEN_PAD), lambda g: (0, 0)),
            pl.BlockSpec((HIDDEN_PAD, n_cls), lambda g: (0, 0)),
            pl.BlockSpec((1, n_cls), lambda g: (0, 0)),
        ],
        out_specs=pl.BlockSpec((nb, n_cls), lambda g: (g, 0)),
        scratch_shapes=[pltpu.VMEM((nb * N_CONV, L_PAIR), jnp.float32)],
        compiler_params=pltpu.CompilerParams(dimension_semantics=("parallel",)),
    )(x, w1, b1, w2, b2, w3z, b3, w4, b4)
    return out[:B]


# ----------------------------- parameter handling -------------------------------

def init_torch_like_params(key, n_chan, n_classes):
    """Parameters in the PyTorch module's native shapes (f32)."""
    ks = jax.random.split(key, 8)

    def u(k, shape, fan_in):
        b = 1.0 / (fan_in ** 0.5)
        return jax.random.uniform(k, shape, jnp.float32, -b, b)

    return dict(
        conv1_w=u(ks[0], (N_CONV, n_chan, 3), n_chan * 3),
        conv1_b=u(ks[1], (N_CONV,), n_chan * 3),
        conv2_w=u(ks[2], (N_CONV, N_CONV, 3), N_CONV * 3),
        conv2_b=u(ks[3], (N_CONV,), N_CONV * 3),
        lin3_w=u(ks[4], (HIDDEN, FLAT), FLAT),
        lin3_b=u(ks[5], (HIDDEN,), FLAT),
        lin4_w=u(ks[6], (n_classes, HIDDEN), HIDDEN),
        lin4_b=u(ks[7], (n_classes,), HIDDEN),
    )


def prepare_params(p):
    """Rearrange PyTorch-layout params into the kernel's layouts (host-side, one-time)."""
    w1 = jnp.transpose(p['conv1_w'], (2, 0, 1))                 # (3, 32, C)
    b1 = p['conv1_b'].reshape(N_CONV, 1)
    w2 = jnp.transpose(p['conv2_w'], (2, 0, 1))                 # (3, 32, 32)
    b2 = p['conv2_b'].reshape(N_CONV, 1)

    # lin3: (100, 1984) -> per-channel (62, 128) slabs, zero-stuffed to 123 rows so
    # row 2t lines up with lane 2t of the un-compacted pairwise max; hidden padded.
    w3r = p['lin3_w'].T.reshape(N_CONV, L_POOL, HIDDEN)          # (32, 62, 100)
    w3r = jnp.pad(w3r, ((0, 0), (0, 0), (0, HIDDEN_PAD - HIDDEN)))
    w3z = jnp.zeros((N_CONV, L_PAIR, HIDDEN_PAD), jnp.float32)
    w3z = w3z.at[:, 0::2, :].set(w3r).astype(jnp.bfloat16)       # (32, 123, 128) bf16
    b3 = jnp.pad(p['lin3_b'], (0, HIDDEN_PAD - HIDDEN)).reshape(1, HIDDEN_PAD)

    w4 = jnp.pad(p['lin4_w'].T, ((0, HIDDEN_PAD - HIDDEN), (0, 0))).astype(jnp.bfloat16)
    b4 = p['lin4_b'].reshape(1, -1)
    return (w1, b1, w2, b2, w3z, b3, w4, b4)


# ----------------------------- pure-JAX reference -------------------------------

def reference_forward(x, p):
    def conv1d(h, w, b):
        L = h.shape[-1]
        out = b[None, :, None]
        for k in range(3):
            out = out + jnp.einsum('bcl,oc->bol', h[:, :, k:k + L - 2], w[:, :, k])
        return out

    a = jax.nn.relu(conv1d(x, p['conv1_w'], p['conv1_b']))
    a = jax.nn.relu(conv1d(a, p['conv2_w'], p['conv2_b']))
    B = x.shape[0]
    a = a.reshape(B, N_CONV, L_POOL, 2).max(axis=-1)             # MaxPool1d(2, 2)
    a = a.reshape(B, -1)                                         # (B, 1984)
    a = jax.nn.relu(a @ p['lin3_w'].T + p['lin3_b'])
    logits = a @ p['lin4_w'].T + p['lin4_b']
    return jax.nn.softmax(logits, axis=1)


if __name__ == "__main__":
    B, C, n_classes = 2, 9, 6                                    # HAR-style: data_size = (9, 128)
    key = jax.random.PRNGKey(0)
    kx, kp = jax.random.split(key)
    x = jax.random.normal(kx, (B, C, L_IN), jnp.float32)
    raw = init_torch_like_params(kp, C, n_classes)
    params = prepare_params(raw)

    out = jax.block_until_ready(jax.jit(har_cnn_forward)(x, params))

    assert out.shape == (B, n_classes)
    assert bool(jnp.all(jnp.isfinite(out)))
    assert bool(jnp.allclose(jnp.sum(out, axis=1), 1.0, atol=1e-4))

    ref = reference_forward(x, raw)
    assert bool(jnp.allclose(out, ref, atol=2e-2)), "kernel deviates from reference"
    print("KERNEL_OK")
</pallas_src>

<mosaic_0001>
module attributes {stable_mosaic.version = 11 : i64} {
  func.func @_har_cnn_kernel(%arg0: i32, %arg1: memref<2x9x128xf32, #tpu.memory_space<vmem>>, %arg2: memref<3x32x9xf32, #tpu.memory_space<vmem>>, %arg3: memref<32x1xf32, #tpu.memory_space<vmem>>, %arg4: memref<3x32x32xf32, #tpu.memory_space<vmem>>, %arg5: memref<32x1xf32, #tpu.memory_space<vmem>>, %arg6: memref<32x123x128xbf16, #tpu.memory_space<vmem>>, %arg7: memref<1x128xf32, #tpu.memory_space<vmem>>, %arg8: memref<128x6xbf16, #tpu.memory_space<vmem>>, %arg9: memref<1x6xf32, #tpu.memory_space<vmem>>, %arg10: memref<2x6xf32, #tpu.memory_space<vmem>>, %arg11: memref<64x123xf32, #tpu.memory_space<vmem>>) attributes {dimension_semantics = [#tpu.dimension_semantics<parallel>], iteration_bounds = array<i64: 1>, scalar_prefetch = 0 : i64, scratch_operands = 1 : i64, tpu.core_type = #tpu.core_type<tc>, window_params = [{transform_indices = @transform_0, window_bounds = array<i64: 2, 9, 128>}, {pipeline_mode = #tpu.pipeline_mode<synchronous>, transform_indices = @transform_1, window_bounds = array<i64: 3, 32, 9>}, {pipeline_mode = #tpu.pipeline_mode<synchronous>, transform_indices = @transform_2, window_bounds = array<i64: 32, 1>}, {pipeline_mode = #tpu.pipeline_mode<synchronous>, transform_indices = @transform_3, window_bounds = array<i64: 3, 32, 32>}, {pipeline_mode = #tpu.pipeline_mode<synchronous>, transform_indices = @transform_4, window_bounds = array<i64: 32, 1>}, {pipeline_mode = #tpu.pipeline_mode<synchronous>, transform_indices = @transform_5, window_bounds = array<i64: 32, 123, 128>}, {pipeline_mode = #tpu.pipeline_mode<synchronous>, transform_indices = @transform_6, window_bounds = array<i64: 1, 128>}, {pipeline_mode = #tpu.pipeline_mode<synchronous>, transform_indices = @transform_7, window_bounds = array<i64: 128, 6>}, {pipeline_mode = #tpu.pipeline_mode<synchronous>, transform_indices = @transform_8, window_bounds = array<i64: 1, 6>}, {transform_indices = @transform_9, window_bounds = array<i64: 2, 6>}]} {
    %c0 = arith.constant 0 : index
    %c0_0 = arith.constant 0 : index
    %c0_1 = arith.constant 0 : index
    %0 = vector.load %arg2[%c0, %c0_0, %c0_1] : memref<3x32x9xf32, #tpu.memory_space<vmem>>, vector<3x32x9xf32>
    %c0_2 = arith.constant 0 : index
    %c0_3 = arith.constant 0 : index
    %c0_4 = arith.constant 0 : index
    %1 = vector.load %arg4[%c0_2, %c0_3, %c0_4] : memref<3x32x32xf32, #tpu.memory_space<vmem>>, vector<3x32x32xf32>
    %c0_5 = arith.constant 0 : index
    %c0_6 = arith.constant 0 : index
    %2 = vector.load %arg3[%c0_5, %c0_6] : memref<32x1xf32, #tpu.memory_space<vmem>>, vector<32x1xf32>
    %c0_7 = arith.constant 0 : index
    %c0_8 = arith.constant 0 : index
    %3 = vector.load %arg5[%c0_7, %c0_8] : memref<32x1xf32, #tpu.memory_space<vmem>>, vector<32x1xf32>
    %c0_9 = arith.constant 0 : index
    %c0_10 = arith.constant 0 : index
    %c0_11 = arith.constant 0 : index
    %4 = vector.load %arg1[%c0_9, %c0_10, %c0_11] : memref<2x9x128xf32, #tpu.memory_space<vmem>>, vector<1x9x128xf32>
    %5 = vector.shape_cast %4 : vector<1x9x128xf32> to vector<9x128xf32>
    %6 = vector.extract_strided_slice %0 {offsets = [0, 0, 0], sizes = [1, 32, 9], strides = [1, 1, 1]} : vector<3x32x9xf32> to vector<1x32x9xf32>
    %7 = vector.shape_cast %6 : vector<1x32x9xf32> to vector<32x9xf32>
    %8 = vector.extract_strided_slice %5 {offsets = [0, 0], sizes = [9, 126], strides = [1, 1]} : vector<9x128xf32> to vector<9x126xf32>
    %cst = arith.constant dense<0.000000e+00> : vector<32x126xf32>
    %9 = tpu.matmul %7, %8, %cst {dimension_numbers = #tpu.dot_dimension_numbers<[1], [0], [0], [1], [0, 0, 1, 1], [], []>} : vector<32x9xf32>, vector<9x126xf32>, vector<32x126xf32> -> vector<32x126xf32>
    %10 = vector.extract_strided_slice %0 {offsets = [1, 0, 0], sizes = [1, 32, 9], strides = [1, 1, 1]} : vector<3x32x9xf32> to vector<1x32x9xf32>
    %11 = vector.shape_cast %10 : vector<1x32x9xf32> to vector<32x9xf32>
    %12 = vector.extract_strided_slice %5 {offsets = [0, 1], sizes = [9, 126], strides = [1, 1]} : vector<9x128xf32> to vector<9x126xf32>
    %cst_12 = arith.constant dense<0.000000e+00> : vector<32x126xf32>
    %13 = tpu.matmul %11, %12, %cst_12 {dimension_numbers = #tpu.dot_dimension_numbers<[1], [0], [0], [1], [0, 0, 1, 1], [], []>} : vector<32x9xf32>, vector<9x126xf32>, vector<32x126xf32> -> vector<32x126xf32>
    %14 = arith.addf %9, %13 : vector<32x126xf32>
    %15 = vector.extract_strided_slice %0 {offsets = [2, 0, 0], sizes = [1, 32, 9], strides = [1, 1, 1]} : vector<3x32x9xf32> to vector<1x32x9xf32>
    %16 = vector.shape_cast %15 : vector<1x32x9xf32> to vector<32x9xf32>
    %17 = vector.extract_strided_slice %5 {offsets = [0, 2], sizes = [9, 126], strides = [1, 1]} : vector<9x128xf32> to vector<9x126xf32>
    %cst_13 = arith.constant dense<0.000000e+00> : vector<32x126xf32>
    %18 = tpu.matmul %16, %17, %cst_13 {dimension_numbers = #tpu.dot_dimension_numbers<[1], [0], [0], [1], [0, 0, 1, 1], [], []>} : vector<32x9xf32>, vector<9x126xf32>, vector<32x126xf32> -> vector<32x126xf32>
    %19 = arith.addf %14, %18 : vector<32x126xf32>
    %20 = vector.broadcast %2 : vector<32x1xf32> to vector<32x126xf32>
    %21 = arith.addf %19, %20 : vector<32x126xf32>
    %cst_14 = arith.constant 0.000000e+00 : f32
    %22 = vector.broadcast %cst_14 : f32 to vector<32x126xf32>
    %23 = arith.maximumf %21, %22 : vector<32x126xf32>
    %24 = vector.extract_strided_slice %1 {offsets = [0, 0, 0], sizes = [1, 32, 32], strides = [1, 1, 1]} : vector<3x32x32xf32> to vector<1x32x32xf32>
    %25 = vector.shape_cast %24 : vector<1x32x32xf32> to vector<32x32xf32>
    %26 = vector.extract_strided_slice %23 {offsets = [0, 0], sizes = [32, 124], strides = [1, 1]} : vector<32x126xf32> to vector<32x124xf32>
    %cst_15 = arith.constant dense<0.000000e+00> : vector<32x124xf32>
    %27 = tpu.matmul %25, %26, %cst_15 {dimension_numbers = #tpu.dot_dimension_numbers<[1], [0], [0], [1], [0, 0, 1, 1], [], []>} : vector<32x32xf32>, vector<32x124xf32>, vector<32x124xf32> -> vector<32x124xf32>
    %28 = vector.extract_strided_slice %1 {offsets = [1, 0, 0], sizes = [1, 32, 32], strides = [1, 1, 1]} : vector<3x32x32xf32> to vector<1x32x32xf32>
    %29 = vector.shape_cast %28 : vector<1x32x32xf32> to vector<32x32xf32>
    %30 = vector.extract_strided_slice %23 {offsets = [0, 1], sizes = [32, 124], strides = [1, 1]} : vector<32x126xf32> to vector<32x124xf32>
    %cst_16 = arith.constant dense<0.000000e+00> : vector<32x124xf32>
    %31 = tpu.matmul %29, %30, %cst_16 {dimension_numbers = #tpu.dot_dimension_numbers<[1], [0], [0], [1], [0, 0, 1, 1], [], []>} : vector<32x32xf32>, vector<32x124xf32>, vector<32x124xf32> -> vector<32x124xf32>
    %32 = arith.addf %27, %31 : vector<32x124xf32>
    %33 = vector.extract_strided_slice %1 {offsets = [2, 0, 0], sizes = [1, 32, 32], strides = [1, 1, 1]} : vector<3x32x32xf32> to vector<1x32x32xf32>
    %34 = vector.shape_cast %33 : vector<1x32x32xf32> to vector<32x32xf32>
    %35 = vector.extract_strided_slice %23 {offsets = [0, 2], sizes = [32, 124], strides = [1, 1]} : vector<32x126xf32> to vector<32x124xf32>
    %cst_17 = arith.constant dense<0.000000e+00> : vector<32x124xf32>
    %36 = tpu.matmul %34, %35, %cst_17 {dimension_numbers = #tpu.dot_dimension_numbers<[1], [0], [0], [1], [0, 0, 1, 1], [], []>} : vector<32x32xf32>, vector<32x124xf32>, vector<32x124xf32> -> vector<32x124xf32>
    %37 = arith.addf %32, %36 : vector<32x124xf32>
    %38 = vector.broadcast %3 : vector<32x1xf32> to vector<32x124xf32>
    %39 = arith.addf %37, %38 : vector<32x124xf32>
    %cst_18 = arith.constant 0.000000e+00 : f32
    %40 = vector.broadcast %cst_18 : f32 to vector<32x124xf32>
    %41 = arith.maximumf %39, %40 : vector<32x124xf32>
    %42 = vector.extract_strided_slice %41 {offsets = [0, 0], sizes = [32, 123], strides = [1, 1]} : vector<32x124xf32> to vector<32x123xf32>
    %43 = vector.extract_strided_slice %41 {offsets = [0, 1], sizes = [32, 123], strides = [1, 1]} : vector<32x124xf32> to vector<32x123xf32>
    %44 = arith.maximumf %42, %43 : vector<32x123xf32>
    %c0_19 = arith.constant 0 : index
    %c0_20 = arith.constant 0 : index
    %45 = vector.load %arg11[%c0_19, %c0_20] : memref<64x123xf32, #tpu.memory_space<vmem>>, vector<32x123xf32>
    tpu.vector_store %arg11[%c0_19, %c0_20], %44 {strides = array<i32>} : memref<64x123xf32, #tpu.memory_space<vmem>>, vector<32x123xf32>,
    %c1 = arith.constant 1 : index
    %c0_21 = arith.constant 0 : index
    %c0_22 = arith.constant 0 : index
    %46 = vector.load %arg1[%c1, %c0_21, %c0_22] : memref<2x9x128xf32, #tpu.memory_space<vmem>>, vector<1x9x128xf32>
    %47 = vector.shape_cast %46 : vector<1x9x128xf32> to vector<9x128xf32>
    %48 = vector.extract_strided_slice %0 {offsets = [0, 0, 0], sizes = [1, 32, 9], strides = [1, 1, 1]} : vector<3x32x9xf32> to vector<1x32x9xf32>
    %49 = vector.shape_cast %48 : vector<1x32x9xf32> to vector<32x9xf32>
    %50 = vector.extract_strided_slice %47 {offsets = [0, 0], sizes = [9, 126], strides = [1, 1]} : vector<9x128xf32> to vector<9x126xf32>
    %cst_23 = arith.constant dense<0.000000e+00> : vector<32x126xf32>
    %51 = tpu.matmul %49, %50, %cst_23 {dimension_numbers = #tpu.dot_dimension_numbers<[1], [0], [0], [1], [0, 0, 1, 1], [], []>} : vector<32x9xf32>, vector<9x126xf32>, vector<32x126xf32> -> vector<32x126xf32>
    %52 = vector.extract_strided_slice %0 {offsets = [1, 0, 0], sizes = [1, 32, 9], strides = [1, 1, 1]} : vector<3x32x9xf32> to vector<1x32x9xf32>
    %53 = vector.shape_cast %52 : vector<1x32x9xf32> to vector<32x9xf32>
    %54 = vector.extract_strided_slice %47 {offsets = [0, 1], sizes = [9, 126], strides = [1, 1]} : vector<9x128xf32> to vector<9x126xf32>
    %cst_24 = arith.constant dense<0.000000e+00> : vector<32x126xf32>
    %55 = tpu.matmul %53, %54, %cst_24 {dimension_numbers = #tpu.dot_dimension_numbers<[1], [0], [0], [1], [0, 0, 1, 1], [], []>} : vector<32x9xf32>, vector<9x126xf32>, vector<32x126xf32> -> vector<32x126xf32>
    %56 = arith.addf %51, %55 : vector<32x126xf32>
    %57 = vector.extract_strided_slice %0 {offsets = [2, 0, 0], sizes = [1, 32, 9], strides = [1, 1, 1]} : vector<3x32x9xf32> to vector<1x32x9xf32>
    %58 = vector.shape_cast %57 : vector<1x32x9xf32> to vector<32x9xf32>
    %59 = vector.extract_strided_slice %47 {offsets = [0, 2], sizes = [9, 126], strides = [1, 1]} : vector<9x128xf32> to vector<9x126xf32>
    %cst_25 = arith.constant dense<0.000000e+00> : vector<32x126xf32>
    %60 = tpu.matmul %58, %59, %cst_25 {dimension_numbers = #tpu.dot_dimension_numbers<[1], [0], [0], [1], [0, 0, 1, 1], [], []>} : vector<32x9xf32>, vector<9x126xf32>, vector<32x126xf32> -> vector<32x126xf32>
    %61 = arith.addf %56, %60 : vector<32x126xf32>
    %62 = vector.broadcast %2 : vector<32x1xf32> to vector<32x126xf32>
    %63 = arith.addf %61, %62 : vector<32x126xf32>
    %cst_26 = arith.constant 0.000000e+00 : f32
    %64 = vector.broadcast %cst_26 : f32 to vector<32x126xf32>
    %65 = arith.maximumf %63, %64 : vector<32x126xf32>
    %66 = vector.extract_strided_slice %1 {offsets = [0, 0, 0], sizes = [1, 32, 32], strides = [1, 1, 1]} : vector<3x32x32xf32> to vector<1x32x32xf32>
    %67 = vector.shape_cast %66 : vector<1x32x32xf32> to vector<32x32xf32>
    %68 = vector.extract_strided_slice %65 {offsets = [0, 0], sizes = [32, 124], strides = [1, 1]} : vector<32x126xf32> to vector<32x124xf32>
    %cst_27 = arith.constant dense<0.000000e+00> : vector<32x124xf32>
    %69 = tpu.matmul %67, %68, %cst_27 {dimension_numbers = #tpu.dot_dimension_numbers<[1], [0], [0], [1], [0, 0, 1, 1], [], []>} : vector<32x32xf32>, vector<32x124xf32>, vector<32x124xf32> -> vector<32x124xf32>
    %70 = vector.extract_strided_slice %1 {offsets = [1, 0, 0], sizes = [1, 32, 32], strides = [1, 1, 1]} : vector<3x32x32xf32> to vector<1x32x32xf32>
    %71 = vector.shape_cast %70 : vector<1x32x32xf32> to vector<32x32xf32>
    %72 = vector.extract_strided_slice %65 {offsets = [0, 1], sizes = [32, 124], strides = [1, 1]} : vector<32x126xf32> to vector<32x124xf32>
    %cst_28 = arith.constant dense<0.000000e+00> : vector<32x124xf32>
    %73 = tpu.matmul %71, %72, %cst_28 {dimension_numbers = #tpu.dot_dimension_numbers<[1], [0], [0], [1], [0, 0, 1, 1], [], []>} : vector<32x32xf32>, vector<32x124xf32>, vector<32x124xf32> -> vector<32x124xf32>
    %74 = arith.addf %69, %73 : vector<32x124xf32>
    %75 = vector.extract_strided_slice %1 {offsets = [2, 0, 0], sizes = [1, 32, 32], strides = [1, 1, 1]} : vector<3x32x32xf32> to vector<1x32x32xf32>
    %76 = vector.shape_cast %75 : vector<1x32x32xf32> to vector<32x32xf32>
    %77 = vector.extract_strided_slice %65 {offsets = [0, 2], sizes = [32, 124], strides = [1, 1]} : vector<32x126xf32> to vector<32x124xf32>
    %cst_29 = arith.constant dense<0.000000e+00> : vector<32x124xf32>
    %78 = tpu.matmul %76, %77, %cst_29 {dimension_numbers = #tpu.dot_dimension_numbers<[1], [0], [0], [1], [0, 0, 1, 1], [], []>} : vector<32x32xf32>, vector<32x124xf32>, vector<32x124xf32> -> vector<32x124xf32>
    %79 = arith.addf %74, %78 : vector<32x124xf32>
    %80 = vector.broadcast %3 : vector<32x1xf32> to vector<32x124xf32>
    %81 = arith.addf %79, %80 : vector<32x124xf32>
    %cst_30 = arith.constant 0.000000e+00 : f32
    %82 = vector.broadcast %cst_30 : f32 to vector<32x124xf32>
    %83 = arith.maximumf %81, %82 : vector<32x124xf32>
    %84 = vector.extract_strided_slice %83 {offsets = [0, 0], sizes = [32, 123], strides = [1, 1]} : vector<32x124xf32> to vector<32x123xf32>
    %85 = vector.extract_strided_slice %83 {offsets = [0, 1], sizes = [32, 123], strides = [1, 1]} : vector<32x124xf32> to vector<32x123xf32>
    %86 = arith.maximumf %84, %85 : vector<32x123xf32>
    %c32 = arith.constant 32 : index
    %c0_31 = arith.constant 0 : index
    %87 = vector.load %arg11[%c32, %c0_31] : memref<64x123xf32, #tpu.memory_space<vmem>>, vector<32x123xf32>
    tpu.vector_store %arg11[%c32, %c0_31], %86 {strides = array<i32>} : memref<64x123xf32, #tpu.memory_space<vmem>>, vector<32x123xf32>,
    %cst_32 = arith.constant 0.000000e+00 : f32
    %88 = vector.broadcast %cst_32 : f32 to vector<2x128xf32>
    %c0_33 = arith.constant 0 : index
    %c0_34 = arith.constant 0 : index
    %89 = tpu.strided_load %arg11[%c0_33, %c0_34] {strides = array<i32: 32, 1>} : memref<64x123xf32, #tpu.memory_space<vmem>>, vector<2x123xf32>
    %90 = arith.truncf %89 : vector<2x123xf32> to vector<2x123xbf16>
    %c0_35 = arith.constant 0 : index
    %c0_36 = arith.constant 0 : index
    %c0_37 = arith.constant 0 : index
    %91 = vector.load %arg6[%c0_35, %c0_36, %c0_37] : memref<32x123x128xbf16, #tpu.memory_space<vmem>>, vector<1x123x128xbf16>
    %92 = vector.shape_cast %91 : vector<1x123x128xbf16> to vector<123x128xbf16>
    %cst_38 = arith.constant dense<0.000000e+00> : vector<2x128xf32>
    %93 = tpu.matmul %90, %92, %cst_38 {dimension_numbers = #tpu.dot_dimension_numbers<[1], [0], [0], [1], [0, 0, 1, 1], [], []>} : vector<2x123xbf16>, vector<123x128xbf16>, vector<2x128xf32> -> vector<2x128xf32>
    %94 = arith.addf %88, %93 : vector<2x128xf32>
    %c1_39 = arith.constant 1 : index
    %c0_40 = arith.constant 0 : index
    %95 = tpu.strided_load %arg11[%c1_39, %c0_40] {strides = array<i32: 32, 1>} : memref<64x123xf32, #tpu.memory_space<vmem>>, vector<2x123xf32>
    %96 = arith.truncf %95 : vector<2x123xf32> to vector<2x123xbf16>
    %c1_41 = arith.constant 1 : index
    %c0_42 = arith.constant 0 : index
    %c0_43 = arith.constant 0 : index
    %97 = vector.load %arg6[%c1_41, %c0_42, %c0_43] : memref<32x123x128xbf16, #tpu.memory_space<vmem>>, vector<1x123x128xbf16>
    %98 = vector.shape_cast %97 : vector<1x123x128xbf16> to vector<123x128xbf16>
    %cst_44 = arith.constant dense<0.000000e+00> : vector<2x128xf32>
    %99 = tpu.matmul %96, %98, %cst_44 {dimension_numbers = #tpu.dot_dimension_numbers<[1], [0], [0], [1], [0, 0, 1, 1], [], []>} : vector<2x123xbf16>, vector<123x128xbf16>, vector<2x128xf32> -> vector<2x128xf32>
    %100 = arith.addf %94, %99 : vector<2x128xf32>
    %c2 = arith.constant 2 : index
    %c0_45 = arith.constant 0 : index
    %101 = tpu.strided_load %arg11[%c2, %c0_45] {strides = array<i32: 32, 1>} : memref<64x123xf32, #tpu.memory_space<vmem>>, vector<2x123xf32>
    %102 = arith.truncf %101 : vector<2x123xf32> to vector<2x123xbf16>
    %c2_46 = arith.constant 2 : index
    %c0_47 = arith.constant 0 : index
    %c0_48 = arith.constant 0 : index
    %103 = vector.load %arg6[%c2_46, %c0_47, %c0_48] : memref<32x123x128xbf16, #tpu.memory_space<vmem>>, vector<1x123x128xbf16>
    %104 = vector.shape_cast %103 : vector<1x123x128xbf16> to vector<123x128xbf16>
    %cst_49 = arith.constant dense<0.000000e+00> : vector<2x128xf32>
    %105 = tpu.matmul %102, %104, %cst_49 {dimension_numbers = #tpu.dot_dimension_numbers<[1], [0], [0], [1], [0, 0, 1, 1], [], []>} : vector<2x123xbf16>, vector<123x128xbf16>, vector<2x128xf32> -> vector<2x128xf32>
    %106 = arith.addf %100, %105 : vector<2x128xf32>
    %c3 = arith.constant 3 : index
    %c0_50 = arith.constant 0 : index
    %107 = tpu.strided_load %arg11[%c3, %c0_50] {strides = array<i32: 32, 1>} : memref<64x123xf32, #tpu.memory_space<vmem>>, vector<2x123xf32>
    %108 = arith.truncf %107 : vector<2x123xf32> to vector<2x123xbf16>
    %c3_51 = arith.constant 3 : index
    %c0_52 = arith.constant 0 : index
    %c0_53 = arith.constant 0 : index
    %109 = vector.load %arg6[%c3_51, %c0_52, %c0_53] : memref<32x123x128xbf16, #tpu.memory_space<vmem>>, vector<1x123x128xbf16>
    %110 = vector.shape_cast %109 : vector<1x123x128xbf16> to vector<123x128xbf16>
    %cst_54 = arith.constant dense<0.000000e+00> : vector<2x128xf32>
    %111 = tpu.matmul %108, %110, %cst_54 {dimension_numbers = #tpu.dot_dimension_numbers<[1], [0], [0], [1], [0, 0, 1, 1], [], []>} : vector<2x123xbf16>, vector<123x128xbf16>, vector<2x128xf32> -> vector<2x128xf32>
    %112 = arith.addf %106, %111 : vector<2x128xf32>
    %c4 = arith.constant 4 : index
    %c0_55 = arith.constant 0 : index
    %113 = tpu.strided_load %arg11[%c4, %c0_55] {strides = array<i32: 32, 1>} : memref<64x123xf32, #tpu.memory_space<vmem>>, vector<2x123xf32>
    %114 = arith.truncf %113 : vector<2x123xf32> to vector<2x123xbf16>
    %c4_56 = arith.constant 4 : index
    %c0_57 = arith.constant 0 : index
    %c0_58 = arith.constant 0 : index
    %115 = vector.load %arg6[%c4_56, %c0_57, %c0_58] : memref<32x123x128xbf16, #tpu.memory_space<vmem>>, vector<1x123x128xbf16>
    %116 = vector.shape_cast %115 : vector<1x123x128xbf16> to vector<123x128xbf16>
    %cst_59 = arith.constant dense<0.000000e+00> : vector<2x128xf32>
    %117 = tpu.matmul %114, %116, %cst_59 {dimension_numbers = #tpu.dot_dimension_numbers<[1], [0], [0], [1], [0, 0, 1, 1], [], []>} : vector<2x123xbf16>, vector<123x128xbf16>, vector<2x128xf32> -> vector<2x128xf32>
    %118 = arith.addf %112, %117 : vector<2x128xf32>
    %c5 = arith.constant 5 : index
    %c0_60 = arith.constant 0 : index
    %119 = tpu.strided_load %arg11[%c5, %c0_60] {strides = array<i32: 32, 1>} : memref<64x123xf32, #tpu.memory_space<vmem>>, vector<2x123xf32>
    %120 = arith.truncf %119 : vector<2x123xf32> to vector<2x123xbf16>
    %c5_61 = arith.constant 5 : index
    %c0_62 = arith.constant 0 : index
    %c0_63 = arith.constant 0 : index
    %121 = vector.load %arg6[%c5_61, %c0_62, %c0_63] : memref<32x123x128xbf16, #tpu.memory_space<vmem>>, vector<1x123x128xbf16>
    %122 = vector.shape_cast %121 : vector<1x123x128xbf16> to vector<123x128xbf16>
    %cst_64 = arith.constant dense<0.000000e+00> : vector<2x128xf32>
    %123 = tpu.matmul %120, %122, %cst_64 {dimension_numbers = #tpu.dot_dimension_numbers<[1], [0], [0], [1], [0, 0, 1, 1], [], []>} : vector<2x123xbf16>, vector<123x128xbf16>, vector<2x128xf32> -> vector<2x128xf32>
    %124 = arith.addf %118, %123 : vector<2x128xf32>
    %c6 = arith.constant 6 : index
    %c0_65 = arith.constant 0 : index
    %125 = tpu.strided_load %arg11[%c6, %c0_65] {strides = array<i32: 32, 1>} : memref<64x123xf32, #tpu.memory_space<vmem>>, vector<2x123xf32>
    %126 = arith.truncf %125 : vector<2x123xf32> to vector<2x123xbf16>
    %c6_66 = arith.constant 6 : index
    %c0_67 = arith.constant 0 : index
    %c0_68 = arith.constant 0 : index
    %127 = vector.load %arg6[%c6_66, %c0_67, %c0_68] : memref<32x123x128xbf16, #tpu.memory_space<vmem>>, vector<1x123x128xbf16>
    %128 = vector.shape_cast %127 : vector<1x123x128xbf16> to vector<123x128xbf16>
    %cst_69 = arith.constant dense<0.000000e+00> : vector<2x128xf32>
    %129 = tpu.matmul %126, %128, %cst_69 {dimension_numbers = #tpu.dot_dimension_numbers<[1], [0], [0], [1], [0, 0, 1, 1], [], []>} : vector<2x123xbf16>, vector<123x128xbf16>, vector<2x128xf32> -> vector<2x128xf32>
    %130 = arith.addf %124, %129 : vector<2x128xf32>
    %c7 = arith.constant 7 : index
    %c0_70 = arith.constant 0 : index
    %131 = tpu.strided_load %arg11[%c7, %c0_70] {strides = array<i32: 32, 1>} : memref<64x123xf32, #tpu.memory_space<vmem>>, vector<2x123xf32>
    %132 = arith.truncf %131 : vector<2x123xf32> to vector<2x123xbf16>
    %c7_71 = arith.constant 7 : index
    %c0_72 = arith.constant 0 : index
    %c0_73 = arith.constant 0 : index
    %133 = vector.load %arg6[%c7_71, %c0_72, %c0_73] : memref<32x123x128xbf16, #tpu.memory_space<vmem>>, vector<1x123x128xbf16>
    %134 = vector.shape_cast %133 : vector<1x123x128xbf16> to vector<123x128xbf16>
    %cst_74 = arith.constant dense<0.000000e+00> : vector<2x128xf32>
    %135 = tpu.matmul %132, %134, %cst_74 {dimension_numbers = #tpu.dot_dimension_numbers<[1], [0], [0], [1], [0, 0, 1, 1], [], []>} : vector<2x123xbf16>, vector<123x128xbf16>, vector<2x128xf32> -> vector<2x128xf32>
    %136 = arith.addf %130, %135 : vector<2x128xf32>
    %c8 = arith.constant 8 : index
    %c0_75 = arith.constant 0 : index
    %137 = tpu.strided_load %arg11[%c8, %c0_75] {strides = array<i32: 32, 1>} : memref<64x123xf32, #tpu.memory_space<vmem>>, vector<2x123xf32>
    %138 = arith.truncf %137 : vector<2x123xf32> to vector<2x123xbf16>
    %c8_76 = arith.constant 8 : index
    %c0_77 = arith.constant 0 : index
    %c0_78 = arith.constant 0 : index
    %139 = vector.load %arg6[%c8_76, %c0_77, %c0_78] : memref<32x123x128xbf16, #tpu.memory_space<vmem>>, vector<1x123x128xbf16>
    %140 = vector.shape_cast %139 : vector<1x123x128xbf16> to vector<123x128xbf16>
    %cst_79 = arith.constant dense<0.000000e+00> : vector<2x128xf32>
    %141 = tpu.matmul %138, %140, %cst_79 {dimension_numbers = #tpu.dot_dimension_numbers<[1], [0], [0], [1], [0, 0, 1, 1], [], []>} : vector<2x123xbf16>, vector<123x128xbf16>, vector<2x128xf32> -> vector<2x128xf32>
    %142 = arith.addf %136, %141 : vector<2x128xf32>
    %c9 = arith.constant 9 : index
    %c0_80 = arith.constant 0 : index
    %143 = tpu.strided_load %arg11[%c9, %c0_80] {strides = array<i32: 32, 1>} : memref<64x123xf32, #tpu.memory_space<vmem>>, vector<2x123xf32>
    %144 = arith.truncf %143 : vector<2x123xf32> to vector<2x123xbf16>
    %c9_81 = arith.constant 9 : index
    %c0_82 = arith.constant 0 : index
    %c0_83 = arith.constant 0 : index
    %145 = vector.load %arg6[%c9_81, %c0_82, %c0_83] : memref<32x123x128xbf16, #tpu.memory_space<vmem>>, vector<1x123x128xbf16>
    %146 = vector.shape_cast %145 : vector<1x123x128xbf16> to vector<123x128xbf16>
    %cst_84 = arith.constant dense<0.000000e+00> : vector<2x128xf32>
    %147 = tpu.matmul %144, %146, %cst_84 {dimension_numbers = #tpu.dot_dimension_numbers<[1], [0], [0], [1], [0, 0, 1, 1], [], []>} : vector<2x123xbf16>, vector<123x128xbf16>, vector<2x128xf32> -> vector<2x128xf32>
    %148 = arith.addf %142, %147 : vector<2x128xf32>
    %c10 = arith.constant 10 : index
    %c0_85 = arith.constant 0 : index
    %149 = tpu.strided_load %arg11[%c10, %c0_85] {strides = array<i32: 32, 1>} : memref<64x123xf32, #tpu.memory_space<vmem>>, vector<2x123xf32>
    %150 = arith.truncf %149 : vector<2x123xf32> to vector<2x123xbf16>
    %c10_86 = arith.constant 10 : index
    %c0_87 = arith.constant 0 : index
    %c0_88 = arith.constant 0 : index
    %151 = vector.load %arg6[%c10_86, %c0_87, %c0_88] : memref<32x123x128xbf16, #tpu.memory_space<vmem>>, vector<1x123x128xbf16>
    %152 = vector.shape_cast %151 : vector<1x123x128xbf16> to vector<123x128xbf16>
    %cst_89 = arith.constant dense<0.000000e+00> : vector<2x128xf32>
    %153 = tpu.matmul %150, %152, %cst_89 {dimension_numbers = #tpu.dot_dimension_numbers<[1], [0], [0], [1], [0, 0, 1, 1], [], []>} : vector<2x123xbf16>, vector<123x128xbf16>, vector<2x128xf32> -> vector<2x128xf32>
    %154 = arith.addf %148, %153 : vector<2x128xf32>
    %c11 = arith.constant 11 : index
    %c0_90 = arith.constant 0 : index
    %155 = tpu.strided_load %arg11[%c11, %c0_90] {strides = array<i32: 32, 1>} : memref<64x123xf32, #tpu.memory_space<vmem>>, vector<2x123xf32>
    %156 = arith.truncf %155 : vector<2x123xf32> to vector<2x123xbf16>
    %c11_91 = arith.constant 11 : index
    %c0_92 = arith.constant 0 : index
    %c0_93 = arith.constant 0 : index
    %157 = vector.load %arg6[%c11_91, %c0_92, %c0_93] : memref<32x123x128xbf16, #tpu.memory_space<vmem>>, vector<1x123x128xbf16>
    %158 = vector.shape_cast %157 : vector<1x123x128xbf16> to vector<123x128xbf16>
    %cst_94 = arith.constant dense<0.000000e+00> : vector<2x128xf32>
    %159 = tpu.matmul %156, %158, %cst_94 {dimension_numbers = #tpu.dot_dimension_numbers<[1], [0], [0], [1], [0, 0, 1, 1], [], []>} : vector<2x123xbf16>, vector<123x128xbf16>, vector<2x128xf32> -> vector<2x128xf32>
    %160 = arith.addf %154, %159 : vector<2x128xf32>
    %c12 = arith.constant 12 : index
    %c0_95 = arith.constant 0 : index
    %161 = tpu.strided_load %arg11[%c12, %c0_95] {strides = array<i32: 32, 1>} : memref<64x123xf32, #tpu.memory_space<vmem>>, vector<2x123xf32>
    %162 = arith.truncf %161 : vector<2x123xf32> to vector<2x123xbf16>
    %c12_96 = arith.constant 12 : index
    %c0_97 = arith.constant 0 : index
    %c0_98 = arith.constant 0 : index
    %163 = vector.load %arg6[%c12_96, %c0_97, %c0_98] : memref<32x123x128xbf16, #tpu.memory_space<vmem>>, vector<1x123x128xbf16>
    %164 = vector.shape_cast %163 : vector<1x123x128xbf16> to vector<123x128xbf16>
    %cst_99 = arith.constant dense<0.000000e+00> : vector<2x128xf32>
    %165 = tpu.matmul %162, %164, %cst_99 {dimension_numbers = #tpu.dot_dimension_numbers<[1], [0], [0], [1], [0, 0, 1, 1], [], []>} : vector<2x123xbf16>, vector<123x128xbf16>, vector<2x128xf32> -> vector<2x128xf32>
    %166 = arith.addf %160, %165 : vector<2x128xf32>
    %c13 = arith.constant 13 : index
    %c0_100 = arith.constant 0 : index
    %167 = tpu.strided_load %arg11[%c13, %c0_100] {strides = array<i32: 32, 1>} : memref<64x123xf32, #tpu.memory_space<vmem>>, vector<2x123xf32>
    %168 = arith.truncf %167 : vector<2x123xf32> to vector<2x123xbf16>
    %c13_101 = arith.constant 13 : index
    %c0_102 = arith.constant 0 : index
    %c0_103 = arith.constant 0 : index
    %169 = vector.load %arg6[%c13_101, %c0_102, %c0_103] : memref<32x123x128xbf16, #tpu.memory_space<vmem>>, vector<1x123x128xbf16>
    %170 = vector.shape_cast %169 : vector<1x123x128xbf16> to vector<123x128xbf16>
    %cst_104 = arith.constant dense<0.000000e+00> : vector<2x128xf32>
    %171 = tpu.matmul %168, %170, %cst_104 {dimension_numbers = #tpu.dot_dimension_numbers<[1], [0], [0], [1], [0, 0, 1, 1], [], []>} : vector<2x123xbf16>, vector<123x128xbf16>, vector<2x128xf32> -> vector<2x128xf32>
    %172 = arith.addf %166, %171 : vector<2x128xf32>
    %c14 = arith.constant 14 : index
    %c0_105 = arith.constant 0 : index
    %173 = tpu.strided_load %arg11[%c14, %c0_105] {strides = array<i32: 32, 1>} : memref<64x123xf32, #tpu.memory_space<vmem>>, vector<2x123xf32>
    %174 = arith.truncf %173 : vector<2x123xf32> to vector<2x123xbf16>
    %c14_106 = arith.constant 14 : index
    %c0_107 = arith.constant 0 : index
    %c0_108 = arith.constant 0 : index
    %175 = vector.load %arg6[%c14_106, %c0_107, %c0_108] : memref<32x123x128xbf16, #tpu.memory_space<vmem>>, vector<1x123x128xbf16>
    %176 = vector.shape_cast %175 : vector<1x123x128xbf16> to vector<123x128xbf16>
    %cst_109 = arith.constant dense<0.000000e+00> : vector<2x128xf32>
    %177 = tpu.matmul %174, %176, %cst_109 {dimension_numbers = #tpu.dot_dimension_numbers<[1], [0], [0], [1], [0, 0, 1, 1], [], []>} : vector<2x123xbf16>, vector<123x128xbf16>, vector<2x128xf32> -> vector<2x128xf32>
    %178 = arith.addf %172, %177 : vector<2x128xf32>
    %c15 = arith.constant 15 : index
    %c0_110 = arith.constant 0 : index
    %179 = tpu.strided_load %arg11[%c15, %c0_110] {strides = array<i32: 32, 1>} : memref<64x123xf32, #tpu.memory_space<vmem>>, vector<2x123xf32>
    %180 = arith.truncf %179 : vector<2x123xf32> to vector<2x123xbf16>
    %c15_111 = arith.constant 15 : index
    %c0_112 = arith.constant 0 : index
    %c0_113 = arith.constant 0 : index
    %181 = vector.load %arg6[%c15_111, %c0_112, %c0_113] : memref<32x123x128xbf16, #tpu.memory_space<vmem>>, vector<1x123x128xbf16>
    %182 = vector.shape_cast %181 : vector<1x123x128xbf16> to vector<123x128xbf16>
    %cst_114 = arith.constant dense<0.000000e+00> : vector<2x128xf32>
    %183 = tpu.matmul %180, %182, %cst_114 {dimension_numbers = #tpu.dot_dimension_numbers<[1], [0], [0], [1], [0, 0, 1, 1], [], []>} : vector<2x123xbf16>, vector<123x128xbf16>, vector<2x128xf32> -> vector<2x128xf32>
    %184 = arith.addf %178, %183 : vector<2x128xf32>
    %c16 = arith.constant 16 : index
    %c0_115 = arith.constant 0 : index
    %185 = tpu.strided_load %arg11[%c16, %c0_115] {strides = array<i32: 32, 1>} : memref<64x123xf32, #tpu.memory_space<vmem>>, vector<2x123xf32>
    %186 = arith.truncf %185 : vector<2x123xf32> to vector<2x123xbf16>
    %c16_116 = arith.constant 16 : index
    %c0_117 = arith.constant 0 : index
    %c0_118 = arith.constant 0 : index
    %187 = vector.load %arg6[%c16_116, %c0_117, %c0_118] : memref<32x123x128xbf16, #tpu.memory_space<vmem>>, vector<1x123x128xbf16>
    %188 = vector.shape_cast %187 : vector<1x123x128xbf16> to vector<123x128xbf16>
    %cst_119 = arith.constant dense<0.000000e+00> : vector<2x128xf32>
    %189 = tpu.matmul %186, %188, %cst_119 {dimension_numbers = #tpu.dot_dimension_numbers<[1], [0], [0], [1], [0, 0, 1, 1], [], []>} : vector<2x123xbf16>, vector<123x128xbf16>, vector<2x128xf32> -> vector<2x128xf32>
    %190 = arith.addf %184, %189 : vector<2x128xf32>
    %c17 = arith.constant 17 : index
    %c0_120 = arith.constant 0 : index
    %191 = tpu.strided_load %arg11[%c17, %c0_120] {strides = array<i32: 32, 1>} : memref<64x123xf32, #tpu.memory_space<vmem>>, vector<2x123xf32>
    %192 = arith.truncf %191 : vector<2x123xf32> to vector<2x123xbf16>
    %c17_121 = arith.constant 17 : index
    %c0_122 = arith.constant 0 : index
    %c0_123 = arith.constant 0 : index
    %193 = vector.load %arg6[%c17_121, %c0_122, %c0_123] : memref<32x123x128xbf16, #tpu.memory_space<vmem>>, vector<1x123x128xbf16>
    %194 = vector.shape_cast %193 : vector<1x123x128xbf16> to vector<123x128xbf16>
    %cst_124 = arith.constant dense<0.000000e+00> : vector<2x128xf32>
    %195 = tpu.matmul %192, %194, %cst_124 {dimension_numbers = #tpu.dot_dimension_numbers<[1], [0], [0], [1], [0, 0, 1, 1], [], []>} : vector<2x123xbf16>, vector<123x128xbf16>, vector<2x128xf32> -> vector<2x128xf32>
    %196 = arith.addf %190, %195 : vector<2x128xf32>
    %c18 = arith.constant 18 : index
    %c0_125 = arith.constant 0 : index
    %197 = tpu.strided_load %arg11[%c18, %c0_125] {strides = array<i32: 32, 1>} : memref<64x123xf32, #tpu.memory_space<vmem>>, vector<2x123xf32>
    %198 = arith.truncf %197 : vector<2x123xf32> to vector<2x123xbf16>
    %c18_126 = arith.constant 18 : index
    %c0_127 = arith.constant 0 : index
    %c0_128 = arith.constant 0 : index
    %199 = vector.load %arg6[%c18_126, %c0_127, %c0_128] : memref<32x123x128xbf16, #tpu.memory_space<vmem>>, vector<1x123x128xbf16>
    %200 = vector.shape_cast %199 : vector<1x123x128xbf16> to vector<123x128xbf16>
    %cst_129 = arith.constant dense<0.000000e+00> : vector<2x128xf32>
    %201 = tpu.matmul %198, %200, %cst_129 {dimension_numbers = #tpu.dot_dimension_numbers<[1], [0], [0], [1], [0, 0, 1, 1], [], []>} : vector<2x123xbf16>, vector<123x128xbf16>, vector<2x128xf32> -> vector<2x128xf32>
    %202 = arith.addf %196, %201 : vector<2x128xf32>
    %c19 = arith.constant 19 : index
    %c0_130 = arith.constant 0 : index
    %203 = tpu.strided_load %arg11[%c19, %c0_130] {strides = array<i32: 32, 1>} : memref<64x123xf32, #tpu.memory_space<vmem>>, vector<2x123xf32>
    %204 = arith.truncf %203 : vector<2x123xf32> to vector<2x123xbf16>
    %c19_131 = arith.constant 19 : index
    %c0_132 = arith.constant 0 : index
    %c0_133 = arith.constant 0 : index
    %205 = vector.load %arg6[%c19_131, %c0_132, %c0_133] : memref<32x123x128xbf16, #tpu.memory_space<vmem>>, vector<1x123x128xbf16>
    %206 = vector.shape_cast %205 : vector<1x123x128xbf16> to vector<123x128xbf16>
    %cst_134 = arith.constant dense<0.000000e+00> : vector<2x128xf32>
    %207 = tpu.matmul %204, %206, %cst_134 {dimension_numbers = #tpu.dot_dimension_numbers<[1], [0], [0], [1], [0, 0, 1, 1], [], []>} : vector<2x123xbf16>, vector<123x128xbf16>, vector<2x128xf32> -> vector<2x128xf32>
    %208 = arith.addf %202, %207 : vector<2x128xf32>
    %c20 = arith.constant 20 : index
    %c0_135 = arith.constant 0 : index
    %209 = tpu.strided_load %arg11[%c20, %c0_135] {strides = array<i32: 32, 1>} : memref<64x123xf32, #tpu.memory_space<vmem>>, vector<2x123xf32>
    %210 = arith.truncf %209 : vector<2x123xf32> to vector<2x123xbf16>
    %c20_136 = arith.constant 20 : index
    %c0_137 = arith.constant 0 : index
    %c0_138 = arith.constant 0 : index
    %211 = vector.load %arg6[%c20_136, %c0_137, %c0_138] : memref<32x123x128xbf16, #tpu.memory_space<vmem>>, vector<1x123x128xbf16>
    %212 = vector.shape_cast %211 : vector<1x123x128xbf16> to vector<123x128xbf16>
    %cst_139 = arith.constant dense<0.000000e+00> : vector<2x128xf32>
    %213 = tpu.matmul %210, %212, %cst_139 {dimension_numbers = #tpu.dot_dimension_numbers<[1], [0], [0], [1], [0, 0, 1, 1], [], []>} : vector<2x123xbf16>, vector<123x128xbf16>, vector<2x128xf32> -> vector<2x128xf32>
    %214 = arith.addf %208, %213 : vector<2x128xf32>
    %c21 = arith.constant 21 : index
    %c0_140 = arith.constant 0 : index
    %215 = tpu.strided_load %arg11[%c21, %c0_140] {strides = array<i32: 32, 1>} : memref<64x123xf32, #tpu.memory_space<vmem>>, vector<2x123xf32>
    %216 = arith.truncf %215 : vector<2x123xf32> to vector<2x123xbf16>
    %c21_141 = arith.constant 21 : index
    %c0_142 = arith.constant 0 : index
    %c0_143 = arith.constant 0 : index
    %217 = vector.load %arg6[%c21_141, %c0_142, %c0_143] : memref<32x123x128xbf16, #tpu.memory_space<vmem>>, vector<1x123x128xbf16>
    %218 = vector.shape_cast %217 : vector<1x123x128xbf16> to vector<123x128xbf16>
    %cst_144 = arith.constant dense<0.000000e+00> : vector<2x128xf32>
    %219 = tpu.matmul %216, %218, %cst_144 {dimension_numbers = #tpu.dot_dimension_numbers<[1], [0], [0], [1], [0, 0, 1, 1], [], []>} : vector<2x123xbf16>, vector<123x128xbf16>, vector<2x128xf32> -> vector<2x128xf32>
    %220 = arith.addf %214, %219 : vector<2x128xf32>
    %c22 = arith.constant 22 : index
    %c0_145 = arith.constant 0 : index
    %221 = tpu.strided_load %arg11[%c22, %c0_145] {strides = array<i32: 32, 1>} : memref<64x123xf32, #tpu.memory_space<vmem>>, vector<2x123xf32>
    %222 = arith.truncf %221 : vector<2x123xf32> to vector<2x123xbf16>
    %c22_146 = arith.constant 22 : index
    %c0_147 = arith.constant 0 : index
    %c0_148 = arith.constant 0 : index
    %223 = vector.load %arg6[%c22_146, %c0_147, %c0_148] : memref<32x123x128xbf16, #tpu.memory_space<vmem>>, vector<1x123x128xbf16>
    %224 = vector.shape_cast %223 : vector<1x123x128xbf16> to vector<123x128xbf16>
    %cst_149 = arith.constant dense<0.000000e+00> : vector<2x128xf32>
    %225 = tpu.matmul %222, %224, %cst_149 {dimension_numbers = #tpu.dot_dimension_numbers<[1], [0], [0], [1], [0, 0, 1, 1], [], []>} : vector<2x123xbf16>, vector<123x128xbf16>, vector<2x128xf32> -> vector<2x128xf32>
    %226 = arith.addf %220, %225 : vector<2x128xf32>
    %c23 = arith.constant 23 : index
    %c0_150 = arith.constant 0 : index
    %227 = tpu.strided_load %arg11[%c23, %c0_150] {strides = array<i32: 32, 1>} : memref<64x123xf32, #tpu.memory_space<vmem>>, vector<2x123xf32>
    %228 = arith.truncf %227 : vector<2x123xf32> to vector<2x123xbf16>
    %c23_151 = arith.constant 23 : index
    %c0_152 = arith.constant 0 : index
    %c0_153 = arith.constant 0 : index
    %229 = vector.load %arg6[%c23_151, %c0_152, %c0_153] : memref<32x123x128xbf16, #tpu.memory_space<vmem>>, vector<1x123x128xbf16>
    %230 = vector.shape_cast %229 : vector<1x123x128xbf16> to vector<123x128xbf16>
    %cst_154 = arith.constant dense<0.000000e+00> : vector<2x128xf32>
    %231 = tpu.matmul %228, %230, %cst_154 {dimension_numbers = #tpu.dot_dimension_numbers<[1], [0], [0], [1], [0, 0, 1, 1], [], []>} : vector<2x123xbf16>, vector<123x128xbf16>, vector<2x128xf32> -> vector<2x128xf32>
    %232 = arith.addf %226, %231 : vector<2x128xf32>
    %c24 = arith.constant 24 : index
    %c0_155 = arith.constant 0 : index
    %233 = tpu.strided_load %arg11[%c24, %c0_155] {strides = array<i32: 32, 1>} : memref<64x123xf32, #tpu.memory_space<vmem>>, vector<2x123xf32>
    %234 = arith.truncf %233 : vector<2x123xf32> to vector<2x123xbf16>
    %c24_156 = arith.constant 24 : index
    %c0_157 = arith.constant 0 : index
    %c0_158 = arith.constant 0 : index
    %235 = vector.load %arg6[%c24_156, %c0_157, %c0_158] : memref<32x123x128xbf16, #tpu.memory_space<vmem>>, vector<1x123x128xbf16>
    %236 = vector.shape_cast %235 : vector<1x123x128xbf16> to vector<123x128xbf16>
    %cst_159 = arith.constant dense<0.000000e+00> : vector<2x128xf32>
    %237 = tpu.matmul %234, %236, %cst_159 {dimension_numbers = #tpu.dot_dimension_numbers<[1], [0], [0], [1], [0, 0, 1, 1], [], []>} : vector<2x123xbf16>, vector<123x128xbf16>, vector<2x128xf32> -> vector<2x128xf32>
    %238 = arith.addf %232, %237 : vector<2x128xf32>
    %c25 = arith.constant 25 : index
    %c0_160 = arith.constant 0 : index
    %239 = tpu.strided_load %arg11[%c25, %c0_160] {strides = array<i32: 32, 1>} : memref<64x123xf32, #tpu.memory_space<vmem>>, vector<2x123xf32>
    %240 = arith.truncf %239 : vector<2x123xf32> to vector<2x123xbf16>
    %c25_161 = arith.constant 25 : index
    %c0_162 = arith.constant 0 : index
    %c0_163 = arith.constant 0 : index
    %241 = vector.load %arg6[%c25_161, %c0_162, %c0_163] : memref<32x123x128xbf16, #tpu.memory_space<vmem>>, vector<1x123x128xbf16>
    %242 = vector.shape_cast %241 : vector<1x123x128xbf16> to vector<123x128xbf16>
    %cst_164 = arith.constant dense<0.000000e+00> : vector<2x128xf32>
    %243 = tpu.matmul %240, %242, %cst_164 {dimension_numbers = #tpu.dot_dimension_numbers<[1], [0], [0], [1], [0, 0, 1, 1], [], []>} : vector<2x123xbf16>, vector<123x128xbf16>, vector<2x128xf32> -> vector<2x128xf32>
    %244 = arith.addf %238, %243 : vector<2x128xf32>
    %c26 = arith.constant 26 : index
    %c0_165 = arith.constant 0 : index
    %245 = tpu.strided_load %arg11[%c26, %c0_165] {strides = array<i32: 32, 1>} : memref<64x123xf32, #tpu.memory_space<vmem>>, vector<2x123xf32>
    %246 = arith.truncf %245 : vector<2x123xf32> to vector<2x123xbf16>
    %c26_166 = arith.constant 26 : index
    %c0_167 = arith.constant 0 : index
    %c0_168 = arith.constant 0 : index
    %247 = vector.load %arg6[%c26_166, %c0_167, %c0_168] : memref<32x123x128xbf16, #tpu.memory_space<vmem>>, vector<1x123x128xbf16>
    %248 = vector.shape_cast %247 : vector<1x123x128xbf16> to vector<123x128xbf16>
    %cst_169 = arith.constant dense<0.000000e+00> : vector<2x128xf32>
    %249 = tpu.matmul %246, %248, %cst_169 {dimension_numbers = #tpu.dot_dimension_numbers<[1], [0], [0], [1], [0, 0, 1, 1], [], []>} : vector<2x123xbf16>, vector<123x128xbf16>, vector<2x128xf32> -> vector<2x128xf32>
    %250 = arith.addf %244, %249 : vector<2x128xf32>
    %c27 = arith.constant 27 : index
    %c0_170 = arith.constant 0 : index
    %251 = tpu.strided_load %arg11[%c27, %c0_170] {strides = array<i32: 32, 1>} : memref<64x123xf32, #tpu.memory_space<vmem>>, vector<2x123xf32>
    %252 = arith.truncf %251 : vector<2x123xf32> to vector<2x123xbf16>
    %c27_171 = arith.constant 27 : index
    %c0_172 = arith.constant 0 : index
    %c0_173 = arith.constant 0 : index
    %253 = vector.load %arg6[%c27_171, %c0_172, %c0_173] : memref<32x123x128xbf16, #tpu.memory_space<vmem>>, vector<1x123x128xbf16>
    %254 = vector.shape_cast %253 : vector<1x123x128xbf16> to vector<123x128xbf16>
    %cst_174 = arith.constant dense<0.000000e+00> : vector<2x128xf32>
    %255 = tpu.matmul %252, %254, %cst_174 {dimension_numbers = #tpu.dot_dimension_numbers<[1], [0], [0], [1], [0, 0, 1, 1], [], []>} : vector<2x123xbf16>, vector<123x128xbf16>, vector<2x128xf32> -> vector<2x128xf32>
    %256 = arith.addf %250, %255 : vector<2x128xf32>
    %c28 = arith.constant 28 : index
    %c0_175 = arith.constant 0 : index
    %257 = tpu.strided_load %arg11[%c28, %c0_175] {strides = array<i32: 32, 1>} : memref<64x123xf32, #tpu.memory_space<vmem>>, vector<2x123xf32>
    %258 = arith.truncf %257 : vector<2x123xf32> to vector<2x123xbf16>
    %c28_176 = arith.constant 28 : index
    %c0_177 = arith.constant 0 : index
    %c0_178 = arith.constant 0 : index
    %259 = vector.load %arg6[%c28_176, %c0_177, %c0_178] : memref<32x123x128xbf16, #tpu.memory_space<vmem>>, vector<1x123x128xbf16>
    %260 = vector.shape_cast %259 : vector<1x123x128xbf16> to vector<123x128xbf16>
    %cst_179 = arith.constant dense<0.000000e+00> : vector<2x128xf32>
    %261 = tpu.matmul %258, %260, %cst_179 {dimension_numbers = #tpu.dot_dimension_numbers<[1], [0], [0], [1], [0, 0, 1, 1], [], []>} : vector<2x123xbf16>, vector<123x128xbf16>, vector<2x128xf32> -> vector<2x128xf32>
    %262 = arith.addf %256, %261 : vector<2x128xf32>
    %c29 = arith.constant 29 : index
    %c0_180 = arith.constant 0 : index
    %263 = tpu.strided_load %arg11[%c29, %c0_180] {strides = array<i32: 32, 1>} : memref<64x123xf32, #tpu.memory_space<vmem>>, vector<2x123xf32>
    %264 = arith.truncf %263 : vector<2x123xf32> to vector<2x123xbf16>
    %c29_181 = arith.constant 29 : index
    %c0_182 = arith.constant 0 : index
    %c0_183 = arith.constant 0 : index
    %265 = vector.load %arg6[%c29_181, %c0_182, %c0_183] : memref<32x123x128xbf16, #tpu.memory_space<vmem>>, vector<1x123x128xbf16>
    %266 = vector.shape_cast %265 : vector<1x123x128xbf16> to vector<123x128xbf16>
    %cst_184 = arith.constant dense<0.000000e+00> : vector<2x128xf32>
    %267 = tpu.matmul %264, %266, %cst_184 {dimension_numbers = #tpu.dot_dimension_numbers<[1], [0], [0], [1], [0, 0, 1, 1], [], []>} : vector<2x123xbf16>, vector<123x128xbf16>, vector<2x128xf32> -> vector<2x128xf32>
    %268 = arith.addf %262, %267 : vector<2x128xf32>
    %c30 = arith.constant 30 : index
    %c0_185 = arith.constant 0 : index
    %269 = tpu.strided_load %arg11[%c30, %c0_185] {strides = array<i32: 32, 1>} : memref<64x123xf32, #tpu.memory_space<vmem>>, vector<2x123xf32>
    %270 = arith.truncf %269 : vector<2x123xf32> to vector<2x123xbf16>
    %c30_186 = arith.constant 30 : index
    %c0_187 = arith.constant 0 : index
    %c0_188 = arith.constant 0 : index
    %271 = vector.load %arg6[%c30_186, %c0_187, %c0_188] : memref<32x123x128xbf16, #tpu.memory_space<vmem>>, vector<1x123x128xbf16>
    %272 = vector.shape_cast %271 : vector<1x123x128xbf16> to vector<123x128xbf16>
    %cst_189 = arith.constant dense<0.000000e+00> : vector<2x128xf32>
    %273 = tpu.matmul %270, %272, %cst_189 {dimension_numbers = #tpu.dot_dimension_numbers<[1], [0], [0], [1], [0, 0, 1, 1], [], []>} : vector<2x123xbf16>, vector<123x128xbf16>, vector<2x128xf32> -> vector<2x128xf32>
    %274 = arith.addf %268, %273 : vector<2x128xf32>
    %c31 = arith.constant 31 : index
    %c0_190 = arith.constant 0 : index
    %275 = tpu.strided_load %arg11[%c31, %c0_190] {strides = array<i32: 32, 1>} : memref<64x123xf32, #tpu.memory_space<vmem>>, vector<2x123xf32>
    %276 = arith.truncf %275 : vector<2x123xf32> to vector<2x123xbf16>
    %c31_191 = arith.constant 31 : index
    %c0_192 = arith.constant 0 : index
    %c0_193 = arith.constant 0 : index
    %277 = vector.load %arg6[%c31_191, %c0_192, %c0_193] : memref<32x123x128xbf16, #tpu.memory_space<vmem>>, vector<1x123x128xbf16>
    %278 = vector.shape_cast %277 : vector<1x123x128xbf16> to vector<123x128xbf16>
    %cst_194 = arith.constant dense<0.000000e+00> : vector<2x128xf32>
    %279 = tpu.matmul %276, %278, %cst_194 {dimension_numbers = #tpu.dot_dimension_numbers<[1], [0], [0], [1], [0, 0, 1, 1], [], []>} : vector<2x123xbf16>, vector<123x128xbf16>, vector<2x128xf32> -> vector<2x128xf32>
    %280 = arith.addf %274, %279 : vector<2x128xf32>
    %c0_195 = arith.constant 0 : index
    %c0_196 = arith.constant 0 : index
    %281 = vector.load %arg7[%c0_195, %c0_196] : memref<1x128xf32, #tpu.memory_space<vmem>>, vector<1x128xf32>
    %282 = vector.broadcast %281 : vector<1x128xf32> to vector<2x128xf32>
    %283 = arith.addf %280, %282 : vector<2x128xf32>
    %cst_197 = arith.constant 0.000000e+00 : f32
    %284 = vector.broadcast %cst_197 : f32 to vector<2x128xf32>
    %285 = arith.maximumf %283, %284 : vector<2x128xf32>
    %286 = arith.truncf %285 : vector<2x128xf32> to vector<2x128xbf16>
    %c0_198 = arith.constant 0 : index
    %c0_199 = arith.constant 0 : index
    %287 = vector.load %arg8[%c0_198, %c0_199] : memref<128x6xbf16, #tpu.memory_space<vmem>>, vector<128x6xbf16>
    %cst_200 = arith.constant dense<0.000000e+00> : vector<2x6xf32>
    %288 = tpu.matmul %286, %287, %cst_200 {dimension_numbers = #tpu.dot_dimension_numbers<[1], [0], [0], [1], [0, 0, 1, 1], [], []>} : vector<2x128xbf16>, vector<128x6xbf16>, vector<2x6xf32> -> vector<2x6xf32>
    %c0_201 = arith.constant 0 : index
    %c0_202 = arith.constant 0 : index
    %289 = vector.load %arg9[%c0_201, %c0_202] : memref<1x6xf32, #tpu.memory_space<vmem>>, vector<1x6xf32>
    %290 = vector.broadcast %289 : vector<1x6xf32> to vector<2x6xf32>
    %291 = arith.addf %288, %290 : vector<2x6xf32>
    %cst_203 = arith.constant dense<0xFF800000> : vector<2xf32>
    %292 = vector.multi_reduction <maximumf>, %291, %cst_203 [1] : vector<2x6xf32> to vector<2xf32>
    %293 = vector.shape_cast %292 : vector<2xf32> to vector<2x1xf32>
    %294 = vector.broadcast %293 : vector<2x1xf32> to vector<2x6xf32>
    %295 = arith.subf %291, %294 : vector<2x6xf32>
    %296 = math.exp %295 : vector<2x6xf32>
    %cst_204 = arith.constant dense<0.000000e+00> : vector<2xf32>
    %297 = vector.multi_reduction <add>, %296, %cst_204 [1] : vector<2x6xf32> to vector<2xf32>
    %298 = vector.shape_cast %297 : vector<2xf32> to vector<2x1xf32>
    %299 = vector.broadcast %298 : vector<2x1xf32> to vector<2x6xf32>
    %300 = arith.divf %296, %299 : vector<2x6xf32>
    %c0_205 = arith.constant 0 : index
    %c0_206 = arith.constant 0 : index
    %301 = vector.load %arg10[%c0_205, %c0_206] : memref<2x6xf32, #tpu.memory_space<vmem>>, vector<2x6xf32>
    tpu.vector_store %arg10[%c0_205, %c0_206], %300 {strides = array<i32>} : memref<2x6xf32, #tpu.memory_space<vmem>>, vector<2x6xf32>,
    return
  }
  func.func @transform_0(%arg0: i32) -> (i32, i32, i32) {
    %c0_i32 = arith.constant 0 : i32
    %c0_i32_0 = arith.constant 0 : i32
    %c0_i32_1 = arith.constant 0 : i32
    return %arg0, %c0_i32, %c0_i32_0 : i32, i32, i32
  }
  func.func @transform_1(%arg0: i32) -> (i32, i32, i32) {
    %c0_i32 = arith.constant 0 : i32
    %c0_i32_0 = arith.constant 0 : i32
    %c0_i32_1 = arith.constant 0 : i32
    %c0_i32_2 = arith.constant 0 : i32
    return %c0_i32, %c0_i32_0, %c0_i32_1 : i32, i32, i32
  }
  func.func @transform_2(%arg0: i32) -> (i32, i32) {
    %c0_i32 = arith.constant 0 : i32
    %c0_i32_0 = arith.constant 0 : i32
    %c0_i32_1 = arith.constant 0 : i32
    return %c0_i32, %c0_i32_0 : i32, i32
  }
  func.func @transform_3(%arg0: i32) -> (i32, i32, i32) {
    %c0_i32 = arith.constant 0 : i32
    %c0_i32_0 = arith.constant 0 : i32
    %c0_i32_1 = arith.constant 0 : i32
    %c0_i32_2 = arith.constant 0 : i32
    return %c0_i32, %c0_i32_0, %c0_i32_1 : i32, i32, i32
  }
  func.func @transform_4(%arg0: i32) -> (i32, i32) {
    %c0_i32 = arith.constant 0 : i32
    %c0_i32_0 = arith.constant 0 : i32
    %c0_i32_1 = arith.constant 0 : i32
    return %c0_i32, %c0_i32_0 : i32, i32
  }
  func.func @transform_5(%arg0: i32) -> (i32, i32, i32) {
    %c0_i32 = arith.constant 0 : i32
    %c0_i32_0 = arith.constant 0 : i32
    %c0_i32_1 = arith.constant 0 : i32
    %c0_i32_2 = arith.constant 0 : i32
    return %c0_i32, %c0_i32_0, %c0_i32_1 : i32, i32, i32
  }
  func.func @transform_6(%arg0: i32) -> (i32, i32) {
    %c0_i32 = arith.constant 0 : i32
    %c0_i32_0 = arith.constant 0 : i32
    %c0_i32_1 = arith.constant 0 : i32
    return %c0_i32, %c0_i32_0 : i32, i32
  }
  func.func @transform_7(%arg0: i32) -> (i32, i32) {
    %c0_i32 = arith.constant 0 : i32
    %c0_i32_0 = arith.constant 0 : i32
    %c0_i32_1 = arith.constant 0 : i32
    return %c0_i32, %c0_i32_0 : i32, i32
  }
  func.func @transform_8(%arg0: i32) -> (i32, i32) {
    %c0_i32 = arith.constant 0 : i32
    %c0_i32_0 = arith.constant 0 : i32
    %c0_i32_1 = arith.constant 0 : i32
    return %c0_i32, %c0_i32_0 : i32, i32
  }
  func.func @transform_9(%arg0: i32) -> (i32, i32) {
    %c0_i32 = arith.constant 0 : i32
    %c0_i32_0 = arith.constant 0 : i32
    return %arg0, %c0_i32 : i32, i32
  }
}

</mosaic_0001>

<llo_original>
// kernel: har_cnn_forward.1
$region0: #{har_cnn_forward.1}
  #allocation0 [shape = 'u32[]', space=smem, size = 0x4, offset = 0x4, fixed_abs, tag = 'smem constant byte address 0x4 - core index']
  #allocation1 [shape = 'u32[144,128]{1,0:T(1,128)}', space=vmem, size = 0x12000, scoped, tag = 'internal scratch']
  #allocation2 [shape = 'f32[64,123]{1,0:T(8,128)}', space=vmem, size = 0x8000, scoped, tag = 'scratch operand']
  %s0 = inlined_call_operand.vmem [shape: f32[2,9,128], index: 0, kind: input, shape index: {}]
  %s1 = inlined_call_operand.vmem [shape: f32[3,32,9], index: 1, kind: input, shape index: {}]
  %s2 = inlined_call_operand.vmem [shape: f32[32,1], index: 2, kind: input, shape index: {}]
  %s3 = inlined_call_operand.vmem [shape: f32[3,32,32], index: 3, kind: input, shape index: {}]
  %s4 = inlined_call_operand.vmem [shape: f32[32,1], index: 4, kind: input, shape index: {}]
  %s5 = inlined_call_operand.vmem [shape: bf16[32,123,128], index: 5, kind: input, shape index: {}]
  %s6 = inlined_call_operand.vmem [shape: f32[1,128], index: 6, kind: input, shape index: {}]
  %s7 = inlined_call_operand.vmem [shape: bf16[128,6], index: 7, kind: input, shape index: {}]
  %s8 = inlined_call_operand.vmem [shape: f32[1,6], index: 8, kind: input, shape index: {}]
  %s9 = inlined_call_operand.hbm [shape: f32[2,6], index: 9, kind: output, shape index: {}]
  %s10 = sld [smem:[#allocation0]]
  $region46: #{har_cnn_forward.1} parent=0
    _
  %s12 = ssub.s32 1, %s10
  %s13 = scalar_select 0, %s12, %s10
  $region1: #{har_cnn_forward.1} parent=0
    #allocation3 [shape = 'u8[1024]{0}', space=vmem, size = 0x400, scoped, tag = 'output window, operand 0, single buffered']
    #allocation4 [shape = 's32[1]{0}', space=sflag, size = 0x4, scoped, tag = 'scoped memory for har_cnn_forward.1']
    %14 = vsyncpa [#allocation4], 0
    // Predicated region
    $region2: #{har_cnn_forward.1} parent=1 // pred_check
      _
    $region3: #{har_cnn_forward.1} parent=1 // pred_check_branch
      %16 = sbr.rel (0) target = $region5
    $region4: #{har_cnn_forward.1} parent=1 // pred_region
      _
    $region5: #{har_cnn_forward.1} parent=1 // pred_fallthru
      _
    // Predicated region
    $region6: #{har_cnn_forward.1} parent=1 // pred_check
      _
    $region7: #{har_cnn_forward.1} parent=1 // pred_check_branch
      %18 = sbr.rel (0) target = $region9
    $region8: #{har_cnn_forward.1} parent=1 // pred_region
      _
    $region9: #{har_cnn_forward.1} parent=1 // pred_fallthru
      _
    // Predicated region
    $region10: #{har_cnn_forward.1} parent=1 // pred_check
      _
    $region11: #{har_cnn_forward.1} parent=1 // pred_check_branch
      %20 = sbr.rel (0) target = $region13
    $region12: #{har_cnn_forward.1} parent=1 // pred_region
      _
    $region13: #{har_cnn_forward.1} parent=1 // pred_fallthru
      _
    // Predicated region
    $region14: #{har_cnn_forward.1} parent=1 // pred_check
      _
    $region15: #{har_cnn_forward.1} parent=1 // pred_check_branch
      %22 = sbr.rel (0) target = $region17
    $region16: #{har_cnn_forward.1} parent=1 // pred_region
      _
    $region17: #{har_cnn_forward.1} parent=1 // pred_fallthru
      _
    // Predicated region
    $region18: #{har_cnn_forward.1} parent=1 // pred_check
      _
    $region19: #{har_cnn_forward.1} parent=1 // pred_check_branch
      %24 = sbr.rel (0) target = $region21
    $region20: #{har_cnn_forward.1} parent=1 // pred_region
      _
    $region21: #{har_cnn_forward.1} parent=1 // pred_fallthru
      _
    // Predicated region
    $region22: #{har_cnn_forward.1} parent=1 // pred_check
      _
    $region23: #{har_cnn_forward.1} parent=1 // pred_check_branch
      %26 = sbr.rel (0) target = $region25
    $region24: #{har_cnn_forward.1} parent=1 // pred_region
      _
    $region25: #{har_cnn_forward.1} parent=1 // pred_fallthru
      _
    // Predicated region
    $region26: #{har_cnn_forward.1} parent=1 // pred_check
      _
    $region27: #{har_cnn_forward.1} parent=1 // pred_check_branch
      %28 = sbr.rel (0) target = $region29
    $region28: #{har_cnn_forward.1} parent=1 // pred_region
      _
    $region29: #{har_cnn_forward.1} parent=1 // pred_fallthru
      _
    // Predicated region
    $region30: #{har_cnn_forward.1} parent=1 // pred_check
      _
    $region31: #{har_cnn_forward.1} parent=1 // pred_check_branch
      %30 = sbr.rel (0) target = $region33
    $region32: #{har_cnn_forward.1} parent=1 // pred_region
      _
    $region33: #{har_cnn_forward.1} parent=1 // pred_fallthru
      _
    // Predicated region
    $region34: #{har_cnn_forward.1} parent=1 // pred_check
      _
    $region35: #{har_cnn_forward.1} parent=1 // pred_check_branch
      %32 = sbr.rel (0) target = $region37
    $region36: #{har_cnn_forward.1} parent=1 // pred_region
      _
    $region37: #{har_cnn_forward.1} parent=1 // pred_fallthru
      _
    %v34 = vld [vmem:[%s1] sm:$0xff]
    %v35 = vld [vmem:[%s1 + $0x8] sm:$0xff]
    %v36 = vld [vmem:[%s1 + $0x10] sm:$0xff]
    %v37 = vld [vmem:[%s1 + $0x18] sm:$0xff]
    %v38 = vld [vmem:[%s1 + $0x20] sm:$0xff]
    %v39 = vld [vmem:[%s1 + $0x28] sm:$0xff]
    %v40 = vld [vmem:[%s1 + $0x30] sm:$0xff]
    %v41 = vld [vmem:[%s1 + $0x38] sm:$0xff]
    %v42 = vld [vmem:[%s1 + $0x40] sm:$0xff]
    %v43 = vld [vmem:[%s1 + $0x48] sm:$0xff]
    %v44 = vld [vmem:[%s1 + $0x50] sm:$0xff]
    %v45 = vld [vmem:[%s1 + $0x58] sm:$0xff]
    %v46 = vld [vmem:[%s3] sm:$0xff]
    %v47 = vld [vmem:[%s3 + $0x8] sm:$0xff]
    %v48 = vld [vmem:[%s3 + $0x10] sm:$0xff]
    %v49 = vld [vmem:[%s3 + $0x18] sm:$0xff]
    %v50 = vld [vmem:[%s3 + $0x20] sm:$0xff]
    %v51 = vld [vmem:[%s3 + $0x28] sm:$0xff]
    %v52 = vld [vmem:[%s3 + $0x30] sm:$0xff]
    %v53 = vld [vmem:[%s3 + $0x38] sm:$0xff]
    %v54 = vld [vmem:[%s3 + $0x40] sm:$0xff]
    %v55 = vld [vmem:[%s3 + $0x48] sm:$0xff]
    %v56 = vld [vmem:[%s3 + $0x50] sm:$0xff]
    %v57 = vld [vmem:[%s3 + $0x58] sm:$0xff]
    %v58 = vld [vmem:[%s2] sm:$0xff]
    %v59 = vld [vmem:[%s2 + $0x8] sm:$0xff]
    %v60 = vld [vmem:[%s2 + $0x10] sm:$0xff]
    %v61 = vld [vmem:[%s2 + $0x18] sm:$0xff]
    %v62 = vld [vmem:[%s4] sm:$0xff]
    %v63 = vld [vmem:[%s4 + $0x8] sm:$0xff]
    %v64 = vld [vmem:[%s4 + $0x10] sm:$0xff]
    %v65 = vld [vmem:[%s4 + $0x18] sm:$0xff]
    %v66 = vld [vmem:[%s0] sm:$0xff]
    %v67 = vld [vmem:[%s0 + $0x8] sm:$0x1]
    %70 = vrot.lane.b32.xlu0 %v66, 127
    %v71 = vpop.permute.xlu0 %70
    %72 = vrot.lane.b32.xlu0 %v67, 127
    %v73 = vpop.permute.xlu0 %72
    %vm75 = vcmask 72704
    %v77 = vsel %vm75, %v38, 0
    %v80 = vsel %vm75, %v39, 0
    %v83 = vsel %vm75, %v40, 0
    %v86 = vsel %vm75, %v41, 0
    %vm88 = vcmask 1040384
    %v89 = vsel %vm88, %v73, 0
    %91 = vmatprep.subr.mxu0 0.0
    %92 = vmatpush1.msra.mxu0 %v71
    %93 = vmatprep.subr.mxu0 0.0
    %94 = vmatpush1.msra.mxu0 %v89
    %95 = vmatprep.subr.mxu0 0.0
    %96 = vmatpush1.msra.mxu0 0.0
    %97 = vmatprep.subr.mxu0 0.0
    %98 = vmatpush1.msra.mxu0 0.0
    %99 = vmatprep.subr.mxu0 0.0
    %100 = vmatpush1.msra.mxu0 0.0
    %101 = vmatprep.subr.mxu0 0.0
    %102 = vmatpush1.msra.mxu0 0.0
    %103 = vmatprep.subr.mxu0 0.0
    %104 = vmatpush1.msra.mxu0 0.0
    %105 = vmatprep.subr.mxu0 0.0
    %106 = vmatpush1.msra.mxu0 0.0
    %107 = vmatprep.subr.mxu0 0.0
    %108 = vmatpush1.msra.mxu0 0.0
    %109 = vmatprep.subr.mxu0 0.0
    %110 = vmatpush1.msra.mxu0 0.0
    %111 = vmatprep.subr.mxu0 0.0
    %112 = vmatpush1.msra.mxu0 0.0
    %113 = vmatprep.subr.mxu0 0.0
    %114 = vmatpush1.msra.mxu0 0.0
    %115 = vmatprep.subr.mxu0 0.0
    %116 = vmatpush1.msra.mxu0 0.0
    %117 = vmatprep.subr.mxu0 0.0
    %118 = vmatpush1.msra.mxu0 0.0
    %119 = vmatprep.subr.mxu0 0.0
    %120 = vmatpush1.msra.mxu0 0.0
    %121 = vmatprep.subr.mxu0 0.0
    %122 = vmatpush1.msra.mxu0 0.0
    %123 = vmatprep.subr.mxu0 0.0
    %124 = vmatpush1.msra.mxu0 0.0
    %125 = vmatprep.subr.mxu0 0.0
    %126 = vmatpush1.msra.mxu0 0.0
    %127 = vmatprep.subr.mxu0 0.0
    %128 = vmatpush1.msra.mxu0 0.0
    %129 = vmatprep.subr.mxu0 0.0
    %130 = vmatpush1.msra.mxu0 0.0
    %131 = vmatprep.subr.mxu0 0.0
    %132 = vmatpush1.msra.mxu0 0.0
    %133 = vmatprep.subr.mxu0 0.0
    %134 = vmatpush1.msra.mxu0 0.0
    %135 = vmatprep.subr.mxu0 0.0
    %136 = vmatpush1.msra.mxu0 0.0
    %137 = vmatprep.subr.mxu0 0.0
    %138 = vmatpush1.msra.mxu0 0.0
    %139 = vmatprep.subr.mxu0 0.0
    %140 = vmatpush1.msra.mxu0 0.0
    %141 = vmatprep.subr.mxu0 0.0
    %142 = vmatpush1.msra.mxu0 0.0
    %143 = vmatprep.subr.mxu0 0.0
    %144 = vmatpush1.msra.mxu0 0.0
    %145 = vmatprep.subr.mxu0 0.0
    %146 = vmatpush1.msra.mxu0 0.0
    %147 = vmatprep.subr.mxu0 0.0
    %148 = vmatpush1.msra.mxu0 0.0
    %149 = vmatprep.subr.mxu0 0.0
    %150 = vmatpush1.msra.mxu0 0.0
    %151 = vmatprep.subr.mxu0 0.0
    %152 = vmatpush1.msra.mxu0 0.0
    %153 = vmatprep.subr.mxu0 0.0
    %154 = vmatpush1.msra.mxu0 0.0
    %155 = vmatprep.mubr.f32.mxu0 0.0
    %156 = vmatmul.mubr.f32.gmra.mrb[0].mxu0 %v77
    %v157 = vpop.f32.mrb[0].mxu0
    %v158 = vadd.f32 0.0, %v157
    %v159 = vpop.f32.mrb[0].mxu0
    %160 = vmatprep.mubr.f32.mxu0 0.0
    %161 = vmatmul.mubr.f32.gmra.mrb[0].mxu0 %v80
    %v162 = vpop.f32.mrb[0].mxu0
    %v163 = vadd.f32 0.0, %v162
    %v164 = vpop.f32.mrb[0].mxu0
    %165 = vmatprep.mubr.f32.mxu0 0.0
    %166 = vmatmul.mubr.f32.gmra.mrb[0].mxu0 %v83
    %v167 = vpop.f32.mrb[0].mxu0
    %v168 = vadd.f32 0.0, %v167
    %v169 = vpop.f32.mrb[0].mxu0
    %170 = vmatprep.mubr.f32.mxu0 0.0
    %171 = vmatmul.mubr.f32.gmra.mrb[0].mxu0 %v86
    %v172 = vpop.f32.mrb[0].mxu0
    %v173 = vadd.f32 0.0, %v172
    %v174 = vpop.f32.mrb[0].mxu0
    %175 = vdwg.mxu0
    %v177 = vsel %vm75, %v34, 0
    %v180 = vsel %vm75, %v35, 0
    %v183 = vsel %vm75, %v36, 0
    %v186 = vsel %vm75, %v37, 0
    %v188 = vsel %vm88, %v67, 0
    %190 = vmatprep.subr.mxu0 0.0
    %191 = vmatpush1.msra.mxu0 %v66
    %192 = vmatprep.subr.mxu0 0.0
    %193 = vmatpush1.msra.mxu0 %v188
    %194 = vmatprep.subr.mxu0 0.0
    %195 = vmatpush1.msra.mxu0 0.0
    %196 = vmatprep.subr.mxu0 0.0
    %197 = vmatpush1.msra.mxu0 0.0
    %198 = vmatprep.subr.mxu0 0.0
    %199 = vmatpush1.msra.mxu0 0.0
    %200 = vmatprep.subr.mxu0 0.0
    %201 = vmatpush1.msra.mxu0 0.0
    %202 = vmatprep.subr.mxu0 0.0
    %203 = vmatpush1.msra.mxu0 0.0
    %204 = vmatprep.subr.mxu0 0.0
    %205 = vmatpush1.msra.mxu0 0.0
    %206 = vmatprep.subr.mxu0 0.0
    %207 = vmatpush1.msra.mxu0 0.0
    %208 = vmatprep.subr.mxu0 0.0
    %209 = vmatpush1.msra.mxu0 0.0
    %210 = vmatprep.subr.mxu0 0.0
    %211 = vmatpush1.msra.mxu0 0.0
    %212 = vmatprep.subr.mxu0 0.0
    %213 = vmatpush1.msra.mxu0 0.0
    %214 = vmatprep.subr.mxu0 0.0
    %215 = vmatpush1.msra.mxu0 0.0
    %216 = vmatprep.subr.mxu0 0.0
    %217 = vmatpush1.msra.mxu0 0.0
    %218 = vmatprep.subr.mxu0 0.0
    %219 = vmatpush1.msra.mxu0 0.0
    %220 = vmatprep.subr.mxu0 0.0
    %221 = vmatpush1.msra.mxu0 0.0
    %222 = vmatprep.subr.mxu0 0.0
    %223 = vmatpush1.msra.mxu0 0.0
    %224 = vmatprep.subr.mxu0 0.0
    %225 = vmatpush1.msra.mxu0 0.0
    %226 = vmatprep.subr.mxu0 0.0
    %227 = vmatpush1.msra.mxu0 0.0
    %228 = vmatprep.subr.mxu0 0.0
    %229 = vmatpush1.msra.mxu0 0.0
    %230 = vmatprep.subr.mxu0 0.0
    %231 = vmatpush1.msra.mxu0 0.0
    %232 = vmatprep.subr.mxu0 0.0
    %233 = vmatpush1.msra.mxu0 0.0
    %234 = vmatprep.subr.mxu0 0.0
    %235 = vmatpush1.msra.mxu0 0.0
    %236 = vmatprep.subr.mxu0 0.0
    %237 = vmatpush1.msra.mxu0 0.0
    %238 = vmatprep.subr.mxu0 0.0
    %239 = vmatpush1.msra.mxu0 0.0
    %240 = vmatprep.subr.mxu0 0.0
    %241 = vmatpush1.msra.mxu0 0.0
    %242 = vmatprep.subr.mxu0 0.0
    %243 = vmatpush1.msra.mxu0 0.0
    %244 = vmatprep.subr.mxu0 0.0
    %245 = vmatpush1.msra.mxu0 0.0
    %246 = vmatprep.subr.mxu0 0.0
    %247 = vmatpush1.msra.mxu0 0.0
    %248 = vmatprep.subr.mxu0 0.0
    %249 = vmatpush1.msra.mxu0 0.0
    %250 = vmatprep.subr.mxu0 0.0
    %251 = vmatpush1.msra.mxu0 0.0
    %252 = vmatprep.subr.mxu0 0.0
    %253 = vmatpush1.msra.mxu0 0.0
    %254 = vmatprep.mubr.f32.mxu0 0.0
    %255 = vmatmul.mubr.f32.gmra.mrb[0].mxu0 %v177
    %v256 = vpop.f32.mrb[0].mxu0
    %v257 = vadd.f32 %v158, %v256
    %v258 = vpop.f32.mrb[0].mxu0
    %259 = vmatprep.mubr.f32.mxu0 0.0
    %260 = vmatmul.mubr.f32.gmra.mrb[0].mxu0 %v180
    %v261 = vpop.f32.mrb[0].mxu0
    %v262 = vadd.f32 %v163, %v261
    %v263 = vpop.f32.mrb[0].mxu0
    %264 = vmatprep.mubr.f32.mxu0 0.0
    %265 = vmatmul.mubr.f32.gmra.mrb[0].mxu0 %v183
    %v266 = vpop.f32.mrb[0].mxu0
    %v267 = vadd.f32 %v168, %v266
    %v268 = vpop.f32.mrb[0].mxu0
    %269 = vmatprep.mubr.f32.mxu0 0.0
    %270 = vmatmul.mubr.f32.gmra.mrb[0].mxu0 %v186
    %v271 = vpop.f32.mrb[0].mxu0
    %v272 = vadd.f32 %v173, %v271
    %v273 = vpop.f32.mrb[0].mxu0
    %274 = vdwg.mxu0
    %275 = vrot.lane.b32.xlu0 %v66, 126
    %v276 = vpop.permute.xlu0 %275
    %277 = vrot.lane.b32.xlu0 %v67, 126
    %v278 = vpop.permute.xlu0 %277
    %v281 = vsel %vm75, %v42, 0
    %v284 = vsel %vm75, %v43, 0
    %v287 = vsel %vm75, %v44, 0
    %v290 = vsel %vm75, %v45, 0
    %v292 = vsel %vm88, %v278, 0
    %294 = vmatprep.subr.mxu0 0.0
    %295 = vmatpush1.msra.mxu0 %v276
    %296 = vmatprep.subr.mxu0 0.0
    %297 = vmatpush1.msra.mxu0 %v292
    %298 = vmatprep.subr.mxu0 0.0
    %299 = vmatpush1.msra.mxu0 0.0
    %300 = vmatprep.subr.mxu0 0.0
    %301 = vmatpush1.msra.mxu0 0.0
    %302 = vmatprep.subr.mxu0 0.0
    %303 = vmatpush1.msra.mxu0 0.0
    %304 = vmatprep.subr.mxu0 0.0
    %305 = vmatpush1.msra.mxu0 0.0
    %306 = vmatprep.subr.mxu0 0.0
    %307 = vmatpush1.msra.mxu0 0.0
    %308 = vmatprep.subr.mxu0 0.0
    %309 = vmatpush1.msra.mxu0 0.0
    %310 = vmatprep.subr.mxu0 0.0
    %311 = vmatpush1.msra.mxu0 0.0
    %312 = vmatprep.subr.mxu0 0.0
    %313 = vmatpush1.msra.mxu0 0.0
    %314 = vmatprep.subr.mxu0 0.0
    %315 = vmatpush1.msra.mxu0 0.0
    %316 = vmatprep.subr.mxu0 0.0
    %317 = vmatpush1.msra.mxu0 0.0
    %318 = vmatprep.subr.mxu0 0.0
    %319 = vmatpush1.msra.mxu0 0.0
    %320 = vmatprep.subr.mxu0 0.0
    %321 = vmatpush1.msra.mxu0 0.0
    %322 = vmatprep.subr.mxu0 0.0
    %323 = vmatpush1.msra.mxu0 0.0
    %324 = vmatprep.subr.mxu0 0.0
    %325 = vmatpush1.msra.mxu0 0.0
    %326 = vmatprep.subr.mxu0 0.0
    %327 = vmatpush1.msra.mxu0 0.0
    %328 = vmatprep.subr.mxu0 0.0
    %329 = vmatpush1.msra.mxu0 0.0
    %330 = vmatprep.subr.mxu0 0.0
    %331 = vmatpush1.msra.mxu0 0.0
    %332 = vmatprep.subr.mxu0 0.0
    %333 = vmatpush1.msra.mxu0 0.0
    %334 = vmatprep.subr.mxu0 0.0
    %335 = vmatpush1.msra.mxu0 0.0
    %336 = vmatprep.subr.mxu0 0.0
    %337 = vmatpush1.msra.mxu0 0.0
    %338 = vmatprep.subr.mxu0 0.0
    %339 = vmatpush1.msra.mxu0 0.0
    %340 = vmatprep.subr.mxu0 0.0
    %341 = vmatpush1.msra.mxu0 0.0
    %342 = vmatprep.subr.mxu0 0.0
    %343 = vmatpush1.msra.mxu0 0.0
    %344 = vmatprep.subr.mxu0 0.0
    %345 = vmatpush1.msra.mxu0 0.0
    %346 = vmatprep.subr.mxu0 0.0
    %347 = vmatpush1.msra.mxu0 0.0
    %348 = vmatprep.subr.mxu0 0.0
    %349 = vmatpush1.msra.mxu0 0.0
    %350 = vmatprep.subr.mxu0 0.0
    %351 = vmatpush1.msra.mxu0 0.0
    %352 = vmatprep.subr.mxu0 0.0
    %353 = vmatpush1.msra.mxu0 0.0
    %354 = vmatprep.subr.mxu0 0.0
    %355 = vmatpush1.msra.mxu0 0.0
    %356 = vmatprep.subr.mxu0 0.0
    %357 = vmatpush1.msra.mxu0 0.0
    %358 = vmatprep.mubr.f32.mxu0 0.0
    %359 = vmatmul.mubr.f32.gmra.mrb[0].mxu0 %v281
    %v360 = vpop.f32.mrb[0].mxu0
    %v361 = vadd.f32 0.0, %v360
    %v362 = vpop.f32.mrb[0].mxu0
    %363 = vmatprep.mubr.f32.mxu0 0.0
    %364 = vmatmul.mubr.f32.gmra.mrb[0].mxu0 %v284
    %v365 = vpop.f32.mrb[0].mxu0
    %v366 = vadd.f32 0.0, %v365
    %v367 = vpop.f32.mrb[0].mxu0
    %368 = vmatprep.mubr.f32.mxu0 0.0
    %369 = vmatmul.mubr.f32.gmra.mrb[0].mxu0 %v287
    %v370 = vpop.f32.mrb[0].mxu0
    %v371 = vadd.f32 0.0, %v370
    %v372 = vpop.f32.mrb[0].mxu0
    %373 = vmatprep.mubr.f32.mxu0 0.0
    %374 = vmatmul.mubr.f32.gmra.mrb[0].mxu0 %v290
    %v375 = vpop.f32.mrb[0].mxu0
    %v376 = vadd.f32 0.0, %v375
    %v377 = vpop.f32.mrb[0].mxu0
    %378 = vdwg.mxu0
    %v379 = vadd.f32 %v257, %v361
    %v380 = vadd.f32 %v262, %v366
    %v381 = vadd.f32 %v267, %v371
    %v382 = vadd.f32 %v272, %v376
    %384 = vset.pattern.permute.xlu0 0
    %385 = vperm.xlu0 %384, %v58
    %v386 = vpop.permute.xlu0 %385
    %389 = vset.pattern.permute.xlu0 0
    %390 = vperm.xlu0 %389, %v59
    %v391 = vpop.permute.xlu0 %390
    %394 = vset.pattern.permute.xlu0 0
    %395 = vperm.xlu0 %394, %v60
    %v396 = vpop.permute.xlu0 %395
    %399 = vset.pattern.permute.xlu0 0
    %400 = vperm.xlu0 %399, %v61
    %v401 = vpop.permute.xlu0 %400
    %v403 = vadd.f32 %v379, %v386
    %v404 = vadd.f32 %v380, %v391
    %v405 = vadd.f32 %v381, %v396
    %v406 = vadd.f32 %v382, %v401
    %v407 = vmax.f32 %v403, 0.0
    %v408 = vmax.f32 %v404, 0.0
    %v409 = vmax.f32 %v405, 0.0
    %v410 = vmax.f32 %v406, 0.0
    %415 = vrot.lane.b32.xlu0 %v407, 127
    %v416 = vpop.permute.xlu0 %415
    %417 = vrot.lane.b32.xlu0 %v408, 127
    %v418 = vpop.permute.xlu0 %417
    %419 = vrot.lane.b32.xlu0 %v409, 127
    %v420 = vpop.permute.xlu0 %419
    %421 = vrot.lane.b32.xlu0 %v410, 127
    %v422 = vpop.permute.xlu0 %421
    %vm427 = vcmask 261120
    %v429 = vsel %vm427, %v50, 0
    %v432 = vsel %vm427, %v51, 0
    %v435 = vsel %vm427, %v52, 0
    %v438 = vsel %vm427, %v53, 0
    %440 = vmatprep.subr.mxu0 0.0
    %441 = vmatpush1.msra.mxu0 %v416
    %442 = vmatprep.subr.mxu0 0.0
    %443 = vmatpush1.msra.mxu0 %v418
    %444 = vmatprep.subr.mxu0 0.0
    %445 = vmatpush1.msra.mxu0 %v420
    %446 = vmatprep.subr.mxu0 0.0
    %447 = vmatpush1.msra.mxu0 %v422
    %448 = vmatprep.subr.mxu0 0.0
    %449 = vmatpush1.msra.mxu0 0.0
    %450 = vmatprep.subr.mxu0 0.0
    %451 = vmatpush1.msra.mxu0 0.0
    %452 = vmatprep.subr.mxu0 0.0
    %453 = vmatpush1.msra.mxu0 0.0
    %454 = vmatprep.subr.mxu0 0.0
    %455 = vmatpush1.msra.mxu0 0.0
    %456 = vmatprep.subr.mxu0 0.0
    %457 = vmatpush1.msra.mxu0 0.0
    %458 = vmatprep.subr.mxu0 0.0
    %459 = vmatpush1.msra.mxu0 0.0
    %460 = vmatprep.subr.mxu0 0.0
    %461 = vmatpush1.msra.mxu0 0.0
    %462 = vmatprep.subr.mxu0 0.0
    %463 = vmatpush1.msra.mxu0 0.0
    %464 = vmatprep.subr.mxu0 0.0
    %465 = vmatpush1.msra.mxu0 0.0
    %466 = vmatprep.subr.mxu0 0.0
    %467 = vmatpush1.msra.mxu0 0.0
    %468 = vmatprep.subr.mxu0 0.0
    %469 = vmatpush1.msra.mxu0 0.0
    %470 = vmatprep.subr.mxu0 0.0
    %471 = vmatpush1.msra.mxu0 0.0
    %472 = vmatprep.subr.mxu0 0.0
    %473 = vmatpush1.msra.mxu0 0.0
    %474 = vmatprep.subr.mxu0 0.0
    %475 = vmatpush1.msra.mxu0 0.0
    %476 = vmatprep.subr.mxu0 0.0
    %477 = vmatpush1.msra.mxu0 0.0
    %478 = vmatprep.subr.mxu0 0.0
    %479 = vmatpush1.msra.mxu0 0.0
    %480 = vmatprep.subr.mxu0 0.0
    %481 = vmatpush1.msra.mxu0 0.0
    %482 = vmatprep.subr.mxu0 0.0
    %483 = vmatpush1.msra.mxu0 0.0
    %484 = vmatprep.subr.mxu0 0.0
    %485 = vmatpush1.msra.mxu0 0.0
    %486 = vmatprep.subr.mxu0 0.0
    %487 = vmatpush1.msra.mxu0 0.0
    %488 = vmatprep.subr.mxu0 0.0
    %489 = vmatpush1.msra.mxu0 0.0
    %490 = vmatprep.subr.mxu0 0.0
    %491 = vmatpush1.msra.mxu0 0.0
    %492 = vmatprep.subr.mxu0 0.0
    %493 = vmatpush1.msra.mxu0 0.0
    %494 = vmatprep.subr.mxu0 0.0
    %495 = vmatpush1.msra.mxu0 0.0
    %496 = vmatprep.subr.mxu0 0.0
    %497 = vmatpush1.msra.mxu0 0.0
    %498 = vmatprep.subr.mxu0 0.0
    %499 = vmatpush1.msra.mxu0 0.0
    %500 = vmatprep.subr.mxu0 0.0
    %501 = vmatpush1.msra.mxu0 0.0
    %502 = vmatprep.subr.mxu0 0.0
    %503 = vmatpush1.msra.mxu0 0.0
    %504 = vmatprep.mubr.f32.mxu0 0.0
    %505 = vmatmul.mubr.f32.gmra.mrb[0].mxu0 %v429
    %v506 = vpop.f32.mrb[0].mxu0
    %v507 = vadd.f32 0.0, %v506
    %v508 = vpop.f32.mrb[0].mxu0
    %509 = vmatprep.mubr.f32.mxu0 0.0
    %510 = vmatmul.mubr.f32.gmra.mrb[0].mxu0 %v432
    %v511 = vpop.f32.mrb[0].mxu0
    %v512 = vadd.f32 0.0, %v511
    %v513 = vpop.f32.mrb[0].mxu0
    %514 = vmatprep.mubr.f32.mxu0 0.0
    %515 = vmatmul.mubr.f32.gmra.mrb[0].mxu0 %v435
    %v516 = vpop.f32.mrb[0].mxu0
    %v517 = vadd.f32 0.0, %v516
    %v518 = vpop.f32.mrb[0].mxu0
    %519 = vmatprep.mubr.f32.mxu0 0.0
    %520 = vmatmul.mubr.f32.gmra.mrb[0].mxu0 %v438
    %v521 = vpop.f32.mrb[0].mxu0
    %v522 = vadd.f32 0.0, %v521
    %v523 = vpop.f32.mrb[0].mxu0
    %524 = vdwg.mxu0
    %v526 = vsel %vm427, %v46, 0
    %v529 = vsel %vm427, %v47, 0
    %v532 = vsel %vm427, %v48, 0
    %v535 = vsel %vm427, %v49, 0
    %537 = vmatprep.subr.mxu0 0.0
    %538 = vmatpush1.msra.mxu0 %v407
    %539 = vmatprep.subr.mxu0 0.0
    %540 = vmatpush1.msra.mxu0 %v408
    %541 = vmatprep.subr.mxu0 0.0
    %542 = vmatpush1.msra.mxu0 %v409
    %543 = vmatprep.subr.mxu0 0.0
    %544 = vmatpush1.msra.mxu0 %v410
    %545 = vmatprep.subr.mxu0 0.0
    %546 = vmatpush1.msra.mxu0 0.0
    %547 = vmatprep.subr.mxu0 0.0
    %548 = vmatpush1.msra.mxu0 0.0
    %549 = vmatprep.subr.mxu0 0.0
    %550 = vmatpush1.msra.mxu0 0.0
    %551 = vmatprep.subr.mxu0 0.0
    %552 = vmatpush1.msra.mxu0 0.0
    %553 = vmatprep.subr.mxu0 0.0
    %554 = vmatpush1.msra.mxu0 0.0
    %555 = vmatprep.subr.mxu0 0.0
    %556 = vmatpush1.msra.mxu0 0.0
    %557 = vmatprep.subr.mxu0 0.0
    %558 = vmatpush1.msra.mxu0 0.0
    %559 = vmatprep.subr.mxu0 0.0
    %560 = vmatpush1.msra.mxu0 0.0
    %561 = vmatprep.subr.mxu0 0.0
    %562 = vmatpush1.msra.mxu0 0.0
    %563 = vmatprep.subr.mxu0 0.0
    %564 = vmatpush1.msra.mxu0 0.0
    %565 = vmatprep.subr.mxu0 0.0
    %566 = vmatpush1.msra.mxu0 0.0
    %567 = vmatprep.subr.mxu0 0.0
    %568 = vmatpush1.msra.mxu0 0.0
    %569 = vmatprep.subr.mxu0 0.0
    %570 = vmatpush1.msra.mxu0 0.0
    %571 = vmatprep.subr.mxu0 0.0
    %572 = vmatpush1.msra.mxu0 0.0
    %573 = vmatprep.subr.mxu0 0.0
    %574 = vmatpush1.msra.mxu0 0.0
    %575 = vmatprep.subr.mxu0 0.0
    %576 = vmatpush1.msra.mxu0 0.0
    %577 = vmatprep.subr.mxu0 0.0
    %578 = vmatpush1.msra.mxu0 0.0
    %579 = vmatprep.subr.mxu0 0.0
    %580 = vmatpush1.msra.mxu0 0.0
    %581 = vmatprep.subr.mxu0 0.0
    %582 = vmatpush1.msra.mxu0 0.0
    %583 = vmatprep.subr.mxu0 0.0
    %584 = vmatpush1.msra.mxu0 0.0
    %585 = vmatprep.subr.mxu0 0.0
    %586 = vmatpush1.msra.mxu0 0.0
    %587 = vmatprep.subr.mxu0 0.0
    %588 = vmatpush1.msra.mxu0 0.0
    %589 = vmatprep.subr.mxu0 0.0
    %590 = vmatpush1.msra.mxu0 0.0
    %591 = vmatprep.subr.mxu0 0.0
    %592 = vmatpush1.msra.mxu0 0.0
    %593 = vmatprep.subr.mxu0 0.0
    %594 = vmatpush1.msra.mxu0 0.0
    %595 = vmatprep.subr.mxu0 0.0
    %596 = vmatpush1.msra.mxu0 0.0
    %597 = vmatprep.subr.mxu0 0.0
    %598 = vmatpush1.msra.mxu0 0.0
    %599 = vmatprep.subr.mxu0 0.0
    %600 = vmatpush1.msra.mxu0 0.0
    %601 = vmatprep.mubr.f32.mxu0 0.0
    %602 = vmatmul.mubr.f32.gmra.mrb[0].mxu0 %v526
    %v603 = vpop.f32.mrb[0].mxu0
    %v604 = vadd.f32 %v507, %v603
    %v605 = vpop.f32.mrb[0].mxu0
    %606 = vmatprep.mubr.f32.mxu0 0.0
    %607 = vmatmul.mubr.f32.gmra.mrb[0].mxu0 %v529
    %v608 = vpop.f32.mrb[0].mxu0
    %v609 = vadd.f32 %v512, %v608
    %v610 = vpop.f32.mrb[0].mxu0
    %611 = vmatprep.mubr.f32.mxu0 0.0
    %612 = vmatmul.mubr.f32.gmra.mrb[0].mxu0 %v532
    %v613 = vpop.f32.mrb[0].mxu0
    %v614 = vadd.f32 %v517, %v613
    %v615 = vpop.f32.mrb[0].mxu0
    %616 = vmatprep.mubr.f32.mxu0 0.0
    %617 = vmatmul.mubr.f32.gmra.mrb[0].mxu0 %v535
    %v618 = vpop.f32.mrb[0].mxu0
    %v619 = vadd.f32 %v522, %v618
    %v620 = vpop.f32.mrb[0].mxu0
    %621 = vdwg.mxu0
    %622 = vrot.lane.b32.xlu0 %v407, 126
    %v623 = vpop.permute.xlu0 %622
    %624 = vrot.lane.b32.xlu0 %v408, 126
    %v625 = vpop.permute.xlu0 %624
    %626 = vrot.lane.b32.xlu0 %v409, 126
    %v627 = vpop.permute.xlu0 %626
    %628 = vrot.lane.b32.xlu0 %v410, 126
    %v629 = vpop.permute.xlu0 %628
    %v635 = vsel %vm427, %v54, 0
    %v638 = vsel %vm427, %v55, 0
    %v641 = vsel %vm427, %v56, 0
    %v644 = vsel %vm427, %v57, 0
    %646 = vmatprep.subr.mxu0 0.0
    %647 = vmatpush1.msra.mxu0 %v623
    %648 = vmatprep.subr.mxu0 0.0
    %649 = vmatpush1.msra.mxu0 %v625
    %650 = vmatprep.subr.mxu0 0.0
    %651 = vmatpush1.msra.mxu0 %v627
    %652 = vmatprep.subr.mxu0 0.0
    %653 = vmatpush1.msra.mxu0 %v629
    %654 = vmatprep.subr.mxu0 0.0
    %655 = vmatpush1.msra.mxu0 0.0
    %656 = vmatprep.subr.mxu0 0.0
    %657 = vmatpush1.msra.mxu0 0.0
    %658 = vmatprep.subr.mxu0 0.0
    %659 = vmatpush1.msra.mxu0 0.0
    %660 = vmatprep.subr.mxu0 0.0
    %661 = vmatpush1.msra.mxu0 0.0
    %662 = vmatprep.subr.mxu0 0.0
    %663 = vmatpush1.msra.mxu0 0.0
    %664 = vmatprep.subr.mxu0 0.0
    %665 = vmatpush1.msra.mxu0 0.0
    %666 = vmatprep.subr.mxu0 0.0
    %667 = vmatpush1.msra.mxu0 0.0
    %668 = vmatprep.subr.mxu0 0.0
    %669 = vmatpush1.msra.mxu0 0.0
    %670 = vmatprep.subr.mxu0 0.0
    %671 = vmatpush1.msra.mxu0 0.0
    %672 = vmatprep.subr.mxu0 0.0
    %673 = vmatpush1.msra.mxu0 0.0
    %674 = vmatprep.subr.mxu0 0.0
    %675 = vmatpush1.msra.mxu0 0.0
    %676 = vmatprep.subr.mxu0 0.0
    %677 = vmatpush1.msra.mxu0 0.0
    %678 = vmatprep.subr.mxu0 0.0
    %679 = vmatpush1.msra.mxu0 0.0
    %680 = vmatprep.subr.mxu0 0.0
    %681 = vmatpush1.msra.mxu0 0.0
    %682 = vmatprep.subr.mxu0 0.0
    %683 = vmatpush1.msra.mxu0 0.0
    %684 = vmatprep.subr.mxu0 0.0
    %685 = vmatpush1.msra.mxu0 0.0
    %686 = vmatprep.subr.mxu0 0.0
    %687 = vmatpush1.msra.mxu0 0.0
    %688 = vmatprep.subr.mxu0 0.0
    %689 = vmatpush1.msra.mxu0 0.0
    %690 = vmatprep.subr.mxu0 0.0
    %691 = vmatpush1.msra.mxu0 0.0
    %692 = vmatprep.subr.mxu0 0.0
    %693 = vmatpush1.msra.mxu0 0.0
    %694 = vmatprep.subr.mxu0 0.0
    %695 = vmatpush1.msra.mxu0 0.0
    %696 = vmatprep.subr.mxu0 0.0
    %697 = vmatpush1.msra.mxu0 0.0
    %698 = vmatprep.subr.mxu0 0.0
    %699 = vmatpush1.msra.mxu0 0.0
    %700 = vmatprep.subr.mxu0 0.0
    %701 = vmatpush1.msra.mxu0 0.0
    %702 = vmatprep.subr.mxu0 0.0
    %703 = vmatpush1.msra.mxu0 0.0
    %704 = vmatprep.subr.mxu0 0.0
    %705 = vmatpush1.msra.mxu0 0.0
    %706 = vmatprep.subr.mxu0 0.0
    %707 = vmatpush1.msra.mxu0 0.0
    %708 = vmatprep.subr.mxu0 0.0
    %709 = vmatpush1.msra.mxu0 0.0
    %710 = vmatprep.mubr.f32.mxu0 0.0
    %711 = vmatmul.mubr.f32.gmra.mrb[0].mxu0 %v635
    %v712 = vpop.f32.mrb[0].mxu0
    %v713 = vadd.f32 0.0, %v712
    %v714 = vpop.f32.mrb[0].mxu0
    %715 = vmatprep.mubr.f32.mxu0 0.0
    %716 = vmatmul.mubr.f32.gmra.mrb[0].mxu0 %v638
    %v717 = vpop.f32.mrb[0].mxu0
    %v718 = vadd.f32 0.0, %v717
    %v719 = vpop.f32.mrb[0].mxu0
    %720 = vmatprep.mubr.f32.mxu0 0.0
    %721 = vmatmul.mubr.f32.gmra.mrb[0].mxu0 %v641
    %v722 = vpop.f32.mrb[0].mxu0
    %v723 = vadd.f32 0.0, %v722
    %v724 = vpop.f32.mrb[0].mxu0
    %725 = vmatprep.mubr.f32.mxu0 0.0
    %726 = vmatmul.mubr.f32.gmra.mrb[0].mxu0 %v644
    %v727 = vpop.f32.mrb[0].mxu0
    %v728 = vadd.f32 0.0, %v727
    %v729 = vpop.f32.mrb[0].mxu0
    %730 = vdwg.mxu0
    %v731 = vadd.f32 %v604, %v713
    %v732 = vadd.f32 %v609, %v718
    %v733 = vadd.f32 %v614, %v723
    %v734 = vadd.f32 %v619, %v728
    %736 = vset.pattern.permute.xlu0 0
    %737 = vperm.xlu0 %736, %v62
    %v738 = vpop.permute.xlu0 %737
    %741 = vset.pattern.permute.xlu0 0
    %742 = vperm.xlu0 %741, %v63
    %v743 = vpop.permute.xlu0 %742
    %746 = vset.pattern.permute.xlu0 0
    %747 = vperm.xlu0 %746, %v64
    %v748 = vpop.permute.xlu0 %747
    %751 = vset.pattern.permute.xlu0 0
    %752 = vperm.xlu0 %751, %v65
    %v753 = vpop.permute.xlu0 %752
    %v755 = vadd.f32 %v731, %v738
    %v756 = vadd.f32 %v732, %v743
    %v757 = vadd.f32 %v733, %v748
    %v758 = vadd.f32 %v734, %v753
    %v759 = vmax.f32 %v755, 0.0
    %v760 = vmax.f32 %v756, 0.0
    %v761 = vmax.f32 %v757, 0.0
    %v762 = vmax.f32 %v758, 0.0
    %767 = vrot.lane.b32.xlu0 %v759, 127
    %v768 = vpop.permute.xlu0 %767
    %769 = vrot.lane.b32.xlu0 %v760, 127
    %v770 = vpop.permute.xlu0 %769
    %771 = vrot.lane.b32.xlu0 %v761, 127
    %v772 = vpop.permute.xlu0 %771
    %773 = vrot.lane.b32.xlu0 %v762, 127
    %v774 = vpop.permute.xlu0 %773
    %v779 = vmax.f32 %v759, %v768
    %v780 = vmax.f32 %v760, %v770
    %v781 = vmax.f32 %v761, %v772
    %v782 = vmax.f32 %v762, %v774
    %vm783 = vcmask 1006592
    %784 = vst.msk [vmem:[#allocation2] sm:$0xff] %vm783, %v779
    %785 = vst.msk [vmem:[#allocation2 + $0x8] sm:$0xff] %vm783, %v780
    %786 = vst.msk [vmem:[#allocation2 + $0x10] sm:$0xff] %vm783, %v781
    %787 = vst.msk [vmem:[#allocation2 + $0x18] sm:$0xff] %vm783, %v782
    %s788 = scalar_lea.vmem %s0, 16
    %v789 = vld [vmem:[%s788] sm:$0xff]
    %v790 = vld [vmem:[%s788 + $0x8] sm:$0x1]
    %793 = vrot.lane.b32.xlu0 %v789, 127
    %v794 = vpop.permute.xlu0 %793
    %795 = vrot.lane.b32.xlu0 %v790, 127
    %v796 = vpop.permute.xlu0 %795
    %v798 = vsel %vm88, %v796, 0
    %800 = vmatprep.subr.mxu0 0.0
    %801 = vmatpush1.msra.mxu0 %v794
    %802 = vmatprep.subr.mxu0 0.0
    %803 = vmatpush1.msra.mxu0 %v798
    %804 = vmatprep.subr.mxu0 0.0
    %805 = vmatpush1.msra.mxu0 0.0
    %806 = vmatprep.subr.mxu0 0.0
    %807 = vmatpush1.msra.mxu0 0.0
    %808 = vmatprep.subr.mxu0 0.0
    %809 = vmatpush1.msra.mxu0 0.0
    %810 = vmatprep.subr.mxu0 0.0
    %811 = vmatpush1.msra.mxu0 0.0
    %812 = vmatprep.subr.mxu0 0.0
    %813 = vmatpush1.msra.mxu0 0.0
    %814 = vmatprep.subr.mxu0 0.0
    %815 = vmatpush1.msra.mxu0 0.0
    %816 = vmatprep.subr.mxu0 0.0
    %817 = vmatpush1.msra.mxu0 0.0
    %818 = vmatprep.subr.mxu0 0.0
    %819 = vmatpush1.msra.mxu0 0.0
    %820 = vmatprep.subr.mxu0 0.0
    %821 = vmatpush1.msra.mxu0 0.0
    %822 = vmatprep.subr.mxu0 0.0
    %823 = vmatpush1.msra.mxu0 0.0
    %824 = vmatprep.subr.mxu0 0.0
    %825 = vmatpush1.msra.mxu0 0.0
    %826 = vmatprep.subr.mxu0 0.0
    %827 = vmatpush1.msra.mxu0 0.0
    %828 = vmatprep.subr.mxu0 0.0
    %829 = vmatpush1.msra.mxu0 0.0
    %830 = vmatprep.subr.mxu0 0.0
    %831 = vmatpush1.msra.mxu0 0.0
    %832 = vmatprep.subr.mxu0 0.0
    %833 = vmatpush1.msra.mxu0 0.0
    %834 = vmatprep.subr.mxu0 0.0
    %835 = vmatpush1.msra.mxu0 0.0
    %836 = vmatprep.subr.mxu0 0.0
    %837 = vmatpush1.msra.mxu0 0.0
    %838 = vmatprep.subr.mxu0 0.0
    %839 = vmatpush1.msra.mxu0 0.0
    %840 = vmatprep.subr.mxu0 0.0
    %841 = vmatpush1.msra.mxu0 0.0
    %842 = vmatprep.subr.mxu0 0.0
    %843 = vmatpush1.msra.mxu0 0.0
    %844 = vmatprep.subr.mxu0 0.0
    %845 = vmatpush1.msra.mxu0 0.0
    %846 = vmatprep.subr.mxu0 0.0
    %847 = vmatpush1.msra.mxu0 0.0
    %848 = vmatprep.subr.mxu0 0.0
    %849 = vmatpush1.msra.mxu0 0.0
    %850 = vmatprep.subr.mxu0 0.0
    %851 = vmatpush1.msra.mxu0 0.0
    %852 = vmatprep.subr.mxu0 0.0
    %853 = vmatpush1.msra.mxu0 0.0
    %854 = vmatprep.subr.mxu0 0.0
    %855 = vmatpush1.msra.mxu0 0.0
    %856 = vmatprep.subr.mxu0 0.0
    %857 = vmatpush1.msra.mxu0 0.0
    %858 = vmatprep.subr.mxu0 0.0
    %859 = vmatpush1.msra.mxu0 0.0
    %860 = vmatprep.subr.mxu0 0.0
    %861 = vmatpush1.msra.mxu0 0.0
    %862 = vmatprep.subr.mxu0 0.0
    %863 = vmatpush1.msra.mxu0 0.0
    %864 = vmatprep.mubr.f32.mxu0 0.0
    %865 = vmatmul.mubr.f32.gmra.mrb[0].mxu0 %v77
    %v866 = vpop.f32.mrb[0].mxu0
    %v867 = vadd.f32 0.0, %v866
    %v868 = vpop.f32.mrb[0].mxu0
    %869 = vmatprep.mubr.f32.mxu0 0.0
    %870 = vmatmul.mubr.f32.gmra.mrb[0].mxu0 %v80
    %v871 = vpop.f32.mrb[0].mxu0
    %v872 = vadd.f32 0.0, %v871
    %v873 = vpop.f32.mrb[0].mxu0
    %874 = vmatprep.mubr.f32.mxu0 0.0
    %875 = vmatmul.mubr.f32.gmra.mrb[0].mxu0 %v83
    %v876 = vpop.f32.mrb[0].mxu0
    %v877 = vadd.f32 0.0, %v876
    %v878 = vpop.f32.mrb[0].mxu0
    %879 = vmatprep.mubr.f32.mxu0 0.0
    %880 = vmatmul.mubr.f32.gmra.mrb[0].mxu0 %v86
    %v881 = vpop.f32.mrb[0].mxu0
    %v882 = vadd.f32 0.0, %v881
    %v883 = vpop.f32.mrb[0].mxu0
    %884 = vdwg.mxu0
    %v885 = vsel %vm88, %v790, 0
    %887 = vmatprep.subr.mxu0 0.0
    %888 = vmatpush1.msra.mxu0 %v789
    %889 = vmatprep.subr.mxu0 0.0
    %890 = vmatpush1.msra.mxu0 %v885
    %891 = vmatprep.subr.mxu0 0.0
    %892 = vmatpush1.msra.mxu0 0.0
    %893 = vmatprep.subr.mxu0 0.0
    %894 = vmatpush1.msra.mxu0 0.0
    %895 = vmatprep.subr.mxu0 0.0
    %896 = vmatpush1.msra.mxu0 0.0
    %897 = vmatprep.subr.mxu0 0.0
    %898 = vmatpush1.msra.mxu0 0.0
    %899 = vmatprep.subr.mxu0 0.0
    %900 = vmatpush1.msra.mxu0 0.0
    %901 = vmatprep.subr.mxu0 0.0
    %902 = vmatpush1.msra.mxu0 0.0
    %903 = vmatprep.subr.mxu0 0.0
    %904 = vmatpush1.msra.mxu0 0.0
    %905 = vmatprep.subr.mxu0 0.0
    %906 = vmatpush1.msra.mxu0 0.0
    %907 = vmatprep.subr.mxu0 0.0
    %908 = vmatpush1.msra.mxu0 0.0
    %909 = vmatprep.subr.mxu0 0.0
    %910 = vmatpush1.msra.mxu0 0.0
    %911 = vmatprep.subr.mxu0 0.0
    %912 = vmatpush1.msra.mxu0 0.0
    %913 = vmatprep.subr.mxu0 0.0
    %914 = vmatpush1.msra.mxu0 0.0
    %915 = vmatprep.subr.mxu0 0.0
    %916 = vmatpush1.msra.mxu0 0.0
    %917 = vmatprep.subr.mxu0 0.0
    %918 = vmatpush1.msra.mxu0 0.0
    %919 = vmatprep.subr.mxu0 0.0
    %920 = vmatpush1.msra.mxu0 0.0
    %921 = vmatprep.subr.mxu0 0.0
    %922 = vmatpush1.msra.mxu0 0.0
    %923 = vmatprep.subr.mxu0 0.0
    %924 = vmatpush1.msra.mxu0 0.0
    %925 = vmatprep.subr.mxu0 0.0
    %926 = vmatpush1.msra.mxu0 0.0
    %927 = vmatprep.subr.mxu0 0.0
    %928 = vmatpush1.msra.mxu0 0.0
    %929 = vmatprep.subr.mxu0 0.0
    %930 = vmatpush1.msra.mxu0 0.0
    %931 = vmatprep.subr.mxu0 0.0
    %932 = vmatpush1.msra.mxu0 0.0
    %933 = vmatprep.subr.mxu0 0.0
    %934 = vmatpush1.msra.mxu0 0.0
    %935 = vmatprep.subr.mxu0 0.0
    %936 = vmatpush1.msra.mxu0 0.0
    %937 = vmatprep.subr.mxu0 0.0
    %938 = vmatpush1.msra.mxu0 0.0
    %939 = vmatprep.subr.mxu0 0.0
    %940 = vmatpush1.msra.mxu0 0.0
    %941 = vmatprep.subr.mxu0 0.0
    %942 = vmatpush1.msra.mxu0 0.0
    %943 = vmatprep.subr.mxu0 0.0
    %944 = vmatpush1.msra.mxu0 0.0
    %945 = vmatprep.subr.mxu0 0.0
    %946 = vmatpush1.msra.mxu0 0.0
    %947 = vmatprep.subr.mxu0 0.0
    %948 = vmatpush1.msra.mxu0 0.0
    %949 = vmatprep.subr.mxu0 0.0
    %950 = vmatpush1.msra.mxu0 0.0
    %951 = vmatprep.mubr.f32.mxu0 0.0
    %952 = vmatmul.mubr.f32.gmra.mrb[0].mxu0 %v177
    %v953 = vpop.f32.mrb[0].mxu0
    %v954 = vadd.f32 %v867, %v953
    %v955 = vpop.f32.mrb[0].mxu0
    %956 = vmatprep.mubr.f32.mxu0 0.0
    %957 = vmatmul.mubr.f32.gmra.mrb[0].mxu0 %v180
    %v958 = vpop.f32.mrb[0].mxu0
    %v959 = vadd.f32 %v872, %v958
    %v960 = vpop.f32.mrb[0].mxu0
    %961 = vmatprep.mubr.f32.mxu0 0.0
    %962 = vmatmul.mubr.f32.gmra.mrb[0].mxu0 %v183
    %v963 = vpop.f32.mrb[0].mxu0
    %v964 = vadd.f32 %v877, %v963
    %v965 = vpop.f32.mrb[0].mxu0
    %966 = vmatprep.mubr.f32.mxu0 0.0
    %967 = vmatmul.mubr.f32.gmra.mrb[0].mxu0 %v186
    %v968 = vpop.f32.mrb[0].mxu0
    %v969 = vadd.f32 %v882, %v968
    %v970 = vpop.f32.mrb[0].mxu0
    %971 = vdwg.mxu0
    %972 = vrot.lane.b32.xlu0 %v789, 126
    %v973 = vpop.permute.xlu0 %972
    %974 = vrot.lane.b32.xlu0 %v790, 126
    %v975 = vpop.permute.xlu0 %974
    %v977 = vsel %vm88, %v975, 0
    %979 = vmatprep.subr.mxu0 0.0
    %980 = vmatpush1.msra.mxu0 %v973
    %981 = vmatprep.subr.mxu0 0.0
    %982 = vmatpush1.msra.mxu0 %v977
    %983 = vmatprep.subr.mxu0 0.0
    %984 = vmatpush1.msra.mxu0 0.0
    %985 = vmatprep.subr.mxu0 0.0
    %986 = vmatpush1.msra.mxu0 0.0
    %987 = vmatprep.subr.mxu0 0.0
    %988 = vmatpush1.msra.mxu0 0.0
    %989 = vmatprep.subr.mxu0 0.0
    %990 = vmatpush1.msra.mxu0 0.0
    %991 = vmatprep.subr.mxu0 0.0
    %992 = vmatpush1.msra.mxu0 0.0
    %993 = vmatprep.subr.mxu0 0.0
    %994 = vmatpush1.msra.mxu0 0.0
    %995 = vmatprep.subr.mxu0 0.0
    %996 = vmatpush1.msra.mxu0 0.0
    %997 = vmatprep.subr.mxu0 0.0
    %998 = vmatpush1.msra.mxu0 0.0
    %999 = vmatprep.subr.mxu0 0.0
    %1000 = vmatpush1.msra.mxu0 0.0
    %1001 = vmatprep.subr.mxu0 0.0
    %1002 = vmatpush1.msra.mxu0 0.0
    %1003 = vmatprep.subr.mxu0 0.0
    %1004 = vmatpush1.msra.mxu0 0.0
    %1005 = vmatprep.subr.mxu0 0.0
    %1006 = vmatpush1.msra.mxu0 0.0
    %1007 = vmatprep.subr.mxu0 0.0
    %1008 = vmatpush1.msra.mxu0 0.0
    %1009 = vmatprep.subr.mxu0 0.0
    %1010 = vmatpush1.msra.mxu0 0.0
    %1011 = vmatprep.subr.mxu0 0.0
    %1012 = vmatpush1.msra.mxu0 0.0
    %1013 = vmatprep.subr.mxu0 0.0
    %1014 = vmatpush1.msra.mxu0 0.0
    %1015 = vmatprep.subr.mxu0 0.0
    %1016 = vmatpush1.msra.mxu0 0.0
    %1017 = vmatprep.subr.mxu0 0.0
    %1018 = vmatpush1.msra.mxu0 0.0
    %1019 = vmatprep.subr.mxu0 0.0
    %1020 = vmatpush1.msra.mxu0 0.0
    %1021 = vmatprep.subr.mxu0 0.0
    %1022 = vmatpush1.msra.mxu0 0.0
    %1023 = vmatprep.subr.mxu0 0.0
    %1024 = vmatpush1.msra.mxu0 0.0
    %1025 = vmatprep.subr.mxu0 0.0
    %1026 = vmatpush1.msra.mxu0 0.0
    %1027 = vmatprep.subr.mxu0 0.0
    %1028 = vmatpush1.msra.mxu0 0.0
    %1029 = vmatprep.subr.mxu0 0.0
    %1030 = vmatpush1.msra.mxu0 0.0
    %1031 = vmatprep.subr.mxu0 0.0
    %1032 = vmatpush1.msra.mxu0 0.0
    %1033 = vmatprep.subr.mxu0 0.0
    %1034 = vmatpush1.msra.mxu0 0.0
    %1035 = vmatprep.subr.mxu0 0.0
    %1036 = vmatpush1.msra.mxu0 0.0
    %1037 = vmatprep.subr.mxu0 0.0
    %1038 = vmatpush1.msra.mxu0 0.0
    %1039 = vmatprep.subr.mxu0 0.0
    %1040 = vmatpush1.msra.mxu0 0.0
    %1041 = vmatprep.subr.mxu0 0.0
    %1042 = vmatpush1.msra.mxu0 0.0
    %1043 = vmatprep.mubr.f32.mxu0 0.0
    %1044 = vmatmul.mubr.f32.gmra.mrb[0].mxu0 %v281
    %v1045 = vpop.f32.mrb[0].mxu0
    %v1046 = vadd.f32 0.0, %v1045
    %v1047 = vpop.f32.mrb[0].mxu0
    %1048 = vmatprep.mubr.f32.mxu0 0.0
    %1049 = vmatmul.mubr.f32.gmra.mrb[0].mxu0 %v284
    %v1050 = vpop.f32.mrb[0].mxu0
    %v1051 = vadd.f32 0.0, %v1050
    %v1052 = vpop.f32.mrb[0].mxu0
    %1053 = vmatprep.mubr.f32.mxu0 0.0
    %1054 = vmatmul.mubr.f32.gmra.mrb[0].mxu0 %v287
    %v1055 = vpop.f32.mrb[0].mxu0
    %v1056 = vadd.f32 0.0, %v1055
    %v1057 = vpop.f32.mrb[0].mxu0
    %1058 = vmatprep.mubr.f32.mxu0 0.0
    %1059 = vmatmul.mubr.f32.gmra.mrb[0].mxu0 %v290
    %v1060 = vpop.f32.mrb[0].mxu0
    %v1061 = vadd.f32 0.0, %v1060
    %v1062 = vpop.f32.mrb[0].mxu0
    %1063 = vdwg.mxu0
    %v1064 = vadd.f32 %v954, %v1046
    %v1065 = vadd.f32 %v959, %v1051
    %v1066 = vadd.f32 %v964, %v1056
    %v1067 = vadd.f32 %v969, %v1061
    %v1068 = vadd.f32 %v1064, %v386
    %v1069 = vadd.f32 %v1065, %v391
    %v1070 = vadd.f32 %v1066, %v396
    %v1071 = vadd.f32 %v1067, %v401
    %v1072 = vmax.f32 %v1068, 0.0
    %v1073 = vmax.f32 %v1069, 0.0
    %v1074 = vmax.f32 %v1070, 0.0
    %v1075 = vmax.f32 %v1071, 0.0
    %1080 = vrot.lane.b32.xlu0 %v1072, 127
    %v1081 = vpop.permute.xlu0 %1080
    %1082 = vrot.lane.b32.xlu0 %v1073, 127
    %v1083 = vpop.permute.xlu0 %1082
    %1084 = vrot.lane.b32.xlu0 %v1074, 127
    %v1085 = vpop.permute.xlu0 %1084
    %1086 = vrot.lane.b32.xlu0 %v1075, 127
    %v1087 = vpop.permute.xlu0 %1086
    %1092 = vmatprep.subr.mxu0 0.0
    %1093 = vmatpush1.msra.mxu0 %v1081
    %1094 = vmatprep.subr.mxu0 0.0
    %1095 = vmatpush1.msra.mxu0 %v1083
    %1096 = vmatprep.subr.mxu0 0.0
    %1097 = vmatpush1.msra.mxu0 %v1085
    %1098 = vmatprep.subr.mxu0 0.0
    %1099 = vmatpush1.msra.mxu0 %v1087
    %1100 = vmatprep.subr.mxu0 0.0
    %1101 = vmatpush1.msra.mxu0 0.0
    %1102 = vmatprep.subr.mxu0 0.0
    %1103 = vmatpush1.msra.mxu0 0.0
    %1104 = vmatprep.subr.mxu0 0.0
    %1105 = vmatpush1.msra.mxu0 0.0
    %1106 = vmatprep.subr.mxu0 0.0
    %1107 = vmatpush1.msra.mxu0 0.0
    %1108 = vmatprep.subr.mxu0 0.0
    %1109 = vmatpush1.msra.mxu0 0.0
    %1110 = vmatprep.subr.mxu0 0.0
    %1111 = vmatpush1.msra.mxu0 0.0
    %1112 = vmatprep.subr.mxu0 0.0
    %1113 = vmatpush1.msra.mxu0 0.0
    %1114 = vmatprep.subr.mxu0 0.0
    %1115 = vmatpush1.msra.mxu0 0.0
    %1116 = vmatprep.subr.mxu0 0.0
    %1117 = vmatpush1.msra.mxu0 0.0
    %1118 = vmatprep.subr.mxu0 0.0
    %1119 = vmatpush1.msra.mxu0 0.0
    %1120 = vmatprep.subr.mxu0 0.0
    %1121 = vmatpush1.msra.mxu0 0.0
    %1122 = vmatprep.subr.mxu0 0.0
    %1123 = vmatpush1.msra.mxu0 0.0
    %1124 = vmatprep.subr.mxu0 0.0
    %1125 = vmatpush1.msra.mxu0 0.0
    %1126 = vmatprep.subr.mxu0 0.0
    %1127 = vmatpush1.msra.mxu0 0.0
    %1128 = vmatprep.subr.mxu0 0.0
    %1129 = vmatpush1.msra.mxu0 0.0
    %1130 = vmatprep.subr.mxu0 0.0
    %1131 = vmatpush1.msra.mxu0 0.0
    %1132 = vmatprep.subr.mxu0 0.0
    %1133 = vmatpush1.msra.mxu0 0.0
    %1134 = vmatprep.subr.mxu0 0.0
    %1135 = vmatpush1.msra.mxu0 0.0
    %1136 = vmatprep.subr.mxu0 0.0
    %1137 = vmatpush1.msra.mxu0 0.0
    %1138 = vmatprep.subr.mxu0 0.0
    %1139 = vmatpush1.msra.mxu0 0.0
    %1140 = vmatprep.subr.mxu0 0.0
    %1141 = vmatpush1.msra.mxu0 0.0
    %1142 = vmatprep.subr.mxu0 0.0
    %1143 = vmatpush1.msra.mxu0 0.0
    %1144 = vmatprep.subr.mxu0 0.0
    %1145 = vmatpush1.msra.mxu0 0.0
    %1146 = vmatprep.subr.mxu0 0.0
    %1147 = vmatpush1.msra.mxu0 0.0
    %1148 = vmatprep.subr.mxu0 0.0
    %1149 = vmatpush1.msra.mxu0 0.0
    %1150 = vmatprep.subr.mxu0 0.0
    %1151 = vmatpush1.msra.mxu0 0.0
    %1152 = vmatprep.subr.mxu0 0.0
    %1153 = vmatpush1.msra.mxu0 0.0
    %1154 = vmatprep.subr.mxu0 0.0
    %1155 = vmatpush1.msra.mxu0 0.0
    %1156 = vmatprep.mubr.f32.mxu0 0.0
    %1157 = vmatmul.mubr.f32.gmra.mrb[0].mxu0 %v429
    %v1158 = vpop.f32.mrb[0].mxu0
    %v1159 = vadd.f32 0.0, %v1158
    %v1160 = vpop.f32.mrb[0].mxu0
    %1161 = vmatprep.mubr.f32.mxu0 0.0
    %1162 = vmatmul.mubr.f32.gmra.mrb[0].mxu0 %v432
    %v1163 = vpop.f32.mrb[0].mxu0
    %v1164 = vadd.f32 0.0, %v1163
    %v1165 = vpop.f32.mrb[0].mxu0
    %1166 = vmatprep.mubr.f32.mxu0 0.0
    %1167 = vmatmul.mubr.f32.gmra.mrb[0].mxu0 %v435
    %v1168 = vpop.f32.mrb[0].mxu0
    %v1169 = vadd.f32 0.0, %v1168
    %v1170 = vpop.f32.mrb[0].mxu0
    %1171 = vmatprep.mubr.f32.mxu0 0.0
    %1172 = vmatmul.mubr.f32.gmra.mrb[0].mxu0 %v438
    %v1173 = vpop.f32.mrb[0].mxu0
    %v1174 = vadd.f32 0.0, %v1173
    %v1175 = vpop.f32.mrb[0].mxu0
    %1176 = vdwg.mxu0
    %1177 = vmatprep.subr.mxu0 0.0
    %1178 = vmatpush1.msra.mxu0 %v1072
    %1179 = vmatprep.subr.mxu0 0.0
    %1180 = vmatpush1.msra.mxu0 %v1073
    %1181 = vmatprep.subr.mxu0 0.0
    %1182 = vmatpush1.msra.mxu0 %v1074
    %1183 = vmatprep.subr.mxu0 0.0
    %1184 = vmatpush1.msra.mxu0 %v1075
    %1185 = vmatprep.subr.mxu0 0.0
    %1186 = vmatpush1.msra.mxu0 0.0
    %1187 = vmatprep.subr.mxu0 0.0
    %1188 = vmatpush1.msra.mxu0 0.0
    %1189 = vmatprep.subr.mxu0 0.0
    %1190 = vmatpush1.msra.mxu0 0.0
    %1191 = vmatprep.subr.mxu0 0.0
    %1192 = vmatpush1.msra.mxu0 0.0
    %1193 = vmatprep.subr.mxu0 0.0
    %1194 = vmatpush1.msra.mxu0 0.0
    %1195 = vmatprep.subr.mxu0 0.0
    %1196 = vmatpush1.msra.mxu0 0.0
    %1197 = vmatprep.subr.mxu0 0.0
    %1198 = vmatpush1.msra.mxu0 0.0
    %1199 = vmatprep.subr.mxu0 0.0
    %1200 = vmatpush1.msra.mxu0 0.0
    %1201 = vmatprep.subr.mxu0 0.0
    %1202 = vmatpush1.msra.mxu0 0.0
    %1203 = vmatprep.subr.mxu0 0.0
    %1204 = vmatpush1.msra.mxu0 0.0
    %1205 = vmatprep.subr.mxu0 0.0
    %1206 = vmatpush1.msra.mxu0 0.0
    %1207 = vmatprep.subr.mxu0 0.0
    %1208 = vmatpush1.msra.mxu0 0.0
    %1209 = vmatprep.subr.mxu0 0.0
    %1210 = vmatpush1.msra.mxu0 0.0
    %1211 = vmatprep.subr.mxu0 0.0
    %1212 = vmatpush1.msra.mxu0 0.0
    %1213 = vmatprep.subr.mxu0 0.0
    %1214 = vmatpush1.msra.mxu0 0.0
    %1215 = vmatprep.subr.mxu0 0.0
    %1216 = vmatpush1.msra.mxu0 0.0
    %1217 = vmatprep.subr.mxu0 0.0
    %1218 = vmatpush1.msra.mxu0 0.0
    %1219 = vmatprep.subr.mxu0 0.0
    %1220 = vmatpush1.msra.mxu0 0.0
    %1221 = vmatprep.subr.mxu0 0.0
    %1222 = vmatpush1.msra.mxu0 0.0
    %1223 = vmatprep.subr.mxu0 0.0
    %1224 = vmatpush1.msra.mxu0 0.0
    %1225 = vmatprep.subr.mxu0 0.0
    %1226 = vmatpush1.msra.mxu0 0.0
    %1227 = vmatprep.subr.mxu0 0.0
    %1228 = vmatpush1.msra.mxu0 0.0
    %1229 = vmatprep.subr.mxu0 0.0
    %1230 = vmatpush1.msra.mxu0 0.0
    %1231 = vmatprep.subr.mxu0 0.0
    %1232 = vmatpush1.msra.mxu0 0.0
    %1233 = vmatprep.subr.mxu0 0.0
    %1234 = vmatpush1.msra.mxu0 0.0
    %1235 = vmatprep.subr.mxu0 0.0
    %1236 = vmatpush1.msra.mxu0 0.0
    %1237 = vmatprep.subr.mxu0 0.0
    %1238 = vmatpush1.msra.mxu0 0.0
    %1239 = vmatprep.subr.mxu0 0.0
    %1240 = vmatpush1.msra.mxu0 0.0
    %1241 = vmatprep.mubr.f32.mxu0 0.0
    %1242 = vmatmul.mubr.f32.gmra.mrb[0].mxu0 %v526
    %v1243 = vpop.f32.mrb[0].mxu0
    %v1244 = vadd.f32 %v1159, %v1243
    %v1245 = vpop.f32.mrb[0].mxu0
    %1246 = vmatprep.mubr.f32.mxu0 0.0
    %1247 = vmatmul.mubr.f32.gmra.mrb[0].mxu0 %v529
    %v1248 = vpop.f32.mrb[0].mxu0
    %v1249 = vadd.f32 %v1164, %v1248
    %v1250 = vpop.f32.mrb[0].mxu0
    %1251 = vmatprep.mubr.f32.mxu0 0.0
    %1252 = vmatmul.mubr.f32.gmra.mrb[0].mxu0 %v532
    %v1253 = vpop.f32.mrb[0].mxu0
    %v1254 = vadd.f32 %v1169, %v1253
    %v1255 = vpop.f32.mrb[0].mxu0
    %1256 = vmatprep.mubr.f32.mxu0 0.0
    %1257 = vmatmul.mubr.f32.gmra.mrb[0].mxu0 %v535
    %v1258 = vpop.f32.mrb[0].mxu0
    %v1259 = vadd.f32 %v1174, %v1258
    %v1260 = vpop.f32.mrb[0].mxu0
    %1261 = vdwg.mxu0
    %1262 = vrot.lane.b32.xlu0 %v1072, 126
    %v1263 = vpop.permute.xlu0 %1262
    %1264 = vrot.lane.b32.xlu0 %v1073, 126
    %v1265 = vpop.permute.xlu0 %1264
    %1266 = vrot.lane.b32.xlu0 %v1074, 126
    %v1267 = vpop.permute.xlu0 %1266
    %1268 = vrot.lane.b32.xlu0 %v1075, 126
    %v1269 = vpop.permute.xlu0 %1268
    %1274 = vmatprep.subr.mxu0 0.0
    %1275 = vmatpush1.msra.mxu0 %v1263
    %1276 = vmatprep.subr.mxu0 0.0
    %1277 = vmatpush1.msra.mxu0 %v1265
    %1278 = vmatprep.subr.mxu0 0.0
    %1279 = vmatpush1.msra.mxu0 %v1267
    %1280 = vmatprep.subr.mxu0 0.0
    %1281 = vmatpush1.msra.mxu0 %v1269
    %1282 = vmatprep.subr.mxu0 0.0
    %1283 = vmatpush1.msra.mxu0 0.0
    %1284 = vmatprep.subr.mxu0 0.0
    %1285 = vmatpush1.msra.mxu0 0.0
    %1286 = vmatprep.subr.mxu0 0.0
    %1287 = vmatpush1.msra.mxu0 0.0
    %1288 = vmatprep.subr.mxu0 0.0
    %1289 = vmatpush1.msra.mxu0 0.0
    %1290 = vmatprep.subr.mxu0 0.0
    %1291 = vmatpush1.msra.mxu0 0.0
    %1292 = vmatprep.subr.mxu0 0.0
    %1293 = vmatpush1.msra.mxu0 0.0
    %1294 = vmatprep.subr.mxu0 0.0
    %1295 = vmatpush1.msra.mxu0 0.0
    %1296 = vmatprep.subr.mxu0 0.0
    %1297 = vmatpush1.msra.mxu0 0.0
    %1298 = vmatprep.subr.mxu0 0.0
    %1299 = vmatpush1.msra.mxu0 0.0
    %1300 = vmatprep.subr.mxu0 0.0
    %1301 = vmatpush1.msra.mxu0 0.0
    %1302 = vmatprep.subr.mxu0 0.0
    %1303 = vmatpush1.msra.mxu0 0.0
    %1304 = vmatprep.subr.mxu0 0.0
    %1305 = vmatpush1.msra.mxu0 0.0
    %1306 = vmatprep.subr.mxu0 0.0
    %1307 = vmatpush1.msra.mxu0 0.0
    %1308 = vmatprep.subr.mxu0 0.0
    %1309 = vmatpush1.msra.mxu0 0.0
    %1310 = vmatprep.subr.mxu0 0.0
    %1311 = vmatpush1.msra.mxu0 0.0
    %1312 = vmatprep.subr.mxu0 0.0
    %1313 = vmatpush1.msra.mxu0 0.0
    %1314 = vmatprep.subr.mxu0 0.0
    %1315 = vmatpush1.msra.mxu0 0.0
    %1316 = vmatprep.subr.mxu0 0.0
    %1317 = vmatpush1.msra.mxu0 0.0
    %1318 = vmatprep.subr.mxu0 0.0
    %1319 = vmatpush1.msra.mxu0 0.0
    %1320 = vmatprep.subr.mxu0 0.0
    %1321 = vmatpush1.msra.mxu0 0.0
    %1322 = vmatprep.subr.mxu0 0.0
    %1323 = vmatpush1.msra.mxu0 0.0
    %1324 = vmatprep.subr.mxu0 0.0
    %1325 = vmatpush1.msra.mxu0 0.0
    %1326 = vmatprep.subr.mxu0 0.0
    %1327 = vmatpush1.msra.mxu0 0.0
    %1328 = vmatprep.subr.mxu0 0.0
    %1329 = vmatpush1.msra.mxu0 0.0
    %1330 = vmatprep.subr.mxu0 0.0
    %1331 = vmatpush1.msra.mxu0 0.0
    %1332 = vmatprep.subr.mxu0 0.0
    %1333 = vmatpush1.msra.mxu0 0.0
    %1334 = vmatprep.subr.mxu0 0.0
    %1335 = vmatpush1.msra.mxu0 0.0
    %1336 = vmatprep.subr.mxu0 0.0
    %1337 = vmatpush1.msra.mxu0 0.0
    %1338 = vmatprep.mubr.f32.mxu0 0.0
    %1339 = vmatmul.mubr.f32.gmra.mrb[0].mxu0 %v635
    %v1340 = vpop.f32.mrb[0].mxu0
    %v1341 = vadd.f32 0.0, %v1340
    %v1342 = vpop.f32.mrb[0].mxu0
    %1343 = vmatprep.mubr.f32.mxu0 0.0
    %1344 = vmatmul.mubr.f32.gmra.mrb[0].mxu0 %v638
    %v1345 = vpop.f32.mrb[0].mxu0
    %v1346 = vadd.f32 0.0, %v1345
    %v1347 = vpop.f32.mrb[0].mxu0
    %1348 = vmatprep.mubr.f32.mxu0 0.0
    %1349 = vmatmul.mubr.f32.gmra.mrb[0].mxu0 %v641
    %v1350 = vpop.f32.mrb[0].mxu0
    %v1351 = vadd.f32 0.0, %v1350
    %v1352 = vpop.f32.mrb[0].mxu0
    %1353 = vmatprep.mubr.f32.mxu0 0.0
    %1354 = vmatmul.mubr.f32.gmra.mrb[0].mxu0 %v644
    %v1355 = vpop.f32.mrb[0].mxu0
    %v1356 = vadd.f32 0.0, %v1355
    %v1357 = vpop.f32.mrb[0].mxu0
    %1358 = vdwg.mxu0
    %v1359 = vadd.f32 %v1244, %v1341
    %v1360 = vadd.f32 %v1249, %v1346
    %v1361 = vadd.f32 %v1254, %v1351
    %v1362 = vadd.f32 %v1259, %v1356
    %v1363 = vadd.f32 %v1359, %v738
    %v1364 = vadd.f32 %v1360, %v743
    %v1365 = vadd.f32 %v1361, %v748
    %v1366 = vadd.f32 %v1362, %v753
    %v1367 = vmax.f32 %v1363, 0.0
    %v1368 = vmax.f32 %v1364, 0.0
    %v1369 = vmax.f32 %v1365, 0.0
    %v1370 = vmax.f32 %v1366, 0.0
    %1375 = vrot.lane.b32.xlu0 %v1367, 127
    %v1376 = vpop.permute.xlu0 %1375
    %1377 = vrot.lane.b32.xlu0 %v1368, 127
    %v1378 = vpop.permute.xlu0 %1377
    %1379 = vrot.lane.b32.xlu0 %v1369, 127
    %v1380 = vpop.permute.xlu0 %1379
    %1381 = vrot.lane.b32.xlu0 %v1370, 127
    %v1382 = vpop.permute.xlu0 %1381
    %v1387 = vmax.f32 %v1367, %v1376
    %v1388 = vmax.f32 %v1368, %v1378
    %v1389 = vmax.f32 %v1369, %v1380
    %v1390 = vmax.f32 %v1370, %v1382
    %1391 = vst.msk [vmem:[#allocation2 + $0x20] sm:$0xff] %vm783, %v1387
    %1392 = vst.msk [vmem:[#allocation2 + $0x28] sm:$0xff] %vm783, %v1388
    %1393 = vst.msk [vmem:[#allocation2 + $0x30] sm:$0xff] %vm783, %v1389
    %1394 = vst.msk [vmem:[#allocation2 + $0x38] sm:$0xff] %vm783, %v1390
    %v1395 = vld [vmem:[#allocation2] ss:$32 sm:$0x1]
    %v1396 = vld [vmem:[#allocation2] ss:$32 sm:$0x2]
    %v1397 = vor.u32 %v1395, %v1396
    %v1398 = vpack.c.bf16 %v1397, %v1397
    %v1399 = vld [vmem:[%s5] sm:$0xf]
    %v1400 = vld [vmem:[%s5 + $0x4] sm:$0xf]
    %v1401 = vld [vmem:[%s5 + $0x8] sm:$0xf]
    %v1402 = vld [vmem:[%s5 + $0xc] sm:$0xf]
    %v1403 = vld [vmem:[%s5 + $0x10] sm:$0xf]
    %v1404 = vld [vmem:[%s5 + $0x14] sm:$0xf]
    %v1405 = vld [vmem:[%s5 + $0x18] sm:$0xf]
    %v1406 = vld [vmem:[%s5 + $0x1c] sm:$0xf]
    %v1407 = vld [vmem:[%s5 + $0x20] sm:$0xf]
    %v1408 = vld [vmem:[%s5 + $0x24] sm:$0xf]
    %v1409 = vld [vmem:[%s5 + $0x28] sm:$0xf]
    %v1410 = vld [vmem:[%s5 + $0x2c] sm:$0xf]
    %v1411 = vld [vmem:[%s5 + $0x30] sm:$0xf]
    %v1412 = vld [vmem:[%s5 + $0x34] sm:$0xf]
    %v1413 = vld [vmem:[%s5 + $0x38] sm:$0xf]
    %v1414 = vld [vmem:[%s5 + $0x3c] sm:$0x3]
    %s1415 = scalar_lea.vmem [#allocation2], 1
    %v1416 = vld [vmem:[%s1415] ss:$32 sm:$0x1]
    %v1417 = vld [vmem:[%s1415] ss:$32 sm:$0x2]
    %v1418 = vor.u32 %v1416, %v1417
    %v1419 = vpack.c.bf16 %v1418, %v1418
    %s1420 = scalar_lea.vmem %s5, 64
    %v1421 = vld [vmem:[%s1420] sm:$0xf]
    %v1422 = vld [vmem:[%s1420 + $0x4] sm:$0xf]
    %v1423 = vld [vmem:[%s1420 + $0x8] sm:$0xf]
    %v1424 = vld [vmem:[%s1420 + $0xc] sm:$0xf]
    %v1425 = vld [vmem:[%s1420 + $0x10] sm:$0xf]
    %v1426 = vld [vmem:[%s1420 + $0x14] sm:$0xf]
    %v1427 = vld [vmem:[%s1420 + $0x18] sm:$0xf]
    %v1428 = vld [vmem:[%s1420 + $0x1c] sm:$0xf]
    %v1429 = vld [vmem:[%s1420 + $0x20] sm:$0xf]
    %v1430 = vld [vmem:[%s1420 + $0x24] sm:$0xf]
    %v1431 = vld [vmem:[%s1420 + $0x28] sm:$0xf]
    %v1432 = vld [vmem:[%s1420 + $0x2c] sm:$0xf]
    %v1433 = vld [vmem:[%s1420 + $0x30] sm:$0xf]
    %v1434 = vld [vmem:[%s1420 + $0x34] sm:$0xf]
    %v1435 = vld [vmem:[%s1420 + $0x38] sm:$0xf]
    %v1436 = vld [vmem:[%s1420 + $0x3c] sm:$0x3]
    %v1453 = vunpack.c.l.b16 %v1421
    %v1454 = vunpack.c.l.b16 %v1422
    %v1455 = vunpack.c.l.b16 %v1423
    %v1456 = vunpack.c.l.b16 %v1424
    %v1457 = vunpack.c.l.b16 %v1425
    %v1458 = vunpack.c.l.b16 %v1426
    %v1459 = vunpack.c.l.b16 %v1427
    %v1460 = vunpack.c.l.b16 %v1428
    %v1461 = vunpack.c.l.b16 %v1429
    %v1462 = vunpack.c.l.b16 %v1430
    %v1463 = vunpack.c.l.b16 %v1431
    %v1464 = vunpack.c.l.b16 %v1432
    %v1465 = vunpack.c.l.b16 %v1433
    %v1466 = vunpack.c.l.b16 %v1434
    %v1467 = vunpack.c.l.b16 %v1435
    %v1468 = vunpack.c.l.b16 %v1436
    %v1469 = vpack.c.b16 %v1454, %v1453
    %v1470 = vpack.c.b16 %v1456, %v1455
    %v1471 = vpack.c.b16 %v1458, %v1457
    %v1472 = vpack.c.b16 %v1460, %v1459
    %v1473 = vpack.c.b16 %v1462, %v1461
    %v1474 = vpack.c.b16 %v1464, %v1463
    %v1475 = vpack.c.b16 %v1466, %v1465
    %v1476 = vpack.c.b16 %v1468, %v1467
    %v1485 = vsel %vm783, %v1419, 0
    %vm1487 = vcmask 1044480
    %vm1488 = vcmask 1045504
    %v1489 = vsel %vm1487, 4294967295, 65535
    %v1490 = vsel %vm1488, %v1489, 0
    %v1492 = vand.u32 %v1476, %v1490
    %1494 = vmatprep.subr.bf16.mxu0 0
    %1495 = vmatpush1.bf16.msra.mxu0 %v1469
    %1496 = vmatprep.subr.bf16.mxu0 0
    %1497 = vmatpush1.bf16.msra.mxu0 %v1470
    %1498 = vmatprep.subr.bf16.mxu0 0
    %1499 = vmatpush1.bf16.msra.mxu0 %v1471
    %1500 = vmatprep.subr.bf16.mxu0 0
    %1501 = vmatpush1.bf16.msra.mxu0 %v1472
    %1502 = vmatprep.subr.bf16.mxu0 0
    %1503 = vmatpush1.bf16.msra.mxu0 %v1473
    %1504 = vmatprep.subr.bf16.mxu0 0
    %1505 = vmatpush1.bf16.msra.mxu0 %v1474
    %1506 = vmatprep.subr.bf16.mxu0 0
    %1507 = vmatpush1.bf16.msra.mxu0 %v1475
    %1508 = vmatprep.subr.bf16.mxu0 0
    %1509 = vmatpush1.bf16.msra.mxu0 %v1492
    %1510 = vmatprep.subr.bf16.mxu0 0
    %1511 = vmatpush1.bf16.msra.mxu0 0
    %1512 = vmatprep.subr.bf16.mxu0 0
    %1513 = vmatpush1.bf16.msra.mxu0 0
    %1514 = vmatprep.subr.bf16.mxu0 0
    %1515 = vmatpush1.bf16.msra.mxu0 0
    %1516 = vmatprep.subr.bf16.mxu0 0
    %1517 = vmatpush1.bf16.msra.mxu0 0
    %1518 = vmatprep.subr.bf16.mxu0 0
    %1519 = vmatpush1.bf16.msra.mxu0 0
    %1520 = vmatprep.subr.bf16.mxu0 0
    %1521 = vmatpush1.bf16.msra.mxu0 0
    %1522 = vmatprep.subr.bf16.mxu0 0
    %1523 = vmatpush1.bf16.msra.mxu0 0
    %1524 = vmatprep.subr.bf16.mxu0 0
    %1525 = vmatpush1.bf16.msra.mxu0 0
    %1526 = vmatprep.mubr.bf16.mxu0 0
    %1527 = vmatmul.mubr.bf16.gmra.mrb[0].mxu0 %v1485
    %v1528 = vpop.f32.mrb[0].mxu0
    %v1529 = vadd.f32 0.0, %v1528
    %v1530 = vpop.f32.mrb[0].mxu0
    %v1531 = vpop.f32.mrb[0].mxu0
    %v1532 = vpop.f32.mrb[0].mxu0
    %1533 = vdwg.mxu0
    %v1550 = vunpack.c.l.b16 %v1399
    %v1551 = vunpack.c.l.b16 %v1400
    %v1552 = vunpack.c.l.b16 %v1401
    %v1553 = vunpack.c.l.b16 %v1402
    %v1554 = vunpack.c.l.b16 %v1403
    %v1555 = vunpack.c.l.b16 %v1404
    %v1556 = vunpack.c.l.b16 %v1405
    %v1557 = vunpack.c.l.b16 %v1406
    %v1558 = vunpack.c.l.b16 %v1407
    %v1559 = vunpack.c.l.b16 %v1408
    %v1560 = vunpack.c.l.b16 %v1409
    %v1561 = vunpack.c.l.b16 %v1410
    %v1562 = vunpack.c.l.b16 %v1411
    %v1563 = vunpack.c.l.b16 %v1412
    %v1564 = vunpack.c.l.b16 %v1413
    %v1565 = vunpack.c.l.b16 %v1414
    %v1566 = vpack.c.b16 %v1551, %v1550
    %v1567 = vpack.c.b16 %v1553, %v1552
    %v1568 = vpack.c.b16 %v1555, %v1554
    %v1569 = vpack.c.b16 %v1557, %v1556
    %v1570 = vpack.c.b16 %v1559, %v1558
    %v1571 = vpack.c.b16 %v1561, %v1560
    %v1572 = vpack.c.b16 %v1563, %v1562
    %v1573 = vpack.c.b16 %v1565, %v1564
    %v1582 = vsel %vm783, %v1398, 0
    %v1585 = vand.u32 %v1573, %v1490
    %1587 = vmatprep.subr.bf16.mxu0 0
    %1588 = vmatpush1.bf16.msra.mxu0 %v1566
    %1589 = vmatprep.subr.bf16.mxu0 0
    %1590 = vmatpush1.bf16.msra.mxu0 %v1567
    %1591 = vmatprep.subr.bf16.mxu0 0
    %1592 = vmatpush1.bf16.msra.mxu0 %v1568
    %1593 = vmatprep.subr.bf16.mxu0 0
    %1594 = vmatpush1.bf16.msra.mxu0 %v1569
    %1595 = vmatprep.subr.bf16.mxu0 0
    %1596 = vmatpush1.bf16.msra.mxu0 %v1570
    %1597 = vmatprep.subr.bf16.mxu0 0
    %1598 = vmatpush1.bf16.msra.mxu0 %v1571
    %1599 = vmatprep.subr.bf16.mxu0 0
    %1600 = vmatpush1.bf16.msra.mxu0 %v1572
    %1601 = vmatprep.subr.bf16.mxu0 0
    %1602 = vmatpush1.bf16.msra.mxu0 %v1585
    %1603 = vmatprep.subr.bf16.mxu0 0
    %1604 = vmatpush1.bf16.msra.mxu0 0
    %1605 = vmatprep.subr.bf16.mxu0 0
    %1606 = vmatpush1.bf16.msra.mxu0 0
    %1607 = vmatprep.subr.bf16.mxu0 0
    %1608 = vmatpush1.bf16.msra.mxu0 0
    %1609 = vmatprep.subr.bf16.mxu0 0
    %1610 = vmatpush1.bf16.msra.mxu0 0
    %1611 = vmatprep.subr.bf16.mxu0 0
    %1612 = vmatpush1.bf16.msra.mxu0 0
    %1613 = vmatprep.subr.bf16.mxu0 0
    %1614 = vmatpush1.bf16.msra.mxu0 0
    %1615 = vmatprep.subr.bf16.mxu0 0
    %1616 = vmatpush1.bf16.msra.mxu0 0
    %1617 = vmatprep.subr.bf16.mxu0 0
    %1618 = vmatpush1.bf16.msra.mxu0 0
    %1619 = vmatprep.mubr.bf16.mxu0 0
    %1620 = vmatmul.mubr.bf16.gmra.mrb[0].mxu0 %v1582
    %v1621 = vpop.f32.mrb[0].mxu0
    %v1622 = vadd.f32 %v1529, %v1621
    %v1623 = vpop.f32.mrb[0].mxu0
    %v1624 = vpop.f32.mrb[0].mxu0
    %v1625 = vpop.f32.mrb[0].mxu0
    %1626 = vdwg.mxu0
    %s1627 = scalar_lea.vmem [#allocation2], 2
    %v1628 = vld [vmem:[%s1627] ss:$32 sm:$0x1]
    %v1629 = vld [vmem:[%s1627] ss:$32 sm:$0x2]
    %v1630 = vor.u32 %v1628, %v1629
    %v1631 = vpack.c.bf16 %v1630, %v1630
    %s1632 = scalar_lea.vmem %s5, 128
    %v1633 = vld [vmem:[%s1632] sm:$0xf]
    %v1634 = vld [vmem:[%s1632 + $0x4] sm:$0xf]
    %v1635 = vld [vmem:[%s1632 + $0x8] sm:$0xf]
    %v1636 = vld [vmem:[%s1632 + $0xc] sm:$0xf]
    %v1637 = vld [vmem:[%s1632 + $0x10] sm:$0xf]
    %v1638 = vld [vmem:[%s1632 + $0x14] sm:$0xf]
    %v1639 = vld [vmem:[%s1632 + $0x18] sm:$0xf]
    %v1640 = vld [vmem:[%s1632 + $0x1c] sm:$0xf]
    %v1641 = vld [vmem:[%s1632 + $0x20] sm:$0xf]
    %v1642 = vld [vmem:[%s1632 + $0x24] sm:$0xf]
    %v1643 = vld [vmem:[%s1632 + $0x28] sm:$0xf]
    %v1644 = vld [vmem:[%s1632 + $0x2c] sm:$0xf]
    %v1645 = vld [vmem:[%s1632 + $0x30] sm:$0xf]
    %v1646 = vld [vmem:[%s1632 + $0x34] sm:$0xf]
    %v1647 = vld [vmem:[%s1632 + $0x38] sm:$0xf]
    %v1648 = vld [vmem:[%s1632 + $0x3c] sm:$0x3]
    %v1665 = vunpack.c.l.b16 %v1633
    %v1666 = vunpack.c.l.b16 %v1634
    %v1667 = vunpack.c.l.b16 %v1635
    %v1668 = vunpack.c.l.b16 %v1636
    %v1669 = vunpack.c.l.b16 %v1637
    %v1670 = vunpack.c.l.b16 %v1638
    %v1671 = vunpack.c.l.b16 %v1639
    %v1672 = vunpack.c.l.b16 %v1640
    %v1673 = vunpack.c.l.b16 %v1641
    %v1674 = vunpack.c.l.b16 %v1642
    %v1675 = vunpack.c.l.b16 %v1643
    %v1676 = vunpack.c.l.b16 %v1644
    %v1677 = vunpack.c.l.b16 %v1645
    %v1678 = vunpack.c.l.b16 %v1646
    %v1679 = vunpack.c.l.b16 %v1647
    %v1680 = vunpack.c.l.b16 %v1648
    %v1681 = vpack.c.b16 %v1666, %v1665
    %v1682 = vpack.c.b16 %v1668, %v1667
    %v1683 = vpack.c.b16 %v1670, %v1669
    %v1684 = vpack.c.b16 %v1672, %v1671
    %v1685 = vpack.c.b16 %v1674, %v1673
    %v1686 = vpack.c.b16 %v1676, %v1675
    %v1687 = vpack.c.b16 %v1678, %v1677
    %v1688 = vpack.c.b16 %v1680, %v1679
    %v1697 = vsel %vm783, %v1631, 0
    %v1700 = vand.u32 %v1688, %v1490
    %1702 = vmatprep.subr.bf16.mxu0 0
    %1703 = vmatpush1.bf16.msra.mxu0 %v1681
    %1704 = vmatprep.subr.bf16.mxu0 0
    %1705 = vmatpush1.bf16.msra.mxu0 %v1682
    %1706 = vmatprep.subr.bf16.mxu0 0
    %1707 = vmatpush1.bf16.msra.mxu0 %v1683
    %1708 = vmatprep.subr.bf16.mxu0 0
    %1709 = vmatpush1.bf16.msra.mxu0 %v1684
    %1710 = vmatprep.subr.bf16.mxu0 0
    %1711 = vmatpush1.bf16.msra.mxu0 %v1685
    %1712 = vmatprep.subr.bf16.mxu0 0
    %1713 = vmatpush1.bf16.msra.mxu0 %v1686
    %1714 = vmatprep.subr.bf16.mxu0 0
    %1715 = vmatpush1.bf16.msra.mxu0 %v1687
    %1716 = vmatprep.subr.bf16.mxu0 0
    %1717 = vmatpush1.bf16.msra.mxu0 %v1700
    %1718 = vmatprep.subr.bf16.mxu0 0
    %1719 = vmatpush1.bf16.msra.mxu0 0
    %1720 = vmatprep.subr.bf16.mxu0 0
    %1721 = vmatpush1.bf16.msra.mxu0 0
    %1722 = vmatprep.subr.bf16.mxu0 0
    %1723 = vmatpush1.bf16.msra.mxu0 0
    %1724 = vmatprep.subr.bf16.mxu0 0
    %1725 = vmatpush1.bf16.msra.mxu0 0
    %1726 = vmatprep.subr.bf16.mxu0 0
    %1727 = vmatpush1.bf16.msra.mxu0 0
    %1728 = vmatprep.subr.bf16.mxu0 0
    %1729 = vmatpush1.bf16.msra.mxu0 0
    %1730 = vmatprep.subr.bf16.mxu0 0
    %1731 = vmatpush1.bf16.msra.mxu0 0
    %1732 = vmatprep.subr.bf16.mxu0 0
    %1733 = vmatpush1.bf16.msra.mxu0 0
    %1734 = vmatprep.mubr.bf16.mxu0 0
    %1735 = vmatmul.mubr.bf16.gmra.mrb[0].mxu0 %v1697
    %v1736 = vpop.f32.mrb[0].mxu0
    %v1737 = vadd.f32 0.0, %v1736
    %v1738 = vpop.f32.mrb[0].mxu0
    %v1739 = vpop.f32.mrb[0].mxu0
    %v1740 = vpop.f32.mrb[0].mxu0
    %1741 = vdwg.mxu0
    %v1742 = vadd.f32 %v1622, %v1737
    %s1743 = scalar_lea.vmem [#allocation2], 3
    %v1744 = vld [vmem:[%s1743] ss:$32 sm:$0x1]
    %v1745 = vld [vmem:[%s1743] ss:$32 sm:$0x2]
    %v1746 = vor.u32 %v1744, %v1745
    %v1747 = vpack.c.bf16 %v1746, %v1746
    %s1748 = scalar_lea.vmem %s5, 192
    %v1749 = vld [vmem:[%s1748] sm:$0xf]
    %v1750 = vld [vmem:[%s1748 + $0x4] sm:$0xf]
    %v1751 = vld [vmem:[%s1748 + $0x8] sm:$0xf]
    %v1752 = vld [vmem:[%s1748 + $0xc] sm:$0xf]
    %v1753 = vld [vmem:[%s1748 + $0x10] sm:$0xf]
    %v1754 = vld [vmem:[%s1748 + $0x14] sm:$0xf]
    %v1755 = vld [vmem:[%s1748 + $0x18] sm:$0xf]
    %v1756 = vld [vmem:[%s1748 + $0x1c] sm:$0xf]
    %v1757 = vld [vmem:[%s1748 + $0x20] sm:$0xf]
    %v1758 = vld [vmem:[%s1748 + $0x24] sm:$0xf]
    %v1759 = vld [vmem:[%s1748 + $0x28] sm:$0xf]
    %v1760 = vld [vmem:[%s1748 + $0x2c] sm:$0xf]
    %v1761 = vld [vmem:[%s1748 + $0x30] sm:$0xf]
    %v1762 = vld [vmem:[%s1748 + $0x34] sm:$0xf]
    %v1763 = vld [vmem:[%s1748 + $0x38] sm:$0xf]
    %v1764 = vld [vmem:[%s1748 + $0x3c] sm:$0x3]
    %v1781 = vunpack.c.l.b16 %v1749
    %v1782 = vunpack.c.l.b16 %v1750
    %v1783 = vunpack.c.l.b16 %v1751
    %v1784 = vunpack.c.l.b16 %v1752
    %v1785 = vunpack.c.l.b16 %v1753
    %v1786 = vunpack.c.l.b16 %v1754
    %v1787 = vunpack.c.l.b16 %v1755
    %v1788 = vunpack.c.l.b16 %v1756
    %v1789 = vunpack.c.l.b16 %v1757
    %v1790 = vunpack.c.l.b16 %v1758
    %v1791 = vunpack.c.l.b16 %v1759
    %v1792 = vunpack.c.l.b16 %v1760
    %v1793 = vunpack.c.l.b16 %v1761
    %v1794 = vunpack.c.l.b16 %v1762
    %v1795 = vunpack.c.l.b16 %v1763
    %v1796 = vunpack.c.l.b16 %v1764
    %v1797 = vpack.c.b16 %v1782, %v1781
    %v1798 = vpack.c.b16 %v1784, %v1783
    %v1799 = vpack.c.b16 %v1786, %v1785
    %v1800 = vpack.c.b16 %v1788, %v1787
    %v1801 = vpack.c.b16 %v1790, %v1789
    %v1802 = vpack.c.b16 %v1792, %v1791
    %v1803 = vpack.c.b16 %v1794, %v1793
    %v1804 = vpack.c.b16 %v1796, %v1795
    %v1813 = vsel %vm783, %v1747, 0
    %v1816 = vand.u32 %v1804, %v1490
    %1818 = vmatprep.subr.bf16.mxu0 0
    %1819 = vmatpush1.bf16.msra.mxu0 %v1797
    %1820 = vmatprep.subr.bf16.mxu0 0
    %1821 = vmatpush1.bf16.msra.mxu0 %v1798
    %1822 = vmatprep.subr.bf16.mxu0 0
    %1823 = vmatpush1.bf16.msra.mxu0 %v1799
    %1824 = vmatprep.subr.bf16.mxu0 0
    %1825 = vmatpush1.bf16.msra.mxu0 %v1800
    %1826 = vmatprep.subr.bf16.mxu0 0
    %1827 = vmatpush1.bf16.msra.mxu0 %v1801
    %1828 = vmatprep.subr.bf16.mxu0 0
    %1829 = vmatpush1.bf16.msra.mxu0 %v1802
    %1830 = vmatprep.subr.bf16.mxu0 0
    %1831 = vmatpush1.bf16.msra.mxu0 %v1803
    %1832 = vmatprep.subr.bf16.mxu0 0
    %1833 = vmatpush1.bf16.msra.mxu0 %v1816
    %1834 = vmatprep.subr.bf16.mxu0 0
    %1835 = vmatpush1.bf16.msra.mxu0 0
    %1836 = vmatprep.subr.bf16.mxu0 0
    %1837 = vmatpush1.bf16.msra.mxu0 0
    %1838 = vmatprep.subr.bf16.mxu0 0
    %1839 = vmatpush1.bf16.msra.mxu0 0
    %1840 = vmatprep.subr.bf16.mxu0 0
    %1841 = vmatpush1.bf16.msra.mxu0 0
    %1842 = vmatprep.subr.bf16.mxu0 0
    %1843 = vmatpush1.bf16.msra.mxu0 0
    %1844 = vmatprep.subr.bf16.mxu0 0
    %1845 = vmatpush1.bf16.msra.mxu0 0
    %1846 = vmatprep.subr.bf16.mxu0 0
    %1847 = vmatpush1.bf16.msra.mxu0 0
    %1848 = vmatprep.subr.bf16.mxu0 0
    %1849 = vmatpush1.bf16.msra.mxu0 0
    %1850 = vmatprep.mubr.bf16.mxu0 0
    %1851 = vmatmul.mubr.bf16.gmra.mrb[0].mxu0 %v1813
    %v1852 = vpop.f32.mrb[0].mxu0
    %v1853 = vadd.f32 0.0, %v1852
    %v1854 = vpop.f32.mrb[0].mxu0
    %v1855 = vpop.f32.mrb[0].mxu0
    %v1856 = vpop.f32.mrb[0].mxu0
    %1857 = vdwg.mxu0
    %v1858 = vadd.f32 %v1742, %v1853
    %s1859 = scalar_lea.vmem [#allocation2], 4
    %v1860 = vld [vmem:[%s1859] ss:$32 sm:$0x1]
    %v1861 = vld [vmem:[%s1859] ss:$32 sm:$0x2]
    %v1862 = vor.u32 %v1860, %v1861
    %v1863 = vpack.c.bf16 %v1862, %v1862
    %s1864 = scalar_lea.vmem %s5, 256
    %v1865 = vld [vmem:[%s1864] sm:$0xf]
    %v1866 = vld [vmem:[%s1864 + $0x4] sm:$0xf]
    %v1867 = vld [vmem:[%s1864 + $0x8] sm:$0xf]
    %v1868 = vld [vmem:[%s1864 + $0xc] sm:$0xf]
    %v1869 = vld [vmem:[%s1864 + $0x10] sm:$0xf]
    %v1870 = vld [vmem:[%s1864 + $0x14] sm:$0xf]
    %v1871 = vld [vmem:[%s1864 + $0x18] sm:$0xf]
    %v1872 = vld [vmem:[%s1864 + $0x1c] sm:$0xf]
    %v1873 = vld [vmem:[%s1864 + $0x20] sm:$0xf]
    %v1874 = vld [vmem:[%s1864 + $0x24] sm:$0xf]
    %v1875 = vld [vmem:[%s1864 + $0x28] sm:$0xf]
    %v1876 = vld [vmem:[%s1864 + $0x2c] sm:$0xf]
    %v1877 = vld [vmem:[%s1864 + $0x30] sm:$0xf]
    %v1878 = vld [vmem:[%s1864 + $0x34] sm:$0xf]
    %v1879 = vld [vmem:[%s1864 + $0x38] sm:$0xf]
    %v1880 = vld [vmem:[%s1864 + $0x3c] sm:$0x3]
    %v1897 = vunpack.c.l.b16 %v1865
    %v1898 = vunpack.c.l.b16 %v1866
    %v1899 = vunpack.c.l.b16 %v1867
    %v1900 = vunpack.c.l.b16 %v1868
    %v1901 = vunpack.c.l.b16 %v1869
    %v1902 = vunpack.c.l.b16 %v1870
    %v1903 = vunpack.c.l.b16 %v1871
    %v1904 = vunpack.c.l.b16 %v1872
    %v1905 = vunpack.c.l.b16 %v1873
    %v1906 = vunpack.c.l.b16 %v1874
    %v1907 = vunpack.c.l.b16 %v1875
    %v1908 = vunpack.c.l.b16 %v1876
    %v1909 = vunpack.c.l.b16 %v1877
    %v1910 = vunpack.c.l.b16 %v1878
    %v1911 = vunpack.c.l.b16 %v1879
    %v1912 = vunpack.c.l.b16 %v1880
    %v1913 = vpack.c.b16 %v1898, %v1897
    %v1914 = vpack.c.b16 %v1900, %v1899
    %v1915 = vpack.c.b16 %v1902, %v1901
    %v1916 = vpack.c.b16 %v1904, %v1903
    %v1917 = vpack.c.b16 %v1906, %v1905
    %v1918 = vpack.c.b16 %v1908, %v1907
    %v1919 = vpack.c.b16 %v1910, %v1909
    %v1920 = vpack.c.b16 %v1912, %v1911
    %v1929 = vsel %vm783, %v1863, 0
    %v1932 = vand.u32 %v1920, %v1490
    %1934 = vmatprep.subr.bf16.mxu0 0
    %1935 = vmatpush1.bf16.msra.mxu0 %v1913
    %1936 = vmatprep.subr.bf16.mxu0 0
    %1937 = vmatpush1.bf16.msra.mxu0 %v1914
    %1938 = vmatprep.subr.bf16.mxu0 0
    %1939 = vmatpush1.bf16.msra.mxu0 %v1915
    %1940 = vmatprep.subr.bf16.mxu0 0
    %1941 = vmatpush1.bf16.msra.mxu0 %v1916
    %1942 = vmatprep.subr.bf16.mxu0 0
    %1943 = vmatpush1.bf16.msra.mxu0 %v1917
    %1944 = vmatprep.subr.bf16.mxu0 0
    %1945 = vmatpush1.bf16.msra.mxu0 %v1918
    %1946 = vmatprep.subr.bf16.mxu0 0
    %1947 = vmatpush1.bf16.msra.mxu0 %v1919
    %1948 = vmatprep.subr.bf16.mxu0 0
    %1949 = vmatpush1.bf16.msra.mxu0 %v1932
    %1950 = vmatprep.subr.bf16.mxu0 0
    %1951 = vmatpush1.bf16.msra.mxu0 0
    %1952 = vmatprep.subr.bf16.mxu0 0
    %1953 = vmatpush1.bf16.msra.mxu0 0
    %1954 = vmatprep.subr.bf16.mxu0 0
    %1955 = vmatpush1.bf16.msra.mxu0 0
    %1956 = vmatprep.subr.bf16.mxu0 0
    %1957 = vmatpush1.bf16.msra.mxu0 0
    %1958 = vmatprep.subr.bf16.mxu0 0
    %1959 = vmatpush1.bf16.msra.mxu0 0
    %1960 = vmatprep.subr.bf16.mxu0 0
    %1961 = vmatpush1.bf16.msra.mxu0 0
    %1962 = vmatprep.subr.bf16.mxu0 0
    %1963 = vmatpush1.bf16.msra.mxu0 0
    %1964 = vmatprep.subr.bf16.mxu0 0
    %1965 = vmatpush1.bf16.msra.mxu0 0
    %1966 = vmatprep.mubr.bf16.mxu0 0
    %1967 = vmatmul.mubr.bf16.gmra.mrb[0].mxu0 %v1929
    %v1968 = vpop.f32.mrb[0].mxu0
    %v1969 = vadd.f32 0.0, %v1968
    %v1970 = vpop.f32.mrb[0].mxu0
    %v1971 = vpop.f32.mrb[0].mxu0
    %v1972 = vpop.f32.mrb[0].mxu0
    %1973 = vdwg.mxu0
    %v1974 = vadd.f32 %v1858, %v1969
    %s1975 = scalar_lea.vmem [#allocation2], 5
    %v1976 = vld [vmem:[%s1975] ss:$32 sm:$0x1]
    %v1977 = vld [vmem:[%s1975] ss:$32 sm:$0x2]
    %v1978 = vor.u32 %v1976, %v1977
    %v1979 = vpack.c.bf16 %v1978, %v1978
    %s1980 = scalar_lea.vmem %s5, 320
    %v1981 = vld [vmem:[%s1980] sm:$0xf]
    %v1982 = vld [vmem:[%s1980 + $0x4] sm:$0xf]
    %v1983 = vld [vmem:[%s1980 + $0x8] sm:$0xf]
    %v1984 = vld [vmem:[%s1980 + $0xc] sm:$0xf]
    %v1985 = vld [vmem:[%s1980 + $0x10] sm:$0xf]
    %v1986 = vld [vmem:[%s1980 + $0x14] sm:$0xf]
    %v1987 = vld [vmem:[%s1980 + $0x18] sm:$0xf]
    %v1988 = vld [vmem:[%s1980 + $0x1c] sm:$0xf]
    %v1989 = vld [vmem:[%s1980 + $0x20] sm:$0xf]
    %v1990 = vld [vmem:[%s1980 + $0x24] sm:$0xf]
    %v1991 = vld [vmem:[%s1980 + $0x28] sm:$0xf]
    %v1992 = vld [vmem:[%s1980 + $0x2c] sm:$0xf]
    %v1993 = vld [vmem:[%s1980 + $0x30] sm:$0xf]
    %v1994 = vld [vmem:[%s1980 + $0x34] sm:$0xf]
    %v1995 = vld [vmem:[%s1980 + $0x38] sm:$0xf]
    %v1996 = vld [vmem:[%s1980 + $0x3c] sm:$0x3]
    %v2013 = vunpack.c.l.b16 %v1981
    %v2014 = vunpack.c.l.b16 %v1982
    %v2015 = vunpack.c.l.b16 %v1983
    %v2016 = vunpack.c.l.b16 %v1984
    %v2017 = vunpack.c.l.b16 %v1985
    %v2018 = vunpack.c.l.b16 %v1986
    %v2019 = vunpack.c.l.b16 %v1987
    %v2020 = vunpack.c.l.b16 %v1988
    %v2021 = vunpack.c.l.b16 %v1989
    %v2022 = vunpack.c.l.b16 %v1990
    %v2023 = vunpack.c.l.b16 %v1991
    %v2024 = vunpack.c.l.b16 %v1992
    %v2025 = vunpack.c.l.b16 %v1993
    %v2026 = vunpack.c.l.b16 %v1994
    %v2027 = vunpack.c.l.b16 %v1995
    %v2028 = vunpack.c.l.b16 %v1996
    %v2029 = vpack.c.b16 %v2014, %v2013
    %v2030 = vpack.c.b16 %v2016, %v2015
    %v2031 = vpack.c.b16 %v2018, %v2017
    %v2032 = vpack.c.b16 %v2020, %v2019
    %v2033 = vpack.c.b16 %v2022, %v2021
    %v2034 = vpack.c.b16 %v2024, %v2023
    %v2035 = vpack.c.b16 %v2026, %v2025
    %v2036 = vpack.c.b16 %v2028, %v2027
    %v2045 = vsel %vm783, %v1979, 0
    %v2048 = vand.u32 %v2036, %v1490
    %2050 = vmatprep.subr.bf16.mxu0 0
    %2051 = vmatpush1.bf16.msra.mxu0 %v2029
    %2052 = vmatprep.subr.bf16.mxu0 0
    %2053 = vmatpush1.bf16.msra.mxu0 %v2030
    %2054 = vmatprep.subr.bf16.mxu0 0
    %2055 = vmatpush1.bf16.msra.mxu0 %v2031
    %2056 = vmatprep.subr.bf16.mxu0 0
    %2057 = vmatpush1.bf16.msra.mxu0 %v2032
    %2058 = vmatprep.subr.bf16.mxu0 0
    %2059 = vmatpush1.bf16.msra.mxu0 %v2033
    %2060 = vmatprep.subr.bf16.mxu0 0
    %2061 = vmatpush1.bf16.msra.mxu0 %v2034
    %2062 = vmatprep.subr.bf16.mxu0 0
    %2063 = vmatpush1.bf16.msra.mxu0 %v2035
    %2064 = vmatprep.subr.bf16.mxu0 0
    %2065 = vmatpush1.bf16.msra.mxu0 %v2048
    %2066 = vmatprep.subr.bf16.mxu0 0
    %2067 = vmatpush1.bf16.msra.mxu0 0
    %2068 = vmatprep.subr.bf16.mxu0 0
    %2069 = vmatpush1.bf16.msra.mxu0 0
    %2070 = vmatprep.subr.bf16.mxu0 0
    %2071 = vmatpush1.bf16.msra.mxu0 0
    %2072 = vmatprep.subr.bf16.mxu0 0
    %2073 = vmatpush1.bf16.msra.mxu0 0
    %2074 = vmatprep.subr.bf16.mxu0 0
    %2075 = vmatpush1.bf16.msra.mxu0 0
    %2076 = vmatprep.subr.bf16.mxu0 0
    %2077 = vmatpush1.bf16.msra.mxu0 0
    %2078 = vmatprep.subr.bf16.mxu0 0
    %2079 = vmatpush1.bf16.msra.mxu0 0
    %2080 = vmatprep.subr.bf16.mxu0 0
    %2081 = vmatpush1.bf16.msra.mxu0 0
    %2082 = vmatprep.mubr.bf16.mxu0 0
    %2083 = vmatmul.mubr.bf16.gmra.mrb[0].mxu0 %v2045
    %v2084 = vpop.f32.mrb[0].mxu0
    %v2085 = vadd.f32 0.0, %v2084
    %v2086 = vpop.f32.mrb[0].mxu0
    %v2087 = vpop.f32.mrb[0].mxu0
    %v2088 = vpop.f32.mrb[0].mxu0
    %2089 = vdwg.mxu0
    %v2090 = vadd.f32 %v1974, %v2085
    %s2091 = scalar_lea.vmem [#allocation2], 6
    %v2092 = vld [vmem:[%s2091] ss:$32 sm:$0x1]
    %v2093 = vld [vmem:[%s2091] ss:$32 sm:$0x2]
    %v2094 = vor.u32 %v2092, %v2093
    %v2095 = vpack.c.bf16 %v2094, %v2094
    %s2096 = scalar_lea.vmem %s5, 384
    %v2097 = vld [vmem:[%s2096] sm:$0xf]
    %v2098 = vld [vmem:[%s2096 + $0x4] sm:$0xf]
    %v2099 = vld [vmem:[%s2096 + $0x8] sm:$0xf]
    %v2100 = vld [vmem:[%s2096 + $0xc] sm:$0xf]
    %v2101 = vld [vmem:[%s2096 + $0x10] sm:$0xf]
    %v2102 = vld [vmem:[%s2096 + $0x14] sm:$0xf]
    %v2103 = vld [vmem:[%s2096 + $0x18] sm:$0xf]
    %v2104 = vld [vmem:[%s2096 + $0x1c] sm:$0xf]
    %v2105 = vld [vmem:[%s2096 + $0x20] sm:$0xf]
    %v2106 = vld [vmem:[%s2096 + $0x24] sm:$0xf]
    %v2107 = vld [vmem:[%s2096 + $0x28] sm:$0xf]
    %v2108 = vld [vmem:[%s2096 + $0x2c] sm:$0xf]
    %v2109 = vld [vmem:[%s2096 + $0x30] sm:$0xf]
    %v2110 = vld [vmem:[%s2096 + $0x34] sm:$0xf]
    %v2111 = vld [vmem:[%s2096 + $0x38] sm:$0xf]
    %v2112 = vld [vmem:[%s2096 + $0x3c] sm:$0x3]
    %v2129 = vunpack.c.l.b16 %v2097
    %v2130 = vunpack.c.l.b16 %v2098
    %v2131 = vunpack.c.l.b16 %v2099
    %v2132 = vunpack.c.l.b16 %v2100
    %v2133 = vunpack.c.l.b16 %v2101
    %v2134 = vunpack.c.l.b16 %v2102
    %v2135 = vunpack.c.l.b16 %v2103
    %v2136 = vunpack.c.l.b16 %v2104
    %v2137 = vunpack.c.l.b16 %v2105
    %v2138 = vunpack.c.l.b16 %v2106
    %v2139 = vunpack.c.l.b16 %v2107
    %v2140 = vunpack.c.l.b16 %v2108
    %v2141 = vunpack.c.l.b16 %v2109
    %v2142 = vunpack.c.l.b16 %v2110
    %v2143 = vunpack.c.l.b16 %v2111
    %v2144 = vunpack.c.l.b16 %v2112
    %v2145 = vpack.c.b16 %v2130, %v2129
    %v2146 = vpack.c.b16 %v2132, %v2131
    %v2147 = vpack.c.b16 %v2134, %v2133
    %v2148 = vpack.c.b16 %v2136, %v2135
    %v2149 = vpack.c.b16 %v2138, %v2137
    %v2150 = vpack.c.b16 %v2140, %v2139
    %v2151 = vpack.c.b16 %v2142, %v2141
    %v2152 = vpack.c.b16 %v2144, %v2143
    %v2161 = vsel %vm783, %v2095, 0
    %v2164 = vand.u32 %v2152, %v1490
    %2166 = vmatprep.subr.bf16.mxu0 0
    %2167 = vmatpush1.bf16.msra.mxu0 %v2145
    %2168 = vmatprep.subr.bf16.mxu0 0
    %2169 = vmatpush1.bf16.msra.mxu0 %v2146
    %2170 = vmatprep.subr.bf16.mxu0 0
    %2171 = vmatpush1.bf16.msra.mxu0 %v2147
    %2172 = vmatprep.subr.bf16.mxu0 0
    %2173 = vmatpush1.bf16.msra.mxu0 %v2148
    %2174 = vmatprep.subr.bf16.mxu0 0
    %2175 = vmatpush1.bf16.msra.mxu0 %v2149
    %2176 = vmatprep.subr.bf16.mxu0 0
    %2177 = vmatpush1.bf16.msra.mxu0 %v2150
    %2178 = vmatprep.subr.bf16.mxu0 0
    %2179 = vmatpush1.bf16.msra.mxu0 %v2151
    %2180 = vmatprep.subr.bf16.mxu0 0
    %2181 = vmatpush1.bf16.msra.mxu0 %v2164
    %2182 = vmatprep.subr.bf16.mxu0 0
    %2183 = vmatpush1.bf16.msra.mxu0 0
    %2184 = vmatprep.subr.bf16.mxu0 0
    %2185 = vmatpush1.bf16.msra.mxu0 0
    %2186 = vmatprep.subr.bf16.mxu0 0
    %2187 = vmatpush1.bf16.msra.mxu0 0
    %2188 = vmatprep.subr.bf16.mxu0 0
    %2189 = vmatpush1.bf16.msra.mxu0 0
    %2190 = vmatprep.subr.bf16.mxu0 0
    %2191 = vmatpush1.bf16.msra.mxu0 0
    %2192 = vmatprep.subr.bf16.mxu0 0
    %2193 = vmatpush1.bf16.msra.mxu0 0
    %2194 = vmatprep.subr.bf16.mxu0 0
    %2195 = vmatpush1.bf16.msra.mxu0 0
    %2196 = vmatprep.subr.bf16.mxu0 0
    %2197 = vmatpush1.bf16.msra.mxu0 0
    %2198 = vmatprep.mubr.bf16.mxu0 0
    %2199 = vmatmul.mubr.bf16.gmra.mrb[0].mxu0 %v2161
    %v2200 = vpop.f32.mrb[0].mxu0
    %v2201 = vadd.f32 0.0, %v2200
    %v2202 = vpop.f32.mrb[0].mxu0
    %v2203 = vpop.f32.mrb[0].mxu0
    %v2204 = vpop.f32.mrb[0].mxu0
    %2205 = vdwg.mxu0
    %v2206 = vadd.f32 %v2090, %v2201
    %s2207 = scalar_lea.vmem [#allocation2], 7
    %v2208 = vld [vmem:[%s2207] ss:$32 sm:$0x1]
    %v2209 = vld [vmem:[%s2207] ss:$32 sm:$0x2]
    %v2210 = vor.u32 %v2208, %v2209
    %v2211 = vpack.c.bf16 %v2210, %v2210
    %s2212 = scalar_lea.vmem %s5, 448
    %v2213 = vld [vmem:[%s2212] sm:$0xf]
    %v2214 = vld [vmem:[%s2212 + $0x4] sm:$0xf]
    %v2215 = vld [vmem:[%s2212 + $0x8] sm:$0xf]
    %v2216 = vld [vmem:[%s2212 + $0xc] sm:$0xf]
    %v2217 = vld [vmem:[%s2212 + $0x10] sm:$0xf]
    %v2218 = vld [vmem:[%s2212 + $0x14] sm:$0xf]
    %v2219 = vld [vmem:[%s2212 + $0x18] sm:$0xf]
    %v2220 = vld [vmem:[%s2212 + $0x1c] sm:$0xf]
    %v2221 = vld [vmem:[%s2212 + $0x20] sm:$0xf]
    %v2222 = vld [vmem:[%s2212 + $0x24] sm:$0xf]
    %v2223 = vld [vmem:[%s2212 + $0x28] sm:$0xf]
    %v2224 = vld [vmem:[%s2212 + $0x2c] sm:$0xf]
    %v2225 = vld [vmem:[%s2212 + $0x30] sm:$0xf]
    %v2226 = vld [vmem:[%s2212 + $0x34] sm:$0xf]
    %v2227 = vld [vmem:[%s2212 + $0x38] sm:$0xf]
    %v2228 = vld [vmem:[%s2212 + $0x3c] sm:$0x3]
    %v2245 = vunpack.c.l.b16 %v2213
    %v2246 = vunpack.c.l.b16 %v2214
    %v2247 = vunpack.c.l.b16 %v2215
    %v2248 = vunpack.c.l.b16 %v2216
    %v2249 = vunpack.c.l.b16 %v2217
    %v2250 = vunpack.c.l.b16 %v2218
    %v2251 = vunpack.c.l.b16 %v2219
    %v2252 = vunpack.c.l.b16 %v2220
    %v2253 = vunpack.c.l.b16 %v2221
    %v2254 = vunpack.c.l.b16 %v2222
    %v2255 = vunpack.c.l.b16 %v2223
    %v2256 = vunpack.c.l.b16 %v2224
    %v2257 = vunpack.c.l.b16 %v2225
    %v2258 = vunpack.c.l.b16 %v2226
    %v2259 = vunpack.c.l.b16 %v2227
    %v2260 = vunpack.c.l.b16 %v2228
    %v2261 = vpack.c.b16 %v2246, %v2245
    %v2262 = vpack.c.b16 %v2248, %v2247
    %v2263 = vpack.c.b16 %v2250, %v2249
    %v2264 = vpack.c.b16 %v2252, %v2251
    %v2265 = vpack.c.b16 %v2254, %v2253
    %v2266 = vpack.c.b16 %v2256, %v2255
    %v2267 = vpack.c.b16 %v2258, %v2257
    %v2268 = vpack.c.b16 %v2260, %v2259
    %v2277 = vsel %vm783, %v2211, 0
    %v2280 = vand.u32 %v2268, %v1490
    %2282 = vmatprep.subr.bf16.mxu0 0
    %2283 = vmatpush1.bf16.msra.mxu0 %v2261
    %2284 = vmatprep.subr.bf16.mxu0 0
    %2285 = vmatpush1.bf16.msra.mxu0 %v2262
    %2286 = vmatprep.subr.bf16.mxu0 0
    %2287 = vmatpush1.bf16.msra.mxu0 %v2263
    %2288 = vmatprep.subr.bf16.mxu0 0
    %2289 = vmatpush1.bf16.msra.mxu0 %v2264
    %2290 = vmatprep.subr.bf16.mxu0 0
    %2291 = vmatpush1.bf16.msra.mxu0 %v2265
    %2292 = vmatprep.subr.bf16.mxu0 0
    %2293 = vmatpush1.bf16.msra.mxu0 %v2266
    %2294 = vmatprep.subr.bf16.mxu0 0
    %2295 = vmatpush1.bf16.msra.mxu0 %v2267
    %2296 = vmatprep.subr.bf16.mxu0 0
    %2297 = vmatpush1.bf16.msra.mxu0 %v2280
    %2298 = vmatprep.subr.bf16.mxu0 0
    %2299 = vmatpush1.bf16.msra.mxu0 0
    %2300 = vmatprep.subr.bf16.mxu0 0
    %2301 = vmatpush1.bf16.msra.mxu0 0
    %2302 = vmatprep.subr.bf16.mxu0 0
    %2303 = vmatpush1.bf16.msra.mxu0 0
    %2304 = vmatprep.subr.bf16.mxu0 0
    %2305 = vmatpush1.bf16.msra.mxu0 0
    %2306 = vmatprep.subr.bf16.mxu0 0
    %2307 = vmatpush1.bf16.msra.mxu0 0
    %2308 = vmatprep.subr.bf16.mxu0 0
    %2309 = vmatpush1.bf16.msra.mxu0 0
    %2310 = vmatprep.subr.bf16.mxu0 0
    %2311 = vmatpush1.bf16.msra.mxu0 0
    %2312 = vmatprep.subr.bf16.mxu0 0
    %2313 = vmatpush1.bf16.msra.mxu0 0
    %2314 = vmatprep.mubr.bf16.mxu0 0
    %2315 = vmatmul.mubr.bf16.gmra.mrb[0].mxu0 %v2277
    %v2316 = vpop.f32.mrb[0].mxu0
    %v2317 = vadd.f32 0.0, %v2316
    %v2318 = vpop.f32.mrb[0].mxu0
    %v2319 = vpop.f32.mrb[0].mxu0
    %v2320 = vpop.f32.mrb[0].mxu0
    %2321 = vdwg.mxu0
    %v2322 = vadd.f32 %v2206, %v2317
    %s2323 = scalar_lea.vmem [#allocation2], 8
    %v2324 = vld [vmem:[%s2323] ss:$32 sm:$0x1]
    %v2325 = vld [vmem:[%s2323] ss:$32 sm:$0x2]
    %v2326 = vor.u32 %v2324, %v2325
    %v2327 = vpack.c.bf16 %v2326, %v2326
    %s2328 = scalar_lea.vmem %s5, 512
    %v2329 = vld [vmem:[%s2328] sm:$0xf]
    %v2330 = vld [vmem:[%s2328 + $0x4] sm:$0xf]
    %v2331 = vld [vmem:[%s2328 + $0x8] sm:$0xf]
    %v2332 = vld [vmem:[%s2328 + $0xc] sm:$0xf]
    %v2333 = vld [vmem:[%s2328 + $0x10] sm:$0xf]
    %v2334 = vld [vmem:[%s2328 + $0x14] sm:$0xf]
    %v2335 = vld [vmem:[%s2328 + $0x18] sm:$0xf]
    %v2336 = vld [vmem:[%s2328 + $0x1c] sm:$0xf]
    %v2337 = vld [vmem:[%s2328 + $0x20] sm:$0xf]
    %v2338 = vld [vmem:[%s2328 + $0x24] sm:$0xf]
    %v2339 = vld [vmem:[%s2328 + $0x28] sm:$0xf]
    %v2340 = vld [vmem:[%s2328 + $0x2c] sm:$0xf]
    %v2341 = vld [vmem:[%s2328 + $0x30] sm:$0xf]
    %v2342 = vld [vmem:[%s2328 + $0x34] sm:$0xf]
    %v2343 = vld [vmem:[%s2328 + $0x38] sm:$0xf]
    %v2344 = vld [vmem:[%s2328 + $0x3c] sm:$0x3]
    %v2361 = vunpack.c.l.b16 %v2329
    %v2362 = vunpack.c.l.b16 %v2330
    %v2363 = vunpack.c.l.b16 %v2331
    %v2364 = vunpack.c.l.b16 %v2332
    %v2365 = vunpack.c.l.b16 %v2333
    %v2366 = vunpack.c.l.b16 %v2334
    %v2367 = vunpack.c.l.b16 %v2335
    %v2368 = vunpack.c.l.b16 %v2336
    %v2369 = vunpack.c.l.b16 %v2337
    %v2370 = vunpack.c.l.b16 %v2338
    %v2371 = vunpack.c.l.b16 %v2339
    %v2372 = vunpack.c.l.b16 %v2340
    %v2373 = vunpack.c.l.b16 %v2341
    %v2374 = vunpack.c.l.b16 %v2342
    %v2375 = vunpack.c.l.b16 %v2343
    %v2376 = vunpack.c.l.b16 %v2344
    %v2377 = vpack.c.b16 %v2362, %v2361
    %v2378 = vpack.c.b16 %v2364, %v2363
    %v2379 = vpack.c.b16 %v2366, %v2365
    %v2380 = vpack.c.b16 %v2368, %v2367
    %v2381 = vpack.c.b16 %v2370, %v2369
    %v2382 = vpack.c.b16 %v2372, %v2371
    %v2383 = vpack.c.b16 %v2374, %v2373
    %v2384 = vpack.c.b16 %v2376, %v2375
    %v2393 = vsel %vm783, %v2327, 0
    %v2396 = vand.u32 %v2384, %v1490
    %2398 = vmatprep.subr.bf16.mxu0 0
    %2399 = vmatpush1.bf16.msra.mxu0 %v2377
    %2400 = vmatprep.subr.bf16.mxu0 0
    %2401 = vmatpush1.bf16.msra.mxu0 %v2378
    %2402 = vmatprep.subr.bf16.mxu0 0
    %2403 = vmatpush1.bf16.msra.mxu0 %v2379
    %2404 = vmatprep.subr.bf16.mxu0 0
    %2405 = vmatpush1.bf16.msra.mxu0 %v2380
    %2406 = vmatprep.subr.bf16.mxu0 0
    %2407 = vmatpush1.bf16.msra.mxu0 %v2381
    %2408 = vmatprep.subr.bf16.mxu0 0
    %2409 = vmatpush1.bf16.msra.mxu0 %v2382
    %2410 = vmatprep.subr.bf16.mxu0 0
    %2411 = vmatpush1.bf16.msra.mxu0 %v2383
    %2412 = vmatprep.subr.bf16.mxu0 0
    %2413 = vmatpush1.bf16.msra.mxu0 %v2396
    %2414 = vmatprep.subr.bf16.mxu0 0
    %2415 = vmatpush1.bf16.msra.mxu0 0
    %2416 = vmatprep.subr.bf16.mxu0 0
    %2417 = vmatpush1.bf16.msra.mxu0 0
    %2418 = vmatprep.subr.bf16.mxu0 0
    %2419 = vmatpush1.bf16.msra.mxu0 0
    %2420 = vmatprep.subr.bf16.mxu0 0
    %2421 = vmatpush1.bf16.msra.mxu0 0
    %2422 = vmatprep.subr.bf16.mxu0 0
    %2423 = vmatpush1.bf16.msra.mxu0 0
    %2424 = vmatprep.subr.bf16.mxu0 0
    %2425 = vmatpush1.bf16.msra.mxu0 0
    %2426 = vmatprep.subr.bf16.mxu0 0
    %2427 = vmatpush1.bf16.msra.mxu0 0
    %2428 = vmatprep.subr.bf16.mxu0 0
    %2429 = vmatpush1.bf16.msra.mxu0 0
    %2430 = vmatprep.mubr.bf16.mxu0 0
    %2431 = vmatmul.mubr.bf16.gmra.mrb[0].mxu0 %v2393
    %v2432 = vpop.f32.mrb[0].mxu0
    %v2433 = vadd.f32 0.0, %v2432
    %v2434 = vpop.f32.mrb[0].mxu0
    %v2435 = vpop.f32.mrb[0].mxu0
    %v2436 = vpop.f32.mrb[0].mxu0
    %2437 = vdwg.mxu0
    %v2438 = vadd.f32 %v2322, %v2433
    %s2439 = scalar_lea.vmem [#allocation2], 9
    %v2440 = vld [vmem:[%s2439] ss:$32 sm:$0x1]
    %v2441 = vld [vmem:[%s2439] ss:$32 sm:$0x2]
    %v2442 = vor.u32 %v2440, %v2441
    %v2443 = vpack.c.bf16 %v2442, %v2442
    %s2444 = scalar_lea.vmem %s5, 576
    %v2445 = vld [vmem:[%s2444] sm:$0xf]
    %v2446 = vld [vmem:[%s2444 + $0x4] sm:$0xf]
    %v2447 = vld [vmem:[%s2444 + $0x8] sm:$0xf]
    %v2448 = vld [vmem:[%s2444 + $0xc] sm:$0xf]
    %v2449 = vld [vmem:[%s2444 + $0x10] sm:$0xf]
    %v2450 = vld [vmem:[%s2444 + $0x14] sm:$0xf]
    %v2451 = vld [vmem:[%s2444 + $0x18] sm:$0xf]
    %v2452 = vld [vmem:[%s2444 + $0x1c] sm:$0xf]
    %v2453 = vld [vmem:[%s2444 + $0x20] sm:$0xf]
    %v2454 = vld [vmem:[%s2444 + $0x24] sm:$0xf]
    %v2455 = vld [vmem:[%s2444 + $0x28] sm:$0xf]
    %v2456 = vld [vmem:[%s2444 + $0x2c] sm:$0xf]
    %v2457 = vld [vmem:[%s2444 + $0x30] sm:$0xf]
    %v2458 = vld [vmem:[%s2444 + $0x34] sm:$0xf]
    %v2459 = vld [vmem:[%s2444 + $0x38] sm:$0xf]
    %v2460 = vld [vmem:[%s2444 + $0x3c] sm:$0x3]
    %v2477 = vunpack.c.l.b16 %v2445
    %v2478 = vunpack.c.l.b16 %v2446
    %v2479 = vunpack.c.l.b16 %v2447
    %v2480 = vunpack.c.l.b16 %v2448
    %v2481 = vunpack.c.l.b16 %v2449
    %v2482 = vunpack.c.l.b16 %v2450
    %v2483 = vunpack.c.l.b16 %v2451
    %v2484 = vunpack.c.l.b16 %v2452
    %v2485 = vunpack.c.l.b16 %v2453
    %v2486 = vunpack.c.l.b16 %v2454
    %v2487 = vunpack.c.l.b16 %v2455
    %v2488 = vunpack.c.l.b16 %v2456
    %v2489 = vunpack.c.l.b16 %v2457
    %v2490 = vunpack.c.l.b16 %v2458
    %v2491 = vunpack.c.l.b16 %v2459
    %v2492 = vunpack.c.l.b16 %v2460
    %v2493 = vpack.c.b16 %v2478, %v2477
    %v2494 = vpack.c.b16 %v2480, %v2479
    %v2495 = vpack.c.b16 %v2482, %v2481
    %v2496 = vpack.c.b16 %v2484, %v2483
    %v2497 = vpack.c.b16 %v2486, %v2485
    %v2498 = vpack.c.b16 %v2488, %v2487
    %v2499 = vpack.c.b16 %v2490, %v2489
    %v2500 = vpack.c.b16 %v2492, %v2491
    %v2509 = vsel %vm783, %v2443, 0
    %v2512 = vand.u32 %v2500, %v1490
    %2514 = vmatprep.subr.bf16.mxu0 0
    %2515 = vmatpush1.bf16.msra.mxu0 %v2493
    %2516 = vmatprep.subr.bf16.mxu0 0
    %2517 = vmatpush1.bf16.msra.mxu0 %v2494
    %2518 = vmatprep.subr.bf16.mxu0 0
    %2519 = vmatpush1.bf16.msra.mxu0 %v2495
    %2520 = vmatprep.subr.bf16.mxu0 0
    %2521 = vmatpush1.bf16.msra.mxu0 %v2496
    %2522 = vmatprep.subr.bf16.mxu0 0
    %2523 = vmatpush1.bf16.msra.mxu0 %v2497
    %2524 = vmatprep.subr.bf16.mxu0 0
    %2525 = vmatpush1.bf16.msra.mxu0 %v2498
    %2526 = vmatprep.subr.bf16.mxu0 0
    %2527 = vmatpush1.bf16.msra.mxu0 %v2499
    %2528 = vmatprep.subr.bf16.mxu0 0
    %2529 = vmatpush1.bf16.msra.mxu0 %v2512
    %2530 = vmatprep.subr.bf16.mxu0 0
    %2531 = vmatpush1.bf16.msra.mxu0 0
    %2532 = vmatprep.subr.bf16.mxu0 0
    %2533 = vmatpush1.bf16.msra.mxu0 0
    %2534 = vmatprep.subr.bf16.mxu0 0
    %2535 = vmatpush1.bf16.msra.mxu0 0
    %2536 = vmatprep.subr.bf16.mxu0 0
    %2537 = vmatpush1.bf16.msra.mxu0 0
    %2538 = vmatprep.subr.bf16.mxu0 0
    %2539 = vmatpush1.bf16.msra.mxu0 0
    %2540 = vmatprep.subr.bf16.mxu0 0
    %2541 = vmatpush1.bf16.msra.mxu0 0
    %2542 = vmatprep.subr.bf16.mxu0 0
    %2543 = vmatpush1.bf16.msra.mxu0 0
    %2544 = vmatprep.subr.bf16.mxu0 0
    %2545 = vmatpush1.bf16.msra.mxu0 0
    %2546 = vmatprep.mubr.bf16.mxu0 0
    %2547 = vmatmul.mubr.bf16.gmra.mrb[0].mxu0 %v2509
    %v2548 = vpop.f32.mrb[0].mxu0
    %v2549 = vadd.f32 0.0, %v2548
    %v2550 = vpop.f32.mrb[0].mxu0
    %v2551 = vpop.f32.mrb[0].mxu0
    %v2552 = vpop.f32.mrb[0].mxu0
    %2553 = vdwg.mxu0
    %v2554 = vadd.f32 %v2438, %v2549
    %s2555 = scalar_lea.vmem [#allocation2], 10
    %v2556 = vld [vmem:[%s2555] ss:$32 sm:$0x1]
    %v2557 = vld [vmem:[%s2555] ss:$32 sm:$0x2]
    %v2558 = vor.u32 %v2556, %v2557
    %v2559 = vpack.c.bf16 %v2558, %v2558
    %s2560 = scalar_lea.vmem %s5, 640
    %v2561 = vld [vmem:[%s2560] sm:$0xf]
    %v2562 = vld [vmem:[%s2560 + $0x4] sm:$0xf]
    %v2563 = vld [vmem:[%s2560 + $0x8] sm:$0xf]
    %v2564 = vld [vmem:[%s2560 + $0xc] sm:$0xf]
    %v2565 = vld [vmem:[%s2560 + $0x10] sm:$0xf]
    %v2566 = vld [vmem:[%s2560 + $0x14] sm:$0xf]
    %v2567 = vld [vmem:[%s2560 + $0x18] sm:$0xf]
    %v2568 = vld [vmem:[%s2560 + $0x1c] sm:$0xf]
    %v2569 = vld [vmem:[%s2560 + $0x20] sm:$0xf]
    %v2570 = vld [vmem:[%s2560 + $0x24] sm:$0xf]
    %v2571 = vld [vmem:[%s2560 + $0x28] sm:$0xf]
    %v2572 = vld [vmem:[%s2560 + $0x2c] sm:$0xf]
    %v2573 = vld [vmem:[%s2560 + $0x30] sm:$0xf]
    %v2574 = vld [vmem:[%s2560 + $0x34] sm:$0xf]
    %v2575 = vld [vmem:[%s2560 + $0x38] sm:$0xf]
    %v2576 = vld [vmem:[%s2560 + $0x3c] sm:$0x3]
    %v2593 = vunpack.c.l.b16 %v2561
    %v2594 = vunpack.c.l.b16 %v2562
    %v2595 = vunpack.c.l.b16 %v2563
    %v2596 = vunpack.c.l.b16 %v2564
    %v2597 = vunpack.c.l.b16 %v2565
    %v2598 = vunpack.c.l.b16 %v2566
    %v2599 = vunpack.c.l.b16 %v2567
    %v2600 = vunpack.c.l.b16 %v2568
    %v2601 = vunpack.c.l.b16 %v2569
    %v2602 = vunpack.c.l.b16 %v2570
    %v2603 = vunpack.c.l.b16 %v2571
    %v2604 = vunpack.c.l.b16 %v2572
    %v2605 = vunpack.c.l.b16 %v2573
    %v2606 = vunpack.c.l.b16 %v2574
    %v2607 = vunpack.c.l.b16 %v2575
    %v2608 = vunpack.c.l.b16 %v2576
    %v2609 = vpack.c.b16 %v2594, %v2593
    %v2610 = vpack.c.b16 %v2596, %v2595
    %v2611 = vpack.c.b16 %v2598, %v2597
    %v2612 = vpack.c.b16 %v2600, %v2599
    %v2613 = vpack.c.b16 %v2602, %v2601
    %v2614 = vpack.c.b16 %v2604, %v2603
    %v2615 = vpack.c.b16 %v2606, %v2605
    %v2616 = vpack.c.b16 %v2608, %v2607
    %v2625 = vsel %vm783, %v2559, 0
    %v2628 = vand.u32 %v2616, %v1490
    %2630 = vmatprep.subr.bf16.mxu0 0
    %2631 = vmatpush1.bf16.msra.mxu0 %v2609
    %2632 = vmatprep.subr.bf16.mxu0 0
    %2633 = vmatpush1.bf16.msra.mxu0 %v2610
    %2634 = vmatprep.subr.bf16.mxu0 0
    %2635 = vmatpush1.bf16.msra.mxu0 %v2611
    %2636 = vmatprep.subr.bf16.mxu0 0
    %2637 = vmatpush1.bf16.msra.mxu0 %v2612
    %2638 = vmatprep.subr.bf16.mxu0 0
    %2639 = vmatpush1.bf16.msra.mxu0 %v2613
    %2640 = vmatprep.subr.bf16.mxu0 0
    %2641 = vmatpush1.bf16.msra.mxu0 %v2614
    %2642 = vmatprep.subr.bf16.mxu0 0
    %2643 = vmatpush1.bf16.msra.mxu0 %v2615
    %2644 = vmatprep.subr.bf16.mxu0 0
    %2645 = vmatpush1.bf16.msra.mxu0 %v2628
    %2646 = vmatprep.subr.bf16.mxu0 0
    %2647 = vmatpush1.bf16.msra.mxu0 0
    %2648 = vmatprep.subr.bf16.mxu0 0
    %2649 = vmatpush1.bf16.msra.mxu0 0
    %2650 = vmatprep.subr.bf16.mxu0 0
    %2651 = vmatpush1.bf16.msra.mxu0 0
    %2652 = vmatprep.subr.bf16.mxu0 0
    %2653 = vmatpush1.bf16.msra.mxu0 0
    %2654 = vmatprep.subr.bf16.mxu0 0
    %2655 = vmatpush1.bf16.msra.mxu0 0
    %2656 = vmatprep.subr.bf16.mxu0 0
    %2657 = vmatpush1.bf16.msra.mxu0 0
    %2658 = vmatprep.subr.bf16.mxu0 0
    %2659 = vmatpush1.bf16.msra.mxu0 0
    %2660 = vmatprep.subr.bf16.mxu0 0
    %2661 = vmatpush1.bf16.msra.mxu0 0
    %2662 = vmatprep.mubr.bf16.mxu0 0
    %2663 = vmatmul.mubr.bf16.gmra.mrb[0].mxu0 %v2625
    %v2664 = vpop.f32.mrb[0].mxu0
    %v2665 = vadd.f32 0.0, %v2664
    %v2666 = vpop.f32.mrb[0].mxu0
    %v2667 = vpop.f32.mrb[0].mxu0
    %v2668 = vpop.f32.mrb[0].mxu0
    %2669 = vdwg.mxu0
    %v2670 = vadd.f32 %v2554, %v2665
    %s2671 = scalar_lea.vmem [#allocation2], 11
    %v2672 = vld [vmem:[%s2671] ss:$32 sm:$0x1]
    %v2673 = vld [vmem:[%s2671] ss:$32 sm:$0x2]
    %v2674 = vor.u32 %v2672, %v2673
    %v2675 = vpack.c.bf16 %v2674, %v2674
    %s2676 = scalar_lea.vmem %s5, 704
    %v2677 = vld [vmem:[%s2676] sm:$0xf]
    %v2678 = vld [vmem:[%s2676 + $0x4] sm:$0xf]
    %v2679 = vld [vmem:[%s2676 + $0x8] sm:$0xf]
    %v2680 = vld [vmem:[%s2676 + $0xc] sm:$0xf]
    %v2681 = vld [vmem:[%s2676 + $0x10] sm:$0xf]
    %v2682 = vld [vmem:[%s2676 + $0x14] sm:$0xf]
    %v2683 = vld [vmem:[%s2676 + $0x18] sm:$0xf]
    %v2684 = vld [vmem:[%s2676 + $0x1c] sm:$0xf]
    %v2685 = vld [vmem:[%s2676 + $0x20] sm:$0xf]
    %v2686 = vld [vmem:[%s2676 + $0x24] sm:$0xf]
    %v2687 = vld [vmem:[%s2676 + $0x28] sm:$0xf]
    %v2688 = vld [vmem:[%s2676 + $0x2c] sm:$0xf]
    %v2689 = vld [vmem:[%s2676 + $0x30] sm:$0xf]
    %v2690 = vld [vmem:[%s2676 + $0x34] sm:$0xf]
    %v2691 = vld [vmem:[%s2676 + $0x38] sm:$0xf]
    %v2692 = vld [vmem:[%s2676 + $0x3c] sm:$0x3]
    %v2709 = vunpack.c.l.b16 %v2677
    %v2710 = vunpack.c.l.b16 %v2678
    %v2711 = vunpack.c.l.b16 %v2679
    %v2712 = vunpack.c.l.b16 %v2680
    %v2713 = vunpack.c.l.b16 %v2681
    %v2714 = vunpack.c.l.b16 %v2682
    %v2715 = vunpack.c.l.b16 %v2683
    %v2716 = vunpack.c.l.b16 %v2684
    %v2717 = vunpack.c.l.b16 %v2685
    %v2718 = vunpack.c.l.b16 %v2686
    %v2719 = vunpack.c.l.b16 %v2687
    %v2720 = vunpack.c.l.b16 %v2688
    %v2721 = vunpack.c.l.b16 %v2689
    %v2722 = vunpack.c.l.b16 %v2690
    %v2723 = vunpack.c.l.b16 %v2691
    %v2724 = vunpack.c.l.b16 %v2692
    %v2725 = vpack.c.b16 %v2710, %v2709
    %v2726 = vpack.c.b16 %v2712, %v2711
    %v2727 = vpack.c.b16 %v2714, %v2713
    %v2728 = vpack.c.b16 %v2716, %v2715
    %v2729 = vpack.c.b16 %v2718, %v2717
    %v2730 = vpack.c.b16 %v2720, %v2719
    %v2731 = vpack.c.b16 %v2722, %v2721
    %v2732 = vpack.c.b16 %v2724, %v2723
    %v2741 = vsel %vm783, %v2675, 0
    %v2744 = vand.u32 %v2732, %v1490
    %2746 = vmatprep.subr.bf16.mxu0 0
    %2747 = vmatpush1.bf16.msra.mxu0 %v2725
    %2748 = vmatprep.subr.bf16.mxu0 0
    %2749 = vmatpush1.bf16.msra.mxu0 %v2726
    %2750 = vmatprep.subr.bf16.mxu0 0
    %2751 = vmatpush1.bf16.msra.mxu0 %v2727
    %2752 = vmatprep.subr.bf16.mxu0 0
    %2753 = vmatpush1.bf16.msra.mxu0 %v2728
    %2754 = vmatprep.subr.bf16.mxu0 0
    %2755 = vmatpush1.bf16.msra.mxu0 %v2729
    %2756 = vmatprep.subr.bf16.mxu0 0
    %2757 = vmatpush1.bf16.msra.mxu0 %v2730
    %2758 = vmatprep.subr.bf16.mxu0 0
    %2759 = vmatpush1.bf16.msra.mxu0 %v2731
    %2760 = vmatprep.subr.bf16.mxu0 0
    %2761 = vmatpush1.bf16.msra.mxu0 %v2744
    %2762 = vmatprep.subr.bf16.mxu0 0
    %2763 = vmatpush1.bf16.msra.mxu0 0
    %2764 = vmatprep.subr.bf16.mxu0 0
    %2765 = vmatpush1.bf16.msra.mxu0 0
    %2766 = vmatprep.subr.bf16.mxu0 0
    %2767 = vmatpush1.bf16.msra.mxu0 0
    %2768 = vmatprep.subr.bf16.mxu0 0
    %2769 = vmatpush1.bf16.msra.mxu0 0
    %2770 = vmatprep.subr.bf16.mxu0 0
    %2771 = vmatpush1.bf16.msra.mxu0 0
    %2772 = vmatprep.subr.bf16.mxu0 0
    %2773 = vmatpush1.bf16.msra.mxu0 0
    %2774 = vmatprep.subr.bf16.mxu0 0
    %2775 = vmatpush1.bf16.msra.mxu0 0
    %2776 = vmatprep.subr.bf16.mxu0 0
    %2777 = vmatpush1.bf16.msra.mxu0 0
    %2778 = vmatprep.mubr.bf16.mxu0 0
    %2779 = vmatmul.mubr.bf16.gmra.mrb[0].mxu0 %v2741
    %v2780 = vpop.f32.mrb[0].mxu0
    %v2781 = vadd.f32 0.0, %v2780
    %v2782 = vpop.f32.mrb[0].mxu0
    %v2783 = vpop.f32.mrb[0].mxu0
    %v2784 = vpop.f32.mrb[0].mxu0
    %2785 = vdwg.mxu0
    %v2786 = vadd.f32 %v2670, %v2781
    %s2787 = scalar_lea.vmem [#allocation2], 12
    %v2788 = vld [vmem:[%s2787] ss:$32 sm:$0x1]
    %v2789 = vld [vmem:[%s2787] ss:$32 sm:$0x2]
    %v2790 = vor.u32 %v2788, %v2789
    %v2791 = vpack.c.bf16 %v2790, %v2790
    %s2792 = scalar_lea.vmem %s5, 768
    %v2793 = vld [vmem:[%s2792] sm:$0xf]
    %v2794 = vld [vmem:[%s2792 + $0x4] sm:$0xf]
    %v2795 = vld [vmem:[%s2792 + $0x8] sm:$0xf]
    %v2796 = vld [vmem:[%s2792 + $0xc] sm:$0xf]
    %v2797 = vld [vmem:[%s2792 + $0x10] sm:$0xf]
    %v2798 = vld [vmem:[%s2792 + $0x14] sm:$0xf]
    %v2799 = vld [vmem:[%s2792 + $0x18] sm:$0xf]
    %v2800 = vld [vmem:[%s2792 + $0x1c] sm:$0xf]
    %v2801 = vld [vmem:[%s2792 + $0x20] sm:$0xf]
    %v2802 = vld [vmem:[%s2792 + $0x24] sm:$0xf]
    %v2803 = vld [vmem:[%s2792 + $0x28] sm:$0xf]
    %v2804 = vld [vmem:[%s2792 + $0x2c] sm:$0xf]
    %v2805 = vld [vmem:[%s2792 + $0x30] sm:$0xf]
    %v2806 = vld [vmem:[%s2792 + $0x34] sm:$0xf]
    %v2807 = vld [vmem:[%s2792 + $0x38] sm:$0xf]
    %v2808 = vld [vmem:[%s2792 + $0x3c] sm:$0x3]
    %v2825 = vunpack.c.l.b16 %v2793
    %v2826 = vunpack.c.l.b16 %v2794
    %v2827 = vunpack.c.l.b16 %v2795
    %v2828 = vunpack.c.l.b16 %v2796
    %v2829 = vunpack.c.l.b16 %v2797
    %v2830 = vunpack.c.l.b16 %v2798
    %v2831 = vunpack.c.l.b16 %v2799
    %v2832 = vunpack.c.l.b16 %v2800
    %v2833 = vunpack.c.l.b16 %v2801
    %v2834 = vunpack.c.l.b16 %v2802
    %v2835 = vunpack.c.l.b16 %v2803
    %v2836 = vunpack.c.l.b16 %v2804
    %v2837 = vunpack.c.l.b16 %v2805
    %v2838 = vunpack.c.l.b16 %v2806
    %v2839 = vunpack.c.l.b16 %v2807
    %v2840 = vunpack.c.l.b16 %v2808
    %v2841 = vpack.c.b16 %v2826, %v2825
    %v2842 = vpack.c.b16 %v2828, %v2827
    %v2843 = vpack.c.b16 %v2830, %v2829
    %v2844 = vpack.c.b16 %v2832, %v2831
    %v2845 = vpack.c.b16 %v2834, %v2833
    %v2846 = vpack.c.b16 %v2836, %v2835
    %v2847 = vpack.c.b16 %v2838, %v2837
    %v2848 = vpack.c.b16 %v2840, %v2839
    %v2857 = vsel %vm783, %v2791, 0
    %v2860 = vand.u32 %v2848, %v1490
    %2862 = vmatprep.subr.bf16.mxu0 0
    %2863 = vmatpush1.bf16.msra.mxu0 %v2841
    %2864 = vmatprep.subr.bf16.mxu0 0
    %2865 = vmatpush1.bf16.msra.mxu0 %v2842
    %2866 = vmatprep.subr.bf16.mxu0 0
    %2867 = vmatpush1.bf16.msra.mxu0 %v2843
    %2868 = vmatprep.subr.bf16.mxu0 0
    %2869 = vmatpush1.bf16.msra.mxu0 %v2844
    %2870 = vmatprep.subr.bf16.mxu0 0
    %2871 = vmatpush1.bf16.msra.mxu0 %v2845
    %2872 = vmatprep.subr.bf16.mxu0 0
    %2873 = vmatpush1.bf16.msra.mxu0 %v2846
    %2874 = vmatprep.subr.bf16.mxu0 0
    %2875 = vmatpush1.bf16.msra.mxu0 %v2847
    %2876 = vmatprep.subr.bf16.mxu0 0
    %2877 = vmatpush1.bf16.msra.mxu0 %v2860
    %2878 = vmatprep.subr.bf16.mxu0 0
    %2879 = vmatpush1.bf16.msra.mxu0 0
    %2880 = vmatprep.subr.bf16.mxu0 0
    %2881 = vmatpush1.bf16.msra.mxu0 0
    %2882 = vmatprep.subr.bf16.mxu0 0
    %2883 = vmatpush1.bf16.msra.mxu0 0
    %2884 = vmatprep.subr.bf16.mxu0 0
    %2885 = vmatpush1.bf16.msra.mxu0 0
    %2886 = vmatprep.subr.bf16.mxu0 0
    %2887 = vmatpush1.bf16.msra.mxu0 0
    %2888 = vmatprep.subr.bf16.mxu0 0
    %2889 = vmatpush1.bf16.msra.mxu0 0
    %2890 = vmatprep.subr.bf16.mxu0 0
    %2891 = vmatpush1.bf16.msra.mxu0 0
    %2892 = vmatprep.subr.bf16.mxu0 0
    %2893 = vmatpush1.bf16.msra.mxu0 0
    %2894 = vmatprep.mubr.bf16.mxu0 0
    %2895 = vmatmul.mubr.bf16.gmra.mrb[0].mxu0 %v2857
    %v2896 = vpop.f32.mrb[0].mxu0
    %v2897 = vadd.f32 0.0, %v2896
    %v2898 = vpop.f32.mrb[0].mxu0
    %v2899 = vpop.f32.mrb[0].mxu0
    %v2900 = vpop.f32.mrb[0].mxu0
    %2901 = vdwg.mxu0
    %v2902 = vadd.f32 %v2786, %v2897
    %s2903 = scalar_lea.vmem [#allocation2], 13
    %v2904 = vld [vmem:[%s2903] ss:$32 sm:$0x1]
    %v2905 = vld [vmem:[%s2903] ss:$32 sm:$0x2]
    %v2906 = vor.u32 %v2904, %v2905
    %v2907 = vpack.c.bf16 %v2906, %v2906
    %s2908 = scalar_lea.vmem %s5, 832
    %v2909 = vld [vmem:[%s2908] sm:$0xf]
    %v2910 = vld [vmem:[%s2908 + $0x4] sm:$0xf]
    %v2911 = vld [vmem:[%s2908 + $0x8] sm:$0xf]
    %v2912 = vld [vmem:[%s2908 + $0xc] sm:$0xf]
    %v2913 = vld [vmem:[%s2908 + $0x10] sm:$0xf]
    %v2914 = vld [vmem:[%s2908 + $0x14] sm:$0xf]
    %v2915 = vld [vmem:[%s2908 + $0x18] sm:$0xf]
    %v2916 = vld [vmem:[%s2908 + $0x1c] sm:$0xf]
    %v2917 = vld [vmem:[%s2908 + $0x20] sm:$0xf]
    %v2918 = vld [vmem:[%s2908 + $0x24] sm:$0xf]
    %v2919 = vld [vmem:[%s2908 + $0x28] sm:$0xf]
    %v2920 = vld [vmem:[%s2908 + $0x2c] sm:$0xf]
    %v2921 = vld [vmem:[%s2908 + $0x30] sm:$0xf]
    %v2922 = vld [vmem:[%s2908 + $0x34] sm:$0xf]
    %v2923 = vld [vmem:[%s2908 + $0x38] sm:$0xf]
    %v2924 = vld [vmem:[%s2908 + $0x3c] sm:$0x3]
    %v2941 = vunpack.c.l.b16 %v2909
    %v2942 = vunpack.c.l.b16 %v2910
    %v2943 = vunpack.c.l.b16 %v2911
    %v2944 = vunpack.c.l.b16 %v2912
    %v2945 = vunpack.c.l.b16 %v2913
    %v2946 = vunpack.c.l.b16 %v2914
    %v2947 = vunpack.c.l.b16 %v2915
    %v2948 = vunpack.c.l.b16 %v2916
    %v2949 = vunpack.c.l.b16 %v2917
    %v2950 = vunpack.c.l.b16 %v2918
    %v2951 = vunpack.c.l.b16 %v2919
    %v2952 = vunpack.c.l.b16 %v2920
    %v2953 = vunpack.c.l.b16 %v2921
    %v2954 = vunpack.c.l.b16 %v2922
    %v2955 = vunpack.c.l.b16 %v2923
    %v2956 = vunpack.c.l.b16 %v2924
    %v2957 = vpack.c.b16 %v2942, %v2941
    %v2958 = vpack.c.b16 %v2944, %v2943
    %v2959 = vpack.c.b16 %v2946, %v2945
    %v2960 = vpack.c.b16 %v2948, %v2947
    %v2961 = vpack.c.b16 %v2950, %v2949
    %v2962 = vpack.c.b16 %v2952, %v2951
    %v2963 = vpack.c.b16 %v2954, %v2953
    %v2964 = vpack.c.b16 %v2956, %v2955
    %v2973 = vsel %vm783, %v2907, 0
    %v2976 = vand.u32 %v2964, %v1490
    %2978 = vmatprep.subr.bf16.mxu0 0
    %2979 = vmatpush1.bf16.msra.mxu0 %v2957
    %2980 = vmatprep.subr.bf16.mxu0 0
    %2981 = vmatpush1.bf16.msra.mxu0 %v2958
    %2982 = vmatprep.subr.bf16.mxu0 0
    %2983 = vmatpush1.bf16.msra.mxu0 %v2959
    %2984 = vmatprep.subr.bf16.mxu0 0
    %2985 = vmatpush1.bf16.msra.mxu0 %v2960
    %2986 = vmatprep.subr.bf16.mxu0 0
    %2987 = vmatpush1.bf16.msra.mxu0 %v2961
    %2988 = vmatprep.subr.bf16.mxu0 0
    %2989 = vmatpush1.bf16.msra.mxu0 %v2962
    %2990 = vmatprep.subr.bf16.mxu0 0
    %2991 = vmatpush1.bf16.msra.mxu0 %v2963
    %2992 = vmatprep.subr.bf16.mxu0 0
    %2993 = vmatpush1.bf16.msra.mxu0 %v2976
    %2994 = vmatprep.subr.bf16.mxu0 0
    %2995 = vmatpush1.bf16.msra.mxu0 0
    %2996 = vmatprep.subr.bf16.mxu0 0
    %2997 = vmatpush1.bf16.msra.mxu0 0
    %2998 = vmatprep.subr.bf16.mxu0 0
    %2999 = vmatpush1.bf16.msra.mxu0 0
    %3000 = vmatprep.subr.bf16.mxu0 0
    %3001 = vmatpush1.bf16.msra.mxu0 0
    %3002 = vmatprep.subr.bf16.mxu0 0
    %3003 = vmatpush1.bf16.msra.mxu0 0
    %3004 = vmatprep.subr.bf16.mxu0 0
    %3005 = vmatpush1.bf16.msra.mxu0 0
    %3006 = vmatprep.subr.bf16.mxu0 0
    %3007 = vmatpush1.bf16.msra.mxu0 0
    %3008 = vmatprep.subr.bf16.mxu0 0
    %3009 = vmatpush1.bf16.msra.mxu0 0
    %3010 = vmatprep.mubr.bf16.mxu0 0
    %3011 = vmatmul.mubr.bf16.gmra.mrb[0].mxu0 %v2973
    %v3012 = vpop.f32.mrb[0].mxu0
    %v3013 = vadd.f32 0.0, %v3012
    %v3014 = vpop.f32.mrb[0].mxu0
    %v3015 = vpop.f32.mrb[0].mxu0
    %v3016 = vpop.f32.mrb[0].mxu0
    %3017 = vdwg.mxu0
    %v3018 = vadd.f32 %v2902, %v3013
    %s3019 = scalar_lea.vmem [#allocation2], 14
    %v3020 = vld [vmem:[%s3019] ss:$32 sm:$0x1]
    %v3021 = vld [vmem:[%s3019] ss:$32 sm:$0x2]
    %v3022 = vor.u32 %v3020, %v3021
    %v3023 = vpack.c.bf16 %v3022, %v3022
    %s3024 = scalar_lea.vmem %s5, 896
    %v3025 = vld [vmem:[%s3024] sm:$0xf]
    %v3026 = vld [vmem:[%s3024 + $0x4] sm:$0xf]
    %v3027 = vld [vmem:[%s3024 + $0x8] sm:$0xf]
    %v3028 = vld [vmem:[%s3024 + $0xc] sm:$0xf]
    %v3029 = vld [vmem:[%s3024 + $0x10] sm:$0xf]
    %v3030 = vld [vmem:[%s3024 + $0x14] sm:$0xf]
    %v3031 = vld [vmem:[%s3024 + $0x18] sm:$0xf]
    %v3032 = vld [vmem:[%s3024 + $0x1c] sm:$0xf]
    %v3033 = vld [vmem:[%s3024 + $0x20] sm:$0xf]
    %v3034 = vld [vmem:[%s3024 + $0x24] sm:$0xf]
    %v3035 = vld [vmem:[%s3024 + $0x28] sm:$0xf]
    %v3036 = vld [vmem:[%s3024 + $0x2c] sm:$0xf]
    %v3037 = vld [vmem:[%s3024 + $0x30] sm:$0xf]
    %v3038 = vld [vmem:[%s3024 + $0x34] sm:$0xf]
    %v3039 = vld [vmem:[%s3024 + $0x38] sm:$0xf]
    %v3040 = vld [vmem:[%s3024 + $0x3c] sm:$0x3]
    %v3057 = vunpack.c.l.b16 %v3025
    %v3058 = vunpack.c.l.b16 %v3026
    %v3059 = vunpack.c.l.b16 %v3027
    %v3060 = vunpack.c.l.b16 %v3028
    %v3061 = vunpack.c.l.b16 %v3029
    %v3062 = vunpack.c.l.b16 %v3030
    %v3063 = vunpack.c.l.b16 %v3031
    %v3064 = vunpack.c.l.b16 %v3032
    %v3065 = vunpack.c.l.b16 %v3033
    %v3066 = vunpack.c.l.b16 %v3034
    %v3067 = vunpack.c.l.b16 %v3035
    %v3068 = vunpack.c.l.b16 %v3036
    %v3069 = vunpack.c.l.b16 %v3037
    %v3070 = vunpack.c.l.b16 %v3038
    %v3071 = vunpack.c.l.b16 %v3039
    %v3072 = vunpack.c.l.b16 %v3040
    %v3073 = vpack.c.b16 %v3058, %v3057
    %v3074 = vpack.c.b16 %v3060, %v3059
    %v3075 = vpack.c.b16 %v3062, %v3061
    %v3076 = vpack.c.b16 %v3064, %v3063
    %v3077 = vpack.c.b16 %v3066, %v3065
    %v3078 = vpack.c.b16 %v3068, %v3067
    %v3079 = vpack.c.b16 %v3070, %v3069
    %v3080 = vpack.c.b16 %v3072, %v3071
    %v3089 = vsel %vm783, %v3023, 0
    %v3092 = vand.u32 %v3080, %v1490
    %3094 = vmatprep.subr.bf16.mxu0 0
    %3095 = vmatpush1.bf16.msra.mxu0 %v3073
    %3096 = vmatprep.subr.bf16.mxu0 0
    %3097 = vmatpush1.bf16.msra.mxu0 %v3074
    %3098 = vmatprep.subr.bf16.mxu0 0
    %3099 = vmatpush1.bf16.msra.mxu0 %v3075
    %3100 = vmatprep.subr.bf16.mxu0 0
    %3101 = vmatpush1.bf16.msra.mxu0 %v3076
    %3102 = vmatprep.subr.bf16.mxu0 0
    %3103 = vmatpush1.bf16.msra.mxu0 %v3077
    %3104 = vmatprep.subr.bf16.mxu0 0
    %3105 = vmatpush1.bf16.msra.mxu0 %v3078
    %3106 = vmatprep.subr.bf16.mxu0 0
    %3107 = vmatpush1.bf16.msra.mxu0 %v3079
    %3108 = vmatprep.subr.bf16.mxu0 0
    %3109 = vmatpush1.bf16.msra.mxu0 %v3092
    %3110 = vmatprep.subr.bf16.mxu0 0
    %3111 = vmatpush1.bf16.msra.mxu0 0
    %3112 = vmatprep.subr.bf16.mxu0 0
    %3113 = vmatpush1.bf16.msra.mxu0 0
    %3114 = vmatprep.subr.bf16.mxu0 0
    %3115 = vmatpush1.bf16.msra.mxu0 0
    %3116 = vmatprep.subr.bf16.mxu0 0
    %3117 = vmatpush1.bf16.msra.mxu0 0
    %3118 = vmatprep.subr.bf16.mxu0 0
    %3119 = vmatpush1.bf16.msra.mxu0 0
    %3120 = vmatprep.subr.bf16.mxu0 0
    %3121 = vmatpush1.bf16.msra.mxu0 0
    %3122 = vmatprep.subr.bf16.mxu0 0
    %3123 = vmatpush1.bf16.msra.mxu0 0
    %3124 = vmatprep.subr.bf16.mxu0 0
    %3125 = vmatpush1.bf16.msra.mxu0 0
    %3126 = vmatprep.mubr.bf16.mxu0 0
    %3127 = vmatmul.mubr.bf16.gmra.mrb[0].mxu0 %v3089
    %v3128 = vpop.f32.mrb[0].mxu0
    %v3129 = vadd.f32 0.0, %v3128
    %v3130 = vpop.f32.mrb[0].mxu0
    %v3131 = vpop.f32.mrb[0].mxu0
    %v3132 = vpop.f32.mrb[0].mxu0
    %3133 = vdwg.mxu0
    %v3134 = vadd.f32 %v3018, %v3129
    %s3135 = scalar_lea.vmem [#allocation2], 15
    %v3136 = vld [vmem:[%s3135] ss:$32 sm:$0x1]
    %v3137 = vld [vmem:[%s3135] ss:$32 sm:$0x2]
    %v3138 = vor.u32 %v3136, %v3137
    %v3139 = vpack.c.bf16 %v3138, %v3138
    %s3140 = scalar_lea.vmem %s5, 960
    %v3141 = vld [vmem:[%s3140] sm:$0xf]
    %v3142 = vld [vmem:[%s3140 + $0x4] sm:$0xf]
    %v3143 = vld [vmem:[%s3140 + $0x8] sm:$0xf]
    %v3144 = vld [vmem:[%s3140 + $0xc] sm:$0xf]
    %v3145 = vld [vmem:[%s3140 + $0x10] sm:$0xf]
    %v3146 = vld [vmem:[%s3140 + $0x14] sm:$0xf]
    %v3147 = vld [vmem:[%s3140 + $0x18] sm:$0xf]
    %v3148 = vld [vmem:[%s3140 + $0x1c] sm:$0xf]
    %v3149 = vld [vmem:[%s3140 + $0x20] sm:$0xf]
    %v3150 = vld [vmem:[%s3140 + $0x24] sm:$0xf]
    %v3151 = vld [vmem:[%s3140 + $0x28] sm:$0xf]
    %v3152 = vld [vmem:[%s3140 + $0x2c] sm:$0xf]
    %v3153 = vld [vmem:[%s3140 + $0x30] sm:$0xf]
    %v3154 = vld [vmem:[%s3140 + $0x34] sm:$0xf]
    %v3155 = vld [vmem:[%s3140 + $0x38] sm:$0xf]
    %v3156 = vld [vmem:[%s3140 + $0x3c] sm:$0x3]
    %v3173 = vunpack.c.l.b16 %v3141
    %v3174 = vunpack.c.l.b16 %v3142
    %v3175 = vunpack.c.l.b16 %v3143
    %v3176 = vunpack.c.l.b16 %v3144
    %v3177 = vunpack.c.l.b16 %v3145
    %v3178 = vunpack.c.l.b16 %v3146
    %v3179 = vunpack.c.l.b16 %v3147
    %v3180 = vunpack.c.l.b16 %v3148
    %v3181 = vunpack.c.l.b16 %v3149
    %v3182 = vunpack.c.l.b16 %v3150
    %v3183 = vunpack.c.l.b16 %v3151
    %v3184 = vunpack.c.l.b16 %v3152
    %v3185 = vunpack.c.l.b16 %v3153
    %v3186 = vunpack.c.l.b16 %v3154
    %v3187 = vunpack.c.l.b16 %v3155
    %v3188 = vunpack.c.l.b16 %v3156
    %v3189 = vpack.c.b16 %v3174, %v3173
    %v3190 = vpack.c.b16 %v3176, %v3175
    %v3191 = vpack.c.b16 %v3178, %v3177
    %v3192 = vpack.c.b16 %v3180, %v3179
    %v3193 = vpack.c.b16 %v3182, %v3181
    %v3194 = vpack.c.b16 %v3184, %v3183
    %v3195 = vpack.c.b16 %v3186, %v3185
    %v3196 = vpack.c.b16 %v3188, %v3187
    %v3205 = vsel %vm783, %v3139, 0
    %v3208 = vand.u32 %v3196, %v1490
    %3210 = vmatprep.subr.bf16.mxu0 0
    %3211 = vmatpush1.bf16.msra.mxu0 %v3189
    %3212 = vmatprep.subr.bf16.mxu0 0
    %3213 = vmatpush1.bf16.msra.mxu0 %v3190
    %3214 = vmatprep.subr.bf16.mxu0 0
    %3215 = vmatpush1.bf16.msra.mxu0 %v3191
    %3216 = vmatprep.subr.bf16.mxu0 0
    %3217 = vmatpush1.bf16.msra.mxu0 %v3192
    %3218 = vmatprep.subr.bf16.mxu0 0
    %3219 = vmatpush1.bf16.msra.mxu0 %v3193
    %3220 = vmatprep.subr.bf16.mxu0 0
    %3221 = vmatpush1.bf16.msra.mxu0 %v3194
    %3222 = vmatprep.subr.bf16.mxu0 0
    %3223 = vmatpush1.bf16.msra.mxu0 %v3195
    %3224 = vmatprep.subr.bf16.mxu0 0
    %3225 = vmatpush1.bf16.msra.mxu0 %v3208
    %3226 = vmatprep.subr.bf16.mxu0 0
    %3227 = vmatpush1.bf16.msra.mxu0 0
    %3228 = vmatprep.subr.bf16.mxu0 0
    %3229 = vmatpush1.bf16.msra.mxu0 0
    %3230 = vmatprep.subr.bf16.mxu0 0
    %3231 = vmatpush1.bf16.msra.mxu0 0
    %3232 = vmatprep.subr.bf16.mxu0 0
    %3233 = vmatpush1.bf16.msra.mxu0 0
    %3234 = vmatprep.subr.bf16.mxu0 0
    %3235 = vmatpush1.bf16.msra.mxu0 0
    %3236 = vmatprep.subr.bf16.mxu0 0
    %3237 = vmatpush1.bf16.msra.mxu0 0
    %3238 = vmatprep.subr.bf16.mxu0 0
    %3239 = vmatpush1.bf16.msra.mxu0 0
    %3240 = vmatprep.subr.bf16.mxu0 0
    %3241 = vmatpush1.bf16.msra.mxu0 0
    %3242 = vmatprep.mubr.bf16.mxu0 0
    %3243 = vmatmul.mubr.bf16.gmra.mrb[0].mxu0 %v3205
    %v3244 = vpop.f32.mrb[0].mxu0
    %v3245 = vadd.f32 0.0, %v3244
    %v3246 = vpop.f32.mrb[0].mxu0
    %v3247 = vpop.f32.mrb[0].mxu0
    %v3248 = vpop.f32.mrb[0].mxu0
    %3249 = vdwg.mxu0
    %v3250 = vadd.f32 %v3134, %v3245
    %s3251 = scalar_lea.vmem [#allocation2], 16
    %v3252 = vld [vmem:[%s3251] ss:$32 sm:$0x1]
    %v3253 = vld [vmem:[%s3251] ss:$32 sm:$0x2]
    %v3254 = vor.u32 %v3252, %v3253
    %v3255 = vpack.c.bf16 %v3254, %v3254
    %s3256 = scalar_lea.vmem %s5, 1024
    %v3257 = vld [vmem:[%s3256] sm:$0xf]
    %v3258 = vld [vmem:[%s3256 + $0x4] sm:$0xf]
    %v3259 = vld [vmem:[%s3256 + $0x8] sm:$0xf]
    %v3260 = vld [vmem:[%s3256 + $0xc] sm:$0xf]
    %v3261 = vld [vmem:[%s3256 + $0x10] sm:$0xf]
    %v3262 = vld [vmem:[%s3256 + $0x14] sm:$0xf]
    %v3263 = vld [vmem:[%s3256 + $0x18] sm:$0xf]
    %v3264 = vld [vmem:[%s3256 + $0x1c] sm:$0xf]
    %v3265 = vld [vmem:[%s3256 + $0x20] sm:$0xf]
    %v3266 = vld [vmem:[%s3256 + $0x24] sm:$0xf]
    %v3267 = vld [vmem:[%s3256 + $0x28] sm:$0xf]
    %v3268 = vld [vmem:[%s3256 + $0x2c] sm:$0xf]
    %v3269 = vld [vmem:[%s3256 + $0x30] sm:$0xf]
    %v3270 = vld [vmem:[%s3256 + $0x34] sm:$0xf]
    %v3271 = vld [vmem:[%s3256 + $0x38] sm:$0xf]
    %v3272 = vld [vmem:[%s3256 + $0x3c] sm:$0x3]
    %v3289 = vunpack.c.l.b16 %v3257
    %v3290 = vunpack.c.l.b16 %v3258
    %v3291 = vunpack.c.l.b16 %v3259
    %v3292 = vunpack.c.l.b16 %v3260
    %v3293 = vunpack.c.l.b16 %v3261
    %v3294 = vunpack.c.l.b16 %v3262
    %v3295 = vunpack.c.l.b16 %v3263
    %v3296 = vunpack.c.l.b16 %v3264
    %v3297 = vunpack.c.l.b16 %v3265
    %v3298 = vunpack.c.l.b16 %v3266
    %v3299 = vunpack.c.l.b16 %v3267
    %v3300 = vunpack.c.l.b16 %v3268
    %v3301 = vunpack.c.l.b16 %v3269
    %v3302 = vunpack.c.l.b16 %v3270
    %v3303 = vunpack.c.l.b16 %v3271
    %v3304 = vunpack.c.l.b16 %v3272
    %v3305 = vpack.c.b16 %v3290, %v3289
    %v3306 = vpack.c.b16 %v3292, %v3291
    %v3307 = vpack.c.b16 %v3294, %v3293
    %v3308 = vpack.c.b16 %v3296, %v3295
    %v3309 = vpack.c.b16 %v3298, %v3297
    %v3310 = vpack.c.b16 %v3300, %v3299
    %v3311 = vpack.c.b16 %v3302, %v3301
    %v3312 = vpack.c.b16 %v3304, %v3303
    %v3321 = vsel %vm783, %v3255, 0
    %v3324 = vand.u32 %v3312, %v1490
    %3326 = vmatprep.subr.bf16.mxu0 0
    %3327 = vmatpush1.bf16.msra.mxu0 %v3305
    %3328 = vmatprep.subr.bf16.mxu0 0
    %3329 = vmatpush1.bf16.msra.mxu0 %v3306
    %3330 = vmatprep.subr.bf16.mxu0 0
    %3331 = vmatpush1.bf16.msra.mxu0 %v3307
    %3332 = vmatprep.subr.bf16.mxu0 0
    %3333 = vmatpush1.bf16.msra.mxu0 %v3308
    %3334 = vmatprep.subr.bf16.mxu0 0
    %3335 = vmatpush1.bf16.msra.mxu0 %v3309
    %3336 = vmatprep.subr.bf16.mxu0 0
    %3337 = vmatpush1.bf16.msra.mxu0 %v3310
    %3338 = vmatprep.subr.bf16.mxu0 0
    %3339 = vmatpush1.bf16.msra.mxu0 %v3311
    %3340 = vmatprep.subr.bf16.mxu0 0
    %3341 = vmatpush1.bf16.msra.mxu0 %v3324
    %3342 = vmatprep.subr.bf16.mxu0 0
    %3343 = vmatpush1.bf16.msra.mxu0 0
    %3344 = vmatprep.subr.bf16.mxu0 0
    %3345 = vmatpush1.bf16.msra.mxu0 0
    %3346 = vmatprep.subr.bf16.mxu0 0
    %3347 = vmatpush1.bf16.msra.mxu0 0
    %3348 = vmatprep.subr.bf16.mxu0 0
    %3349 = vmatpush1.bf16.msra.mxu0 0
    %3350 = vmatprep.subr.bf16.mxu0 0
    %3351 = vmatpush1.bf16.msra.mxu0 0
    %3352 = vmatprep.subr.bf16.mxu0 0
    %3353 = vmatpush1.bf16.msra.mxu0 0
    %3354 = vmatprep.subr.bf16.mxu0 0
    %3355 = vmatpush1.bf16.msra.mxu0 0
    %3356 = vmatprep.subr.bf16.mxu0 0
    %3357 = vmatpush1.bf16.msra.mxu0 0
    %3358 = vmatprep.mubr.bf16.mxu0 0
    %3359 = vmatmul.mubr.bf16.gmra.mrb[0].mxu0 %v3321
    %v3360 = vpop.f32.mrb[0].mxu0
    %v3361 = vadd.f32 0.0, %v3360
    %v3362 = vpop.f32.mrb[0].mxu0
    %v3363 = vpop.f32.mrb[0].mxu0
    %v3364 = vpop.f32.mrb[0].mxu0
    %3365 = vdwg.mxu0
    %v3366 = vadd.f32 %v3250, %v3361
    %s3367 = scalar_lea.vmem [#allocation2], 17
    %v3368 = vld [vmem:[%s3367] ss:$32 sm:$0x1]
    %v3369 = vld [vmem:[%s3367] ss:$32 sm:$0x2]
    %v3370 = vor.u32 %v3368, %v3369
    %v3371 = vpack.c.bf16 %v3370, %v3370
    %s3372 = scalar_lea.vmem %s5, 1088
    %v3373 = vld [vmem:[%s3372] sm:$0xf]
    %v3374 = vld [vmem:[%s3372 + $0x4] sm:$0xf]
    %v3375 = vld [vmem:[%s3372 + $0x8] sm:$0xf]
    %v3376 = vld [vmem:[%s3372 + $0xc] sm:$0xf]
    %v3377 = vld [vmem:[%s3372 + $0x10] sm:$0xf]
    %v3378 = vld [vmem:[%s3372 + $0x14] sm:$0xf]
    %v3379 = vld [vmem:[%s3372 + $0x18] sm:$0xf]
    %v3380 = vld [vmem:[%s3372 + $0x1c] sm:$0xf]
    %v3381 = vld [vmem:[%s3372 + $0x20] sm:$0xf]
    %v3382 = vld [vmem:[%s3372 + $0x24] sm:$0xf]
    %v3383 = vld [vmem:[%s3372 + $0x28] sm:$0xf]
    %v3384 = vld [vmem:[%s3372 + $0x2c] sm:$0xf]
    %v3385 = vld [vmem:[%s3372 + $0x30] sm:$0xf]
    %v3386 = vld [vmem:[%s3372 + $0x34] sm:$0xf]
    %v3387 = vld [vmem:[%s3372 + $0x38] sm:$0xf]
    %v3388 = vld [vmem:[%s3372 + $0x3c] sm:$0x3]
    %v3405 = vunpack.c.l.b16 %v3373
    %v3406 = vunpack.c.l.b16 %v3374
    %v3407 = vunpack.c.l.b16 %v3375
    %v3408 = vunpack.c.l.b16 %v3376
    %v3409 = vunpack.c.l.b16 %v3377
    %v3410 = vunpack.c.l.b16 %v3378
    %v3411 = vunpack.c.l.b16 %v3379
    %v3412 = vunpack.c.l.b16 %v3380
    %v3413 = vunpack.c.l.b16 %v3381
    %v3414 = vunpack.c.l.b16 %v3382
    %v3415 = vunpack.c.l.b16 %v3383
    %v3416 = vunpack.c.l.b16 %v3384
    %v3417 = vunpack.c.l.b16 %v3385
    %v3418 = vunpack.c.l.b16 %v3386
    %v3419 = vunpack.c.l.b16 %v3387
    %v3420 = vunpack.c.l.b16 %v3388
    %v3421 = vpack.c.b16 %v3406, %v3405
    %v3422 = vpack.c.b16 %v3408, %v3407
    %v3423 = vpack.c.b16 %v3410, %v3409
    %v3424 = vpack.c.b16 %v3412, %v3411
    %v3425 = vpack.c.b16 %v3414, %v3413
    %v3426 = vpack.c.b16 %v3416, %v3415
    %v3427 = vpack.c.b16 %v3418, %v3417
    %v3428 = vpack.c.b16 %v3420, %v3419
    %v3437 = vsel %vm783, %v3371, 0
    %v3440 = vand.u32 %v3428, %v1490
    %3442 = vmatprep.subr.bf16.mxu0 0
    %3443 = vmatpush1.bf16.msra.mxu0 %v3421
    %3444 = vmatprep.subr.bf16.mxu0 0
    %3445 = vmatpush1.bf16.msra.mxu0 %v3422
    %3446 = vmatprep.subr.bf16.mxu0 0
    %3447 = vmatpush1.bf16.msra.mxu0 %v3423
    %3448 = vmatprep.subr.bf16.mxu0 0
    %3449 = vmatpush1.bf16.msra.mxu0 %v3424
    %3450 = vmatprep.subr.bf16.mxu0 0
    %3451 = vmatpush1.bf16.msra.mxu0 %v3425
    %3452 = vmatprep.subr.bf16.mxu0 0
    %3453 = vmatpush1.bf16.msra.mxu0 %v3426
    %3454 = vmatprep.subr.bf16.mxu0 0
    %3455 = vmatpush1.bf16.msra.mxu0 %v3427
    %3456 = vmatprep.subr.bf16.mxu0 0
    %3457 = vmatpush1.bf16.msra.mxu0 %v3440
    %3458 = vmatprep.subr.bf16.mxu0 0
    %3459 = vmatpush1.bf16.msra.mxu0 0
    %3460 = vmatprep.subr.bf16.mxu0 0
    %3461 = vmatpush1.bf16.msra.mxu0 0
    %3462 = vmatprep.subr.bf16.mxu0 0
    %3463 = vmatpush1.bf16.msra.mxu0 0
    %3464 = vmatprep.subr.bf16.mxu0 0
    %3465 = vmatpush1.bf16.msra.mxu0 0
    %3466 = vmatprep.subr.bf16.mxu0 0
    %3467 = vmatpush1.bf16.msra.mxu0 0
    %3468 = vmatprep.subr.bf16.mxu0 0
    %3469 = vmatpush1.bf16.msra.mxu0 0
    %3470 = vmatprep.subr.bf16.mxu0 0
    %3471 = vmatpush1.bf16.msra.mxu0 0
    %3472 = vmatprep.subr.bf16.mxu0 0
    %3473 = vmatpush1.bf16.msra.mxu0 0
    %3474 = vmatprep.mubr.bf16.mxu0 0
    %3475 = vmatmul.mubr.bf16.gmra.mrb[0].mxu0 %v3437
    %v3476 = vpop.f32.mrb[0].mxu0
    %v3477 = vadd.f32 0.0, %v3476
    %v3478 = vpop.f32.mrb[0].mxu0
    %v3479 = vpop.f32.mrb[0].mxu0
    %v3480 = vpop.f32.mrb[0].mxu0
    %3481 = vdwg.mxu0
    %v3482 = vadd.f32 %v3366, %v3477
    %s3483 = scalar_lea.vmem [#allocation2], 18
    %v3484 = vld [vmem:[%s3483] ss:$32 sm:$0x1]
    %v3485 = vld [vmem:[%s3483] ss:$32 sm:$0x2]
    %v3486 = vor.u32 %v3484, %v3485
    %v3487 = vpack.c.bf16 %v3486, %v3486
    %s3488 = scalar_lea.vmem %s5, 1152
    %v3489 = vld [vmem:[%s3488] sm:$0xf]
    %v3490 = vld [vmem:[%s3488 + $0x4] sm:$0xf]
    %v3491 = vld [vmem:[%s3488 + $0x8] sm:$0xf]
    %v3492 = vld [vmem:[%s3488 + $0xc] sm:$0xf]
    %v3493 = vld [vmem:[%s3488 + $0x10] sm:$0xf]
    %v3494 = vld [vmem:[%s3488 + $0x14] sm:$0xf]
    %v3495 = vld [vmem:[%s3488 + $0x18] sm:$0xf]
    %v3496 = vld [vmem:[%s3488 + $0x1c] sm:$0xf]
    %v3497 = vld [vmem:[%s3488 + $0x20] sm:$0xf]
    %v3498 = vld [vmem:[%s3488 + $0x24] sm:$0xf]
    %v3499 = vld [vmem:[%s3488 + $0x28] sm:$0xf]
    %v3500 = vld [vmem:[%s3488 + $0x2c] sm:$0xf]
    %v3501 = vld [vmem:[%s3488 + $0x30] sm:$0xf]
    %v3502 = vld [vmem:[%s3488 + $0x34] sm:$0xf]
    %v3503 = vld [vmem:[%s3488 + $0x38] sm:$0xf]
    %v3504 = vld [vmem:[%s3488 + $0x3c] sm:$0x3]
    %v3521 = vunpack.c.l.b16 %v3489
    %v3522 = vunpack.c.l.b16 %v3490
    %v3523 = vunpack.c.l.b16 %v3491
    %v3524 = vunpack.c.l.b16 %v3492
    %v3525 = vunpack.c.l.b16 %v3493
    %v3526 = vunpack.c.l.b16 %v3494
    %v3527 = vunpack.c.l.b16 %v3495
    %v3528 = vunpack.c.l.b16 %v3496
    %v3529 = vunpack.c.l.b16 %v3497
    %v3530 = vunpack.c.l.b16 %v3498
    %v3531 = vunpack.c.l.b16 %v3499
    %v3532 = vunpack.c.l.b16 %v3500
    %v3533 = vunpack.c.l.b16 %v3501
    %v3534 = vunpack.c.l.b16 %v3502
    %v3535 = vunpack.c.l.b16 %v3503
    %v3536 = vunpack.c.l.b16 %v3504
    %v3537 = vpack.c.b16 %v3522, %v3521
    %v3538 = vpack.c.b16 %v3524, %v3523
    %v3539 = vpack.c.b16 %v3526, %v3525
    %v3540 = vpack.c.b16 %v3528, %v3527
    %v3541 = vpack.c.b16 %v3530, %v3529
    %v3542 = vpack.c.b16 %v3532, %v3531
    %v3543 = vpack.c.b16 %v3534, %v3533
    %v3544 = vpack.c.b16 %v3536, %v3535
    %v3553 = vsel %vm783, %v3487, 0
    %v3556 = vand.u32 %v3544, %v1490
    %3558 = vmatprep.subr.bf16.mxu0 0
    %3559 = vmatpush1.bf16.msra.mxu0 %v3537
    %3560 = vmatprep.subr.bf16.mxu0 0
    %3561 = vmatpush1.bf16.msra.mxu0 %v3538
    %3562 = vmatprep.subr.bf16.mxu0 0
    %3563 = vmatpush1.bf16.msra.mxu0 %v3539
    %3564 = vmatprep.subr.bf16.mxu0 0
    %3565 = vmatpush1.bf16.msra.mxu0 %v3540
    %3566 = vmatprep.subr.bf16.mxu0 0
    %3567 = vmatpush1.bf16.msra.mxu0 %v3541
    %3568 = vmatprep.subr.bf16.mxu0 0
    %3569 = vmatpush1.bf16.msra.mxu0 %v3542
    %3570 = vmatprep.subr.bf16.mxu0 0
    %3571 = vmatpush1.bf16.msra.mxu0 %v3543
    %3572 = vmatprep.subr.bf16.mxu0 0
    %3573 = vmatpush1.bf16.msra.mxu0 %v3556
    %3574 = vmatprep.subr.bf16.mxu0 0
    %3575 = vmatpush1.bf16.msra.mxu0 0
    %3576 = vmatprep.subr.bf16.mxu0 0
    %3577 = vmatpush1.bf16.msra.mxu0 0
    %3578 = vmatprep.subr.bf16.mxu0 0
    %3579 = vmatpush1.bf16.msra.mxu0 0
    %3580 = vmatprep.subr.bf16.mxu0 0
    %3581 = vmatpush1.bf16.msra.mxu0 0
    %3582 = vmatprep.subr.bf16.mxu0 0
    %3583 = vmatpush1.bf16.msra.mxu0 0
    %3584 = vmatprep.subr.bf16.mxu0 0
    %3585 = vmatpush1.bf16.msra.mxu0 0
    %3586 = vmatprep.subr.bf16.mxu0 0
    %3587 = vmatpush1.bf16.msra.mxu0 0
    %3588 = vmatprep.subr.bf16.mxu0 0
    %3589 = vmatpush1.bf16.msra.mxu0 0
    %3590 = vmatprep.mubr.bf16.mxu0 0
    %3591 = vmatmul.mubr.bf16.gmra.mrb[0].mxu0 %v3553
    %v3592 = vpop.f32.mrb[0].mxu0
    %v3593 = vadd.f32 0.0, %v3592
    %v3594 = vpop.f32.mrb[0].mxu0
    %v3595 = vpop.f32.mrb[0].mxu0
    %v3596 = vpop.f32.mrb[0].mxu0
    %3597 = vdwg.mxu0
    %v3598 = vadd.f32 %v3482, %v3593
    %s3599 = scalar_lea.vmem [#allocation2], 19
    %v3600 = vld [vmem:[%s3599] ss:$32 sm:$0x1]
    %v3601 = vld [vmem:[%s3599] ss:$32 sm:$0x2]
    %v3602 = vor.u32 %v3600, %v3601
    %v3603 = vpack.c.bf16 %v3602, %v3602
    %s3604 = scalar_lea.vmem %s5, 1216
    %v3605 = vld [vmem:[%s3604] sm:$0xf]
    %v3606 = vld [vmem:[%s3604 + $0x4] sm:$0xf]
    %v3607 = vld [vmem:[%s3604 + $0x8] sm:$0xf]
    %v3608 = vld [vmem:[%s3604 + $0xc] sm:$0xf]
    %v3609 = vld [vmem:[%s3604 + $0x10] sm:$0xf]
    %v3610 = vld [vmem:[%s3604 + $0x14] sm:$0xf]
    %v3611 = vld [vmem:[%s3604 + $0x18] sm:$0xf]
    %v3612 = vld [vmem:[%s3604 + $0x1c] sm:$0xf]
    %v3613 = vld [vmem:[%s3604 + $0x20] sm:$0xf]
    %v3614 = vld [vmem:[%s3604 + $0x24] sm:$0xf]
    %v3615 = vld [vmem:[%s3604 + $0x28] sm:$0xf]
    %v3616 = vld [vmem:[%s3604 + $0x2c] sm:$0xf]
    %v3617 = vld [vmem:[%s3604 + $0x30] sm:$0xf]
    %v3618 = vld [vmem:[%s3604 + $0x34] sm:$0xf]
    %v3619 = vld [vmem:[%s3604 + $0x38] sm:$0xf]
    %v3620 = vld [vmem:[%s3604 + $0x3c] sm:$0x3]
    %v3637 = vunpack.c.l.b16 %v3605
    %v3638 = vunpack.c.l.b16 %v3606
    %v3639 = vunpack.c.l.b16 %v3607
    %v3640 = vunpack.c.l.b16 %v3608
    %v3641 = vunpack.c.l.b16 %v3609
    %v3642 = vunpack.c.l.b16 %v3610
    %v3643 = vunpack.c.l.b16 %v3611
    %v3644 = vunpack.c.l.b16 %v3612
    %v3645 = vunpack.c.l.b16 %v3613
    %v3646 = vunpack.c.l.b16 %v3614
    %v3647 = vunpack.c.l.b16 %v3615
    %v3648 = vunpack.c.l.b16 %v3616
    %v3649 = vunpack.c.l.b16 %v3617
    %v3650 = vunpack.c.l.b16 %v3618
    %v3651 = vunpack.c.l.b16 %v3619
    %v3652 = vunpack.c.l.b16 %v3620
    %v3653 = vpack.c.b16 %v3638, %v3637
    %v3654 = vpack.c.b16 %v3640, %v3639
    %v3655 = vpack.c.b16 %v3642, %v3641
    %v3656 = vpack.c.b16 %v3644, %v3643
    %v3657 = vpack.c.b16 %v3646, %v3645
    %v3658 = vpack.c.b16 %v3648, %v3647
    %v3659 = vpack.c.b16 %v3650, %v3649
    %v3660 = vpack.c.b16 %v3652, %v3651
    %v3669 = vsel %vm783, %v3603, 0
    %v3672 = vand.u32 %v3660, %v1490
    %3674 = vmatprep.subr.bf16.mxu0 0
    %3675 = vmatpush1.bf16.msra.mxu0 %v3653
    %3676 = vmatprep.subr.bf16.mxu0 0
    %3677 = vmatpush1.bf16.msra.mxu0 %v3654
    %3678 = vmatprep.subr.bf16.mxu0 0
    %3679 = vmatpush1.bf16.msra.mxu0 %v3655
    %3680 = vmatprep.subr.bf16.mxu0 0
    %3681 = vmatpush1.bf16.msra.mxu0 %v3656
    %3682 = vmatprep.subr.bf16.mxu0 0
    %3683 = vmatpush1.bf16.msra.mxu0 %v3657
    %3684 = vmatprep.subr.bf16.mxu0 0
    %3685 = vmatpush1.bf16.msra.mxu0 %v3658
    %3686 = vmatprep.subr.bf16.mxu0 0
    %3687 = vmatpush1.bf16.msra.mxu0 %v3659
    %3688 = vmatprep.subr.bf16.mxu0 0
    %3689 = vmatpush1.bf16.msra.mxu0 %v3672
    %3690 = vmatprep.subr.bf16.mxu0 0
    %3691 = vmatpush1.bf16.msra.mxu0 0
    %3692 = vmatprep.subr.bf16.mxu0 0
    %3693 = vmatpush1.bf16.msra.mxu0 0
    %3694 = vmatprep.subr.bf16.mxu0 0
    %3695 = vmatpush1.bf16.msra.mxu0 0
    %3696 = vmatprep.subr.bf16.mxu0 0
    %3697 = vmatpush1.bf16.msra.mxu0 0
    %3698 = vmatprep.subr.bf16.mxu0 0
    %3699 = vmatpush1.bf16.msra.mxu0 0
    %3700 = vmatprep.subr.bf16.mxu0 0
    %3701 = vmatpush1.bf16.msra.mxu0 0
    %3702 = vmatprep.subr.bf16.mxu0 0
    %3703 = vmatpush1.bf16.msra.mxu0 0
    %3704 = vmatprep.subr.bf16.mxu0 0
    %3705 = vmatpush1.bf16.msra.mxu0 0
    %3706 = vmatprep.mubr.bf16.mxu0 0
    %3707 = vmatmul.mubr.bf16.gmra.mrb[0].mxu0 %v3669
    %v3708 = vpop.f32.mrb[0].mxu0
    %v3709 = vadd.f32 0.0, %v3708
    %v3710 = vpop.f32.mrb[0].mxu0
    %v3711 = vpop.f32.mrb[0].mxu0
    %v3712 = vpop.f32.mrb[0].mxu0
    %3713 = vdwg.mxu0
    %v3714 = vadd.f32 %v3598, %v3709
    %s3715 = scalar_lea.vmem [#allocation2], 20
    %v3716 = vld [vmem:[%s3715] ss:$32 sm:$0x1]
    %v3717 = vld [vmem:[%s3715] ss:$32 sm:$0x2]
    %v3718 = vor.u32 %v3716, %v3717
    %v3719 = vpack.c.bf16 %v3718, %v3718
    %s3720 = scalar_lea.vmem %s5, 1280
    %v3721 = vld [vmem:[%s3720] sm:$0xf]
    %v3722 = vld [vmem:[%s3720 + $0x4] sm:$0xf]
    %v3723 = vld [vmem:[%s3720 + $0x8] sm:$0xf]
    %v3724 = vld [vmem:[%s3720 + $0xc] sm:$0xf]
    %v3725 = vld [vmem:[%s3720 + $0x10] sm:$0xf]
    %v3726 = vld [vmem:[%s3720 + $0x14] sm:$0xf]
    %v3727 = vld [vmem:[%s3720 + $0x18] sm:$0xf]
    %v3728 = vld [vmem:[%s3720 + $0x1c] sm:$0xf]
    %v3729 = vld [vmem:[%s3720 + $0x20] sm:$0xf]
    %v3730 = vld [vmem:[%s3720 + $0x24] sm:$0xf]
    %v3731 = vld [vmem:[%s3720 + $0x28] sm:$0xf]
    %v3732 = vld [vmem:[%s3720 + $0x2c] sm:$0xf]
    %v3733 = vld [vmem:[%s3720 + $0x30] sm:$0xf]
    %v3734 = vld [vmem:[%s3720 + $0x34] sm:$0xf]
    %v3735 = vld [vmem:[%s3720 + $0x38] sm:$0xf]
    %v3736 = vld [vmem:[%s3720 + $0x3c] sm:$0x3]
    %v3753 = vunpack.c.l.b16 %v3721
    %v3754 = vunpack.c.l.b16 %v3722
    %v3755 = vunpack.c.l.b16 %v3723
    %v3756 = vunpack.c.l.b16 %v3724
    %v3757 = vunpack.c.l.b16 %v3725
    %v3758 = vunpack.c.l.b16 %v3726
    %v3759 = vunpack.c.l.b16 %v3727
    %v3760 = vunpack.c.l.b16 %v3728
    %v3761 = vunpack.c.l.b16 %v3729
    %v3762 = vunpack.c.l.b16 %v3730
    %v3763 = vunpack.c.l.b16 %v3731
    %v3764 = vunpack.c.l.b16 %v3732
    %v3765 = vunpack.c.l.b16 %v3733
    %v3766 = vunpack.c.l.b16 %v3734
    %v3767 = vunpack.c.l.b16 %v3735
    %v3768 = vunpack.c.l.b16 %v3736
    %v3769 = vpack.c.b16 %v3754, %v3753
    %v3770 = vpack.c.b16 %v3756, %v3755
    %v3771 = vpack.c.b16 %v3758, %v3757
    %v3772 = vpack.c.b16 %v3760, %v3759
    %v3773 = vpack.c.b16 %v3762, %v3761
    %v3774 = vpack.c.b16 %v3764, %v3763
    %v3775 = vpack.c.b16 %v3766, %v3765
    %v3776 = vpack.c.b16 %v3768, %v3767
    %v3785 = vsel %vm783, %v3719, 0
    %v3788 = vand.u32 %v3776, %v1490
    %3790 = vmatprep.subr.bf16.mxu0 0
    %3791 = vmatpush1.bf16.msra.mxu0 %v3769
    %3792 = vmatprep.subr.bf16.mxu0 0
    %3793 = vmatpush1.bf16.msra.mxu0 %v3770
    %3794 = vmatprep.subr.bf16.mxu0 0
    %3795 = vmatpush1.bf16.msra.mxu0 %v3771
    %3796 = vmatprep.subr.bf16.mxu0 0
    %3797 = vmatpush1.bf16.msra.mxu0 %v3772
    %3798 = vmatprep.subr.bf16.mxu0 0
    %3799 = vmatpush1.bf16.msra.mxu0 %v3773
    %3800 = vmatprep.subr.bf16.mxu0 0
    %3801 = vmatpush1.bf16.msra.mxu0 %v3774
    %3802 = vmatprep.subr.bf16.mxu0 0
    %3803 = vmatpush1.bf16.msra.mxu0 %v3775
    %3804 = vmatprep.subr.bf16.mxu0 0
    %3805 = vmatpush1.bf16.msra.mxu0 %v3788
    %3806 = vmatprep.subr.bf16.mxu0 0
    %3807 = vmatpush1.bf16.msra.mxu0 0
    %3808 = vmatprep.subr.bf16.mxu0 0
    %3809 = vmatpush1.bf16.msra.mxu0 0
    %3810 = vmatprep.subr.bf16.mxu0 0
    %3811 = vmatpush1.bf16.msra.mxu0 0
    %3812 = vmatprep.subr.bf16.mxu0 0
    %3813 = vmatpush1.bf16.msra.mxu0 0
    %3814 = vmatprep.subr.bf16.mxu0 0
    %3815 = vmatpush1.bf16.msra.mxu0 0
    %3816 = vmatprep.subr.bf16.mxu0 0
    %3817 = vmatpush1.bf16.msra.mxu0 0
    %3818 = vmatprep.subr.bf16.mxu0 0
    %3819 = vmatpush1.bf16.msra.mxu0 0
    %3820 = vmatprep.subr.bf16.mxu0 0
    %3821 = vmatpush1.bf16.msra.mxu0 0
    %3822 = vmatprep.mubr.bf16.mxu0 0
    %3823 = vmatmul.mubr.bf16.gmra.mrb[0].mxu0 %v3785
    %v3824 = vpop.f32.mrb[0].mxu0
    %v3825 = vadd.f32 0.0, %v3824
    %v3826 = vpop.f32.mrb[0].mxu0
    %v3827 = vpop.f32.mrb[0].mxu0
    %v3828 = vpop.f32.mrb[0].mxu0
    %3829 = vdwg.mxu0
    %v3830 = vadd.f32 %v3714, %v3825
    %s3831 = scalar_lea.vmem [#allocation2], 21
    %v3832 = vld [vmem:[%s3831] ss:$32 sm:$0x1]
    %v3833 = vld [vmem:[%s3831] ss:$32 sm:$0x2]
    %v3834 = vor.u32 %v3832, %v3833
    %v3835 = vpack.c.bf16 %v3834, %v3834
    %s3836 = scalar_lea.vmem %s5, 1344
    %v3837 = vld [vmem:[%s3836] sm:$0xf]
    %v3838 = vld [vmem:[%s3836 + $0x4] sm:$0xf]
    %v3839 = vld [vmem:[%s3836 + $0x8] sm:$0xf]
    %v3840 = vld [vmem:[%s3836 + $0xc] sm:$0xf]
    %v3841 = vld [vmem:[%s3836 + $0x10] sm:$0xf]
    %v3842 = vld [vmem:[%s3836 + $0x14] sm:$0xf]
    %v3843 = vld [vmem:[%s3836 + $0x18] sm:$0xf]
    %v3844 = vld [vmem:[%s3836 + $0x1c] sm:$0xf]
    %v3845 = vld [vmem:[%s3836 + $0x20] sm:$0xf]
    %v3846 = vld [vmem:[%s3836 + $0x24] sm:$0xf]
    %v3847 = vld [vmem:[%s3836 + $0x28] sm:$0xf]
    %v3848 = vld [vmem:[%s3836 + $0x2c] sm:$0xf]
    %v3849 = vld [vmem:[%s3836 + $0x30] sm:$0xf]
    %v3850 = vld [vmem:[%s3836 + $0x34] sm:$0xf]
    %v3851 = vld [vmem:[%s3836 + $0x38] sm:$0xf]
    %v3852 = vld [vmem:[%s3836 + $0x3c] sm:$0x3]
    %v3869 = vunpack.c.l.b16 %v3837
    %v3870 = vunpack.c.l.b16 %v3838
    %v3871 = vunpack.c.l.b16 %v3839
    %v3872 = vunpack.c.l.b16 %v3840
    %v3873 = vunpack.c.l.b16 %v3841
    %v3874 = vunpack.c.l.b16 %v3842
    %v3875 = vunpack.c.l.b16 %v3843
    %v3876 = vunpack.c.l.b16 %v3844
    %v3877 = vunpack.c.l.b16 %v3845
    %v3878 = vunpack.c.l.b16 %v3846
    %v3879 = vunpack.c.l.b16 %v3847
    %v3880 = vunpack.c.l.b16 %v3848
    %v3881 = vunpack.c.l.b16 %v3849
    %v3882 = vunpack.c.l.b16 %v3850
    %v3883 = vunpack.c.l.b16 %v3851
    %v3884 = vunpack.c.l.b16 %v3852
    %v3885 = vpack.c.b16 %v3870, %v3869
    %v3886 = vpack.c.b16 %v3872, %v3871
    %v3887 = vpack.c.b16 %v3874, %v3873
    %v3888 = vpack.c.b16 %v3876, %v3875
    %v3889 = vpack.c.b16 %v3878, %v3877
    %v3890 = vpack.c.b16 %v3880, %v3879
    %v3891 = vpack.c.b16 %v3882, %v3881
    %v3892 = vpack.c.b16 %v3884, %v3883
    %v3901 = vsel %vm783, %v3835, 0
    %v3904 = vand.u32 %v3892, %v1490
    %3906 = vmatprep.subr.bf16.mxu0 0
    %3907 = vmatpush1.bf16.msra.mxu0 %v3885
    %3908 = vmatprep.subr.bf16.mxu0 0
    %3909 = vmatpush1.bf16.msra.mxu0 %v3886
    %3910 = vmatprep.subr.bf16.mxu0 0
    %3911 = vmatpush1.bf16.msra.mxu0 %v3887
    %3912 = vmatprep.subr.bf16.mxu0 0
    %3913 = vmatpush1.bf16.msra.mxu0 %v3888
    %3914 = vmatprep.subr.bf16.mxu0 0
    %3915 = vmatpush1.bf16.msra.mxu0 %v3889
    %3916 = vmatprep.subr.bf16.mxu0 0
    %3917 = vmatpush1.bf16.msra.mxu0 %v3890
    %3918 = vmatprep.subr.bf16.mxu0 0
    %3919 = vmatpush1.bf16.msra.mxu0 %v3891
    %3920 = vmatprep.subr.bf16.mxu0 0
    %3921 = vmatpush1.bf16.msra.mxu0 %v3904
    %3922 = vmatprep.subr.bf16.mxu0 0
    %3923 = vmatpush1.bf16.msra.mxu0 0
    %3924 = vmatprep.subr.bf16.mxu0 0
    %3925 = vmatpush1.bf16.msra.mxu0 0
    %3926 = vmatprep.subr.bf16.mxu0 0
    %3927 = vmatpush1.bf16.msra.mxu0 0
    %3928 = vmatprep.subr.bf16.mxu0 0
    %3929 = vmatpush1.bf16.msra.mxu0 0
    %3930 = vmatprep.subr.bf16.mxu0 0
    %3931 = vmatpush1.bf16.msra.mxu0 0
    %3932 = vmatprep.subr.bf16.mxu0 0
    %3933 = vmatpush1.bf16.msra.mxu0 0
    %3934 = vmatprep.subr.bf16.mxu0 0
    %3935 = vmatpush1.bf16.msra.mxu0 0
    %3936 = vmatprep.subr.bf16.mxu0 0
    %3937 = vmatpush1.bf16.msra.mxu0 0
    %3938 = vmatprep.mubr.bf16.mxu0 0
    %3939 = vmatmul.mubr.bf16.gmra.mrb[0].mxu0 %v3901
    %v3940 = vpop.f32.mrb[0].mxu0
    %v3941 = vadd.f32 0.0, %v3940
    %v3942 = vpop.f32.mrb[0].mxu0
    %v3943 = vpop.f32.mrb[0].mxu0
    %v3944 = vpop.f32.mrb[0].mxu0
    %3945 = vdwg.mxu0
    %v3946 = vadd.f32 %v3830, %v3941
    %s3947 = scalar_lea.vmem [#allocation2], 22
    %v3948 = vld [vmem:[%s3947] ss:$32 sm:$0x1]
    %v3949 = vld [vmem:[%s3947] ss:$32 sm:$0x2]
    %v3950 = vor.u32 %v3948, %v3949
    %v3951 = vpack.c.bf16 %v3950, %v3950
    %s3952 = scalar_lea.vmem %s5, 1408
    %v3953 = vld [vmem:[%s3952] sm:$0xf]
    %v3954 = vld [vmem:[%s3952 + $0x4] sm:$0xf]
    %v3955 = vld [vmem:[%s3952 + $0x8] sm:$0xf]
    %v3956 = vld [vmem:[%s3952 + $0xc] sm:$0xf]
    %v3957 = vld [vmem:[%s3952 + $0x10] sm:$0xf]
    %v3958 = vld [vmem:[%s3952 + $0x14] sm:$0xf]
    %v3959 = vld [vmem:[%s3952 + $0x18] sm:$0xf]
    %v3960 = vld [vmem:[%s3952 + $0x1c] sm:$0xf]
    %v3961 = vld [vmem:[%s3952 + $0x20] sm:$0xf]
    %v3962 = vld [vmem:[%s3952 + $0x24] sm:$0xf]
    %v3963 = vld [vmem:[%s3952 + $0x28] sm:$0xf]
    %v3964 = vld [vmem:[%s3952 + $0x2c] sm:$0xf]
    %v3965 = vld [vmem:[%s3952 + $0x30] sm:$0xf]
    %v3966 = vld [vmem:[%s3952 + $0x34] sm:$0xf]
    %v3967 = vld [vmem:[%s3952 + $0x38] sm:$0xf]
    %v3968 = vld [vmem:[%s3952 + $0x3c] sm:$0x3]
    %v3985 = vunpack.c.l.b16 %v3953
    %v3986 = vunpack.c.l.b16 %v3954
    %v3987 = vunpack.c.l.b16 %v3955
    %v3988 = vunpack.c.l.b16 %v3956
    %v3989 = vunpack.c.l.b16 %v3957
    %v3990 = vunpack.c.l.b16 %v3958
    %v3991 = vunpack.c.l.b16 %v3959
    %v3992 = vunpack.c.l.b16 %v3960
    %v3993 = vunpack.c.l.b16 %v3961
    %v3994 = vunpack.c.l.b16 %v3962
    %v3995 = vunpack.c.l.b16 %v3963
    %v3996 = vunpack.c.l.b16 %v3964
    %v3997 = vunpack.c.l.b16 %v3965
    %v3998 = vunpack.c.l.b16 %v3966
    %v3999 = vunpack.c.l.b16 %v3967
    %v4000 = vunpack.c.l.b16 %v3968
    %v4001 = vpack.c.b16 %v3986, %v3985
    %v4002 = vpack.c.b16 %v3988, %v3987
    %v4003 = vpack.c.b16 %v3990, %v3989
    %v4004 = vpack.c.b16 %v3992, %v3991
    %v4005 = vpack.c.b16 %v3994, %v3993
    %v4006 = vpack.c.b16 %v3996, %v3995
    %v4007 = vpack.c.b16 %v3998, %v3997
    %v4008 = vpack.c.b16 %v4000, %v3999
    %v4017 = vsel %vm783, %v3951, 0
    %v4020 = vand.u32 %v4008, %v1490
    %4022 = vmatprep.subr.bf16.mxu0 0
    %4023 = vmatpush1.bf16.msra.mxu0 %v4001
    %4024 = vmatprep.subr.bf16.mxu0 0
    %4025 = vmatpush1.bf16.msra.mxu0 %v4002
    %4026 = vmatprep.subr.bf16.mxu0 0
    %4027 = vmatpush1.bf16.msra.mxu0 %v4003
    %4028 = vmatprep.subr.bf16.mxu0 0
    %4029 = vmatpush1.bf16.msra.mxu0 %v4004
    %4030 = vmatprep.subr.bf16.mxu0 0
    %4031 = vmatpush1.bf16.msra.mxu0 %v4005
    %4032 = vmatprep.subr.bf16.mxu0 0
    %4033 = vmatpush1.bf16.msra.mxu0 %v4006
    %4034 = vmatprep.subr.bf16.mxu0 0
    %4035 = vmatpush1.bf16.msra.mxu0 %v4007
    %4036 = vmatprep.subr.bf16.mxu0 0
    %4037 = vmatpush1.bf16.msra.mxu0 %v4020
    %4038 = vmatprep.subr.bf16.mxu0 0
    %4039 = vmatpush1.bf16.msra.mxu0 0
    %4040 = vmatprep.subr.bf16.mxu0 0
    %4041 = vmatpush1.bf16.msra.mxu0 0
    %4042 = vmatprep.subr.bf16.mxu0 0
    %4043 = vmatpush1.bf16.msra.mxu0 0
    %4044 = vmatprep.subr.bf16.mxu0 0
    %4045 = vmatpush1.bf16.msra.mxu0 0
    %4046 = vmatprep.subr.bf16.mxu0 0
    %4047 = vmatpush1.bf16.msra.mxu0 0
    %4048 = vmatprep.subr.bf16.mxu0 0
    %4049 = vmatpush1.bf16.msra.mxu0 0
    %4050 = vmatprep.subr.bf16.mxu0 0
    %4051 = vmatpush1.bf16.msra.mxu0 0
    %4052 = vmatprep.subr.bf16.mxu0 0
    %4053 = vmatpush1.bf16.msra.mxu0 0
    %4054 = vmatprep.mubr.bf16.mxu0 0
    %4055 = vmatmul.mubr.bf16.gmra.mrb[0].mxu0 %v4017
    %v4056 = vpop.f32.mrb[0].mxu0
    %v4057 = vadd.f32 0.0, %v4056
    %v4058 = vpop.f32.mrb[0].mxu0
    %v4059 = vpop.f32.mrb[0].mxu0
    %v4060 = vpop.f32.mrb[0].mxu0
    %4061 = vdwg.mxu0
    %v4062 = vadd.f32 %v3946, %v4057
    %s4063 = scalar_lea.vmem [#allocation2], 23
    %v4064 = vld [vmem:[%s4063] ss:$32 sm:$0x1]
    %v4065 = vld [vmem:[%s4063] ss:$32 sm:$0x2]
    %v4066 = vor.u32 %v4064, %v4065
    %v4067 = vpack.c.bf16 %v4066, %v4066
    %s4068 = scalar_lea.vmem %s5, 1472
    %v4069 = vld [vmem:[%s4068] sm:$0xf]
    %v4070 = vld [vmem:[%s4068 + $0x4] sm:$0xf]
    %v4071 = vld [vmem:[%s4068 + $0x8] sm:$0xf]
    %v4072 = vld [vmem:[%s4068 + $0xc] sm:$0xf]
    %v4073 = vld [vmem:[%s4068 + $0x10] sm:$0xf]
    %v4074 = vld [vmem:[%s4068 + $0x14] sm:$0xf]
    %v4075 = vld [vmem:[%s4068 + $0x18] sm:$0xf]
    %v4076 = vld [vmem:[%s4068 + $0x1c] sm:$0xf]
    %v4077 = vld [vmem:[%s4068 + $0x20] sm:$0xf]
    %v4078 = vld [vmem:[%s4068 + $0x24] sm:$0xf]
    %v4079 = vld [vmem:[%s4068 + $0x28] sm:$0xf]
    %v4080 = vld [vmem:[%s4068 + $0x2c] sm:$0xf]
    %v4081 = vld [vmem:[%s4068 + $0x30] sm:$0xf]
    %v4082 = vld [vmem:[%s4068 + $0x34] sm:$0xf]
    %v4083 = vld [vmem:[%s4068 + $0x38] sm:$0xf]
    %v4084 = vld [vmem:[%s4068 + $0x3c] sm:$0x3]
    %v4101 = vunpack.c.l.b16 %v4069
    %v4102 = vunpack.c.l.b16 %v4070
    %v4103 = vunpack.c.l.b16 %v4071
    %v4104 = vunpack.c.l.b16 %v4072
    %v4105 = vunpack.c.l.b16 %v4073
    %v4106 = vunpack.c.l.b16 %v4074
    %v4107 = vunpack.c.l.b16 %v4075
    %v4108 = vunpack.c.l.b16 %v4076
    %v4109 = vunpack.c.l.b16 %v4077
    %v4110 = vunpack.c.l.b16 %v4078
    %v4111 = vunpack.c.l.b16 %v4079
    %v4112 = vunpack.c.l.b16 %v4080
    %v4113 = vunpack.c.l.b16 %v4081
    %v4114 = vunpack.c.l.b16 %v4082
    %v4115 = vunpack.c.l.b16 %v4083
    %v4116 = vunpack.c.l.b16 %v4084
    %v4117 = vpack.c.b16 %v4102, %v4101
    %v4118 = vpack.c.b16 %v4104, %v4103
    %v4119 = vpack.c.b16 %v4106, %v4105
    %v4120 = vpack.c.b16 %v4108, %v4107
    %v4121 = vpack.c.b16 %v4110, %v4109
    %v4122 = vpack.c.b16 %v4112, %v4111
    %v4123 = vpack.c.b16 %v4114, %v4113
    %v4124 = vpack.c.b16 %v4116, %v4115
    %v4133 = vsel %vm783, %v4067, 0
    %v4136 = vand.u32 %v4124, %v1490
    %4138 = vmatprep.subr.bf16.mxu0 0
    %4139 = vmatpush1.bf16.msra.mxu0 %v4117
    %4140 = vmatprep.subr.bf16.mxu0 0
    %4141 = vmatpush1.bf16.msra.mxu0 %v4118
    %4142 = vmatprep.subr.bf16.mxu0 0
    %4143 = vmatpush1.bf16.msra.mxu0 %v4119
    %4144 = vmatprep.subr.bf16.mxu0 0
    %4145 = vmatpush1.bf16.msra.mxu0 %v4120
    %4146 = vmatprep.subr.bf16.mxu0 0
    %4147 = vmatpush1.bf16.msra.mxu0 %v4121
    %4148 = vmatprep.subr.bf16.mxu0 0
    %4149 = vmatpush1.bf16.msra.mxu0 %v4122
    %4150 = vmatprep.subr.bf16.mxu0 0
    %4151 = vmatpush1.bf16.msra.mxu0 %v4123
    %4152 = vmatprep.subr.bf16.mxu0 0
    %4153 = vmatpush1.bf16.msra.mxu0 %v4136
    %4154 = vmatprep.subr.bf16.mxu0 0
    %4155 = vmatpush1.bf16.msra.mxu0 0
    %4156 = vmatprep.subr.bf16.mxu0 0
    %4157 = vmatpush1.bf16.msra.mxu0 0
    %4158 = vmatprep.subr.bf16.mxu0 0
    %4159 = vmatpush1.bf16.msra.mxu0 0
    %4160 = vmatprep.subr.bf16.mxu0 0
    %4161 = vmatpush1.bf16.msra.mxu0 0
    %4162 = vmatprep.subr.bf16.mxu0 0
    %4163 = vmatpush1.bf16.msra.mxu0 0
    %4164 = vmatprep.subr.bf16.mxu0 0
    %4165 = vmatpush1.bf16.msra.mxu0 0
    %4166 = vmatprep.subr.bf16.mxu0 0
    %4167 = vmatpush1.bf16.msra.mxu0 0
    %4168 = vmatprep.subr.bf16.mxu0 0
    %4169 = vmatpush1.bf16.msra.mxu0 0
    %4170 = vmatprep.mubr.bf16.mxu0 0
    %4171 = vmatmul.mubr.bf16.gmra.mrb[0].mxu0 %v4133
    %v4172 = vpop.f32.mrb[0].mxu0
    %v4173 = vadd.f32 0.0, %v4172
    %v4174 = vpop.f32.mrb[0].mxu0
    %v4175 = vpop.f32.mrb[0].mxu0
    %v4176 = vpop.f32.mrb[0].mxu0
    %4177 = vdwg.mxu0
    %v4178 = vadd.f32 %v4062, %v4173
    %s4179 = scalar_lea.vmem [#allocation2], 24
    %v4180 = vld [vmem:[%s4179] ss:$32 sm:$0x1]
    %v4181 = vld [vmem:[%s4179] ss:$32 sm:$0x2]
    %v4182 = vor.u32 %v4180, %v4181
    %v4183 = vpack.c.bf16 %v4182, %v4182
    %s4184 = scalar_lea.vmem %s5, 1536
    %v4185 = vld [vmem:[%s4184] sm:$0xf]
    %v4186 = vld [vmem:[%s4184 + $0x4] sm:$0xf]
    %v4187 = vld [vmem:[%s4184 + $0x8] sm:$0xf]
    %v4188 = vld [vmem:[%s4184 + $0xc] sm:$0xf]
    %v4189 = vld [vmem:[%s4184 + $0x10] sm:$0xf]
    %v4190 = vld [vmem:[%s4184 + $0x14] sm:$0xf]
    %v4191 = vld [vmem:[%s4184 + $0x18] sm:$0xf]
    %v4192 = vld [vmem:[%s4184 + $0x1c] sm:$0xf]
    %v4193 = vld [vmem:[%s4184 + $0x20] sm:$0xf]
    %v4194 = vld [vmem:[%s4184 + $0x24] sm:$0xf]
    %v4195 = vld [vmem:[%s4184 + $0x28] sm:$0xf]
    %v4196 = vld [vmem:[%s4184 + $0x2c] sm:$0xf]
    %v4197 = vld [vmem:[%s4184 + $0x30] sm:$0xf]
    %v4198 = vld [vmem:[%s4184 + $0x34] sm:$0xf]
    %v4199 = vld [vmem:[%s4184 + $0x38] sm:$0xf]
    %v4200 = vld [vmem:[%s4184 + $0x3c] sm:$0x3]
    %v4217 = vunpack.c.l.b16 %v4185
    %v4218 = vunpack.c.l.b16 %v4186
    %v4219 = vunpack.c.l.b16 %v4187
    %v4220 = vunpack.c.l.b16 %v4188
    %v4221 = vunpack.c.l.b16 %v4189
    %v4222 = vunpack.c.l.b16 %v4190
    %v4223 = vunpack.c.l.b16 %v4191
    %v4224 = vunpack.c.l.b16 %v4192
    %v4225 = vunpack.c.l.b16 %v4193
    %v4226 = vunpack.c.l.b16 %v4194
    %v4227 = vunpack.c.l.b16 %v4195
    %v4228 = vunpack.c.l.b16 %v4196
    %v4229 = vunpack.c.l.b16 %v4197
    %v4230 = vunpack.c.l.b16 %v4198
    %v4231 = vunpack.c.l.b16 %v4199
    %v4232 = vunpack.c.l.b16 %v4200
    %v4233 = vpack.c.b16 %v4218, %v4217
    %v4234 = vpack.c.b16 %v4220, %v4219
    %v4235 = vpack.c.b16 %v4222, %v4221
    %v4236 = vpack.c.b16 %v4224, %v4223
    %v4237 = vpack.c.b16 %v4226, %v4225
    %v4238 = vpack.c.b16 %v4228, %v4227
    %v4239 = vpack.c.b16 %v4230, %v4229
    %v4240 = vpack.c.b16 %v4232, %v4231
    %v4249 = vsel %vm783, %v4183, 0
    %v4252 = vand.u32 %v4240, %v1490
    %4254 = vmatprep.subr.bf16.mxu0 0
    %4255 = vmatpush1.bf16.msra.mxu0 %v4233
    %4256 = vmatprep.subr.bf16.mxu0 0
    %4257 = vmatpush1.bf16.msra.mxu0 %v4234
    %4258 = vmatprep.subr.bf16.mxu0 0
    %4259 = vmatpush1.bf16.msra.mxu0 %v4235
    %4260 = vmatprep.subr.bf16.mxu0 0
    %4261 = vmatpush1.bf16.msra.mxu0 %v4236
    %4262 = vmatprep.subr.bf16.mxu0 0
    %4263 = vmatpush1.bf16.msra.mxu0 %v4237
    %4264 = vmatprep.subr.bf16.mxu0 0
    %4265 = vmatpush1.bf16.msra.mxu0 %v4238
    %4266 = vmatprep.subr.bf16.mxu0 0
    %4267 = vmatpush1.bf16.msra.mxu0 %v4239
    %4268 = vmatprep.subr.bf16.mxu0 0
    %4269 = vmatpush1.bf16.msra.mxu0 %v4252
    %4270 = vmatprep.subr.bf16.mxu0 0
    %4271 = vmatpush1.bf16.msra.mxu0 0
    %4272 = vmatprep.subr.bf16.mxu0 0
    %4273 = vmatpush1.bf16.msra.mxu0 0
    %4274 = vmatprep.subr.bf16.mxu0 0
    %4275 = vmatpush1.bf16.msra.mxu0 0
    %4276 = vmatprep.subr.bf16.mxu0 0
    %4277 = vmatpush1.bf16.msra.mxu0 0
    %4278 = vmatprep.subr.bf16.mxu0 0
    %4279 = vmatpush1.bf16.msra.mxu0 0
    %4280 = vmatprep.subr.bf16.mxu0 0
    %4281 = vmatpush1.bf16.msra.mxu0 0
    %4282 = vmatprep.subr.bf16.mxu0 0
    %4283 = vmatpush1.bf16.msra.mxu0 0
    %4284 = vmatprep.subr.bf16.mxu0 0
    %4285 = vmatpush1.bf16.msra.mxu0 0
    %4286 = vmatprep.mubr.bf16.mxu0 0
    %4287 = vmatmul.mubr.bf16.gmra.mrb[0].mxu0 %v4249
    %v4288 = vpop.f32.mrb[0].mxu0
    %v4289 = vadd.f32 0.0, %v4288
    %v4290 = vpop.f32.mrb[0].mxu0
    %v4291 = vpop.f32.mrb[0].mxu0
    %v4292 = vpop.f32.mrb[0].mxu0
    %4293 = vdwg.mxu0
    %v4294 = vadd.f32 %v4178, %v4289
    %s4295 = scalar_lea.vmem [#allocation2], 25
    %v4296 = vld [vmem:[%s4295] ss:$32 sm:$0x1]
    %v4297 = vld [vmem:[%s4295] ss:$32 sm:$0x2]
    %v4298 = vor.u32 %v4296, %v4297
    %v4299 = vpack.c.bf16 %v4298, %v4298
    %s4300 = scalar_lea.vmem %s5, 1600
    %v4301 = vld [vmem:[%s4300] sm:$0xf]
    %v4302 = vld [vmem:[%s4300 + $0x4] sm:$0xf]
    %v4303 = vld [vmem:[%s4300 + $0x8] sm:$0xf]
    %v4304 = vld [vmem:[%s4300 + $0xc] sm:$0xf]
    %v4305 = vld [vmem:[%s4300 + $0x10] sm:$0xf]
    %v4306 = vld [vmem:[%s4300 + $0x14] sm:$0xf]
    %v4307 = vld [vmem:[%s4300 + $0x18] sm:$0xf]
    %v4308 = vld [vmem:[%s4300 + $0x1c] sm:$0xf]
    %v4309 = vld [vmem:[%s4300 + $0x20] sm:$0xf]
    %v4310 = vld [vmem:[%s4300 + $0x24] sm:$0xf]
    %v4311 = vld [vmem:[%s4300 + $0x28] sm:$0xf]
    %v4312 = vld [vmem:[%s4300 + $0x2c] sm:$0xf]
    %v4313 = vld [vmem:[%s4300 + $0x30] sm:$0xf]
    %v4314 = vld [vmem:[%s4300 + $0x34] sm:$0xf]
    %v4315 = vld [vmem:[%s4300 + $0x38] sm:$0xf]
    %v4316 = vld [vmem:[%s4300 + $0x3c] sm:$0x3]
    %v4333 = vunpack.c.l.b16 %v4301
    %v4334 = vunpack.c.l.b16 %v4302
    %v4335 = vunpack.c.l.b16 %v4303
    %v4336 = vunpack.c.l.b16 %v4304
    %v4337 = vunpack.c.l.b16 %v4305
    %v4338 = vunpack.c.l.b16 %v4306
    %v4339 = vunpack.c.l.b16 %v4307
    %v4340 = vunpack.c.l.b16 %v4308
    %v4341 = vunpack.c.l.b16 %v4309
    %v4342 = vunpack.c.l.b16 %v4310
    %v4343 = vunpack.c.l.b16 %v4311
    %v4344 = vunpack.c.l.b16 %v4312
    %v4345 = vunpack.c.l.b16 %v4313
    %v4346 = vunpack.c.l.b16 %v4314
    %v4347 = vunpack.c.l.b16 %v4315
    %v4348 = vunpack.c.l.b16 %v4316
    %v4349 = vpack.c.b16 %v4334, %v4333
    %v4350 = vpack.c.b16 %v4336, %v4335
    %v4351 = vpack.c.b16 %v4338, %v4337
    %v4352 = vpack.c.b16 %v4340, %v4339
    %v4353 = vpack.c.b16 %v4342, %v4341
    %v4354 = vpack.c.b16 %v4344, %v4343
    %v4355 = vpack.c.b16 %v4346, %v4345
    %v4356 = vpack.c.b16 %v4348, %v4347
    %v4365 = vsel %vm783, %v4299, 0
    %v4368 = vand.u32 %v4356, %v1490
    %4370 = vmatprep.subr.bf16.mxu0 0
    %4371 = vmatpush1.bf16.msra.mxu0 %v4349
    %4372 = vmatprep.subr.bf16.mxu0 0
    %4373 = vmatpush1.bf16.msra.mxu0 %v4350
    %4374 = vmatprep.subr.bf16.mxu0 0
    %4375 = vmatpush1.bf16.msra.mxu0 %v4351
    %4376 = vmatprep.subr.bf16.mxu0 0
    %4377 = vmatpush1.bf16.msra.mxu0 %v4352
    %4378 = vmatprep.subr.bf16.mxu0 0
    %4379 = vmatpush1.bf16.msra.mxu0 %v4353
    %4380 = vmatprep.subr.bf16.mxu0 0
    %4381 = vmatpush1.bf16.msra.mxu0 %v4354
    %4382 = vmatprep.subr.bf16.mxu0 0
    %4383 = vmatpush1.bf16.msra.mxu0 %v4355
    %4384 = vmatprep.subr.bf16.mxu0 0
    %4385 = vmatpush1.bf16.msra.mxu0 %v4368
    %4386 = vmatprep.subr.bf16.mxu0 0
    %4387 = vmatpush1.bf16.msra.mxu0 0
    %4388 = vmatprep.subr.bf16.mxu0 0
    %4389 = vmatpush1.bf16.msra.mxu0 0
    %4390 = vmatprep.subr.bf16.mxu0 0
    %4391 = vmatpush1.bf16.msra.mxu0 0
    %4392 = vmatprep.subr.bf16.mxu0 0
    %4393 = vmatpush1.bf16.msra.mxu0 0
    %4394 = vmatprep.subr.bf16.mxu0 0
    %4395 = vmatpush1.bf16.msra.mxu0 0
    %4396 = vmatprep.subr.bf16.mxu0 0
    %4397 = vmatpush1.bf16.msra.mxu0 0
    %4398 = vmatprep.subr.bf16.mxu0 0
    %4399 = vmatpush1.bf16.msra.mxu0 0
    %4400 = vmatprep.subr.bf16.mxu0 0
    %4401 = vmatpush1.bf16.msra.mxu0 0
    %4402 = vmatprep.mubr.bf16.mxu0 0
    %4403 = vmatmul.mubr.bf16.gmra.mrb[0].mxu0 %v4365
    %v4404 = vpop.f32.mrb[0].mxu0
    %v4405 = vadd.f32 0.0, %v4404
    %v4406 = vpop.f32.mrb[0].mxu0
    %v4407 = vpop.f32.mrb[0].mxu0
    %v4408 = vpop.f32.mrb[0].mxu0
    %4409 = vdwg.mxu0
    %v4410 = vadd.f32 %v4294, %v4405
    %s4411 = scalar_lea.vmem [#allocation2], 26
    %v4412 = vld [vmem:[%s4411] ss:$32 sm:$0x1]
    %v4413 = vld [vmem:[%s4411] ss:$32 sm:$0x2]
    %v4414 = vor.u32 %v4412, %v4413
    %v4415 = vpack.c.bf16 %v4414, %v4414
    %s4416 = scalar_lea.vmem %s5, 1664
    %v4417 = vld [vmem:[%s4416] sm:$0xf]
    %v4418 = vld [vmem:[%s4416 + $0x4] sm:$0xf]
    %v4419 = vld [vmem:[%s4416 + $0x8] sm:$0xf]
    %v4420 = vld [vmem:[%s4416 + $0xc] sm:$0xf]
    %v4421 = vld [vmem:[%s4416 + $0x10] sm:$0xf]
    %v4422 = vld [vmem:[%s4416 + $0x14] sm:$0xf]
    %v4423 = vld [vmem:[%s4416 + $0x18] sm:$0xf]
    %v4424 = vld [vmem:[%s4416 + $0x1c] sm:$0xf]
    %v4425 = vld [vmem:[%s4416 + $0x20] sm:$0xf]
    %v4426 = vld [vmem:[%s4416 + $0x24] sm:$0xf]
    %v4427 = vld [vmem:[%s4416 + $0x28] sm:$0xf]
    %v4428 = vld [vmem:[%s4416 + $0x2c] sm:$0xf]
    %v4429 = vld [vmem:[%s4416 + $0x30] sm:$0xf]
    %v4430 = vld [vmem:[%s4416 + $0x34] sm:$0xf]
    %v4431 = vld [vmem:[%s4416 + $0x38] sm:$0xf]
    %v4432 = vld [vmem:[%s4416 + $0x3c] sm:$0x3]
    %v4449 = vunpack.c.l.b16 %v4417
    %v4450 = vunpack.c.l.b16 %v4418
    %v4451 = vunpack.c.l.b16 %v4419
    %v4452 = vunpack.c.l.b16 %v4420
    %v4453 = vunpack.c.l.b16 %v4421
    %v4454 = vunpack.c.l.b16 %v4422
    %v4455 = vunpack.c.l.b16 %v4423
    %v4456 = vunpack.c.l.b16 %v4424
    %v4457 = vunpack.c.l.b16 %v4425
    %v4458 = vunpack.c.l.b16 %v4426
    %v4459 = vunpack.c.l.b16 %v4427
    %v4460 = vunpack.c.l.b16 %v4428
    %v4461 = vunpack.c.l.b16 %v4429
    %v4462 = vunpack.c.l.b16 %v4430
    %v4463 = vunpack.c.l.b16 %v4431
    %v4464 = vunpack.c.l.b16 %v4432
    %v4465 = vpack.c.b16 %v4450, %v4449
    %v4466 = vpack.c.b16 %v4452, %v4451
    %v4467 = vpack.c.b16 %v4454, %v4453
    %v4468 = vpack.c.b16 %v4456, %v4455
    %v4469 = vpack.c.b16 %v4458, %v4457
    %v4470 = vpack.c.b16 %v4460, %v4459
    %v4471 = vpack.c.b16 %v4462, %v4461
    %v4472 = vpack.c.b16 %v4464, %v4463
    %v4481 = vsel %vm783, %v4415, 0
    %v4484 = vand.u32 %v4472, %v1490
    %4486 = vmatprep.subr.bf16.mxu0 0
    %4487 = vmatpush1.bf16.msra.mxu0 %v4465
    %4488 = vmatprep.subr.bf16.mxu0 0
    %4489 = vmatpush1.bf16.msra.mxu0 %v4466
    %4490 = vmatprep.subr.bf16.mxu0 0
    %4491 = vmatpush1.bf16.msra.mxu0 %v4467
    %4492 = vmatprep.subr.bf16.mxu0 0
    %4493 = vmatpush1.bf16.msra.mxu0 %v4468
    %4494 = vmatprep.subr.bf16.mxu0 0
    %4495 = vmatpush1.bf16.msra.mxu0 %v4469
    %4496 = vmatprep.subr.bf16.mxu0 0
    %4497 = vmatpush1.bf16.msra.mxu0 %v4470
    %4498 = vmatprep.subr.bf16.mxu0 0
    %4499 = vmatpush1.bf16.msra.mxu0 %v4471
    %4500 = vmatprep.subr.bf16.mxu0 0
    %4501 = vmatpush1.bf16.msra.mxu0 %v4484
    %4502 = vmatprep.subr.bf16.mxu0 0
    %4503 = vmatpush1.bf16.msra.mxu0 0
    %4504 = vmatprep.subr.bf16.mxu0 0
    %4505 = vmatpush1.bf16.msra.mxu0 0
    %4506 = vmatprep.subr.bf16.mxu0 0
    %4507 = vmatpush1.bf16.msra.mxu0 0
    %4508 = vmatprep.subr.bf16.mxu0 0
    %4509 = vmatpush1.bf16.msra.mxu0 0
    %4510 = vmatprep.subr.bf16.mxu0 0
    %4511 = vmatpush1.bf16.msra.mxu0 0
    %4512 = vmatprep.subr.bf16.mxu0 0
    %4513 = vmatpush1.bf16.msra.mxu0 0
    %4514 = vmatprep.subr.bf16.mxu0 0
    %4515 = vmatpush1.bf16.msra.mxu0 0
    %4516 = vmatprep.subr.bf16.mxu0 0
    %4517 = vmatpush1.bf16.msra.mxu0 0
    %4518 = vmatprep.mubr.bf16.mxu0 0
    %4519 = vmatmul.mubr.bf16.gmra.mrb[0].mxu0 %v4481
    %v4520 = vpop.f32.mrb[0].mxu0
    %v4521 = vadd.f32 0.0, %v4520
    %v4522 = vpop.f32.mrb[0].mxu0
    %v4523 = vpop.f32.mrb[0].mxu0
    %v4524 = vpop.f32.mrb[0].mxu0
    %4525 = vdwg.mxu0
    %v4526 = vadd.f32 %v4410, %v4521
    %s4527 = scalar_lea.vmem [#allocation2], 27
    %v4528 = vld [vmem:[%s4527] ss:$32 sm:$0x1]
    %v4529 = vld [vmem:[%s4527] ss:$32 sm:$0x2]
    %v4530 = vor.u32 %v4528, %v4529
    %v4531 = vpack.c.bf16 %v4530, %v4530
    %s4532 = scalar_lea.vmem %s5, 1728
    %v4533 = vld [vmem:[%s4532] sm:$0xf]
    %v4534 = vld [vmem:[%s4532 + $0x4] sm:$0xf]
    %v4535 = vld [vmem:[%s4532 + $0x8] sm:$0xf]
    %v4536 = vld [vmem:[%s4532 + $0xc] sm:$0xf]
    %v4537 = vld [vmem:[%s4532 + $0x10] sm:$0xf]
    %v4538 = vld [vmem:[%s4532 + $0x14] sm:$0xf]
    %v4539 = vld [vmem:[%s4532 + $0x18] sm:$0xf]
    %v4540 = vld [vmem:[%s4532 + $0x1c] sm:$0xf]
    %v4541 = vld [vmem:[%s4532 + $0x20] sm:$0xf]
    %v4542 = vld [vmem:[%s4532 + $0x24] sm:$0xf]
    %v4543 = vld [vmem:[%s4532 + $0x28] sm:$0xf]
    %v4544 = vld [vmem:[%s4532 + $0x2c] sm:$0xf]
    %v4545 = vld [vmem:[%s4532 + $0x30] sm:$0xf]
    %v4546 = vld [vmem:[%s4532 + $0x34] sm:$0xf]
    %v4547 = vld [vmem:[%s4532 + $0x38] sm:$0xf]
    %v4548 = vld [vmem:[%s4532 + $0x3c] sm:$0x3]
    %v4565 = vunpack.c.l.b16 %v4533
    %v4566 = vunpack.c.l.b16 %v4534
    %v4567 = vunpack.c.l.b16 %v4535
    %v4568 = vunpack.c.l.b16 %v4536
    %v4569 = vunpack.c.l.b16 %v4537
    %v4570 = vunpack.c.l.b16 %v4538
    %v4571 = vunpack.c.l.b16 %v4539
    %v4572 = vunpack.c.l.b16 %v4540
    %v4573 = vunpack.c.l.b16 %v4541
    %v4574 = vunpack.c.l.b16 %v4542
    %v4575 = vunpack.c.l.b16 %v4543
    %v4576 = vunpack.c.l.b16 %v4544
    %v4577 = vunpack.c.l.b16 %v4545
    %v4578 = vunpack.c.l.b16 %v4546
    %v4579 = vunpack.c.l.b16 %v4547
    %v4580 = vunpack.c.l.b16 %v4548
    %v4581 = vpack.c.b16 %v4566, %v4565
    %v4582 = vpack.c.b16 %v4568, %v4567
    %v4583 = vpack.c.b16 %v4570, %v4569
    %v4584 = vpack.c.b16 %v4572, %v4571
    %v4585 = vpack.c.b16 %v4574, %v4573
    %v4586 = vpack.c.b16 %v4576, %v4575
    %v4587 = vpack.c.b16 %v4578, %v4577
    %v4588 = vpack.c.b16 %v4580, %v4579
    %v4597 = vsel %vm783, %v4531, 0
    %v4600 = vand.u32 %v4588, %v1490
    %4602 = vmatprep.subr.bf16.mxu0 0
    %4603 = vmatpush1.bf16.msra.mxu0 %v4581
    %4604 = vmatprep.subr.bf16.mxu0 0
    %4605 = vmatpush1.bf16.msra.mxu0 %v4582
    %4606 = vmatprep.subr.bf16.mxu0 0
    %4607 = vmatpush1.bf16.msra.mxu0 %v4583
    %4608 = vmatprep.subr.bf16.mxu0 0
    %4609 = vmatpush1.bf16.msra.mxu0 %v4584
    %4610 = vmatprep.subr.bf16.mxu0 0
    %4611 = vmatpush1.bf16.msra.mxu0 %v4585
    %4612 = vmatprep.subr.bf16.mxu0 0
    %4613 = vmatpush1.bf16.msra.mxu0 %v4586
    %4614 = vmatprep.subr.bf16.mxu0 0
    %4615 = vmatpush1.bf16.msra.mxu0 %v4587
    %4616 = vmatprep.subr.bf16.mxu0 0
    %4617 = vmatpush1.bf16.msra.mxu0 %v4600
    %4618 = vmatprep.subr.bf16.mxu0 0
    %4619 = vmatpush1.bf16.msra.mxu0 0
    %4620 = vmatprep.subr.bf16.mxu0 0
    %4621 = vmatpush1.bf16.msra.mxu0 0
    %4622 = vmatprep.subr.bf16.mxu0 0
    %4623 = vmatpush1.bf16.msra.mxu0 0
    %4624 = vmatprep.subr.bf16.mxu0 0
    %4625 = vmatpush1.bf16.msra.mxu0 0
    %4626 = vmatprep.subr.bf16.mxu0 0
    %4627 = vmatpush1.bf16.msra.mxu0 0
    %4628 = vmatprep.subr.bf16.mxu0 0
    %4629 = vmatpush1.bf16.msra.mxu0 0
    %4630 = vmatprep.subr.bf16.mxu0 0
    %4631 = vmatpush1.bf16.msra.mxu0 0
    %4632 = vmatprep.subr.bf16.mxu0 0
    %4633 = vmatpush1.bf16.msra.mxu0 0
    %4634 = vmatprep.mubr.bf16.mxu0 0
    %4635 = vmatmul.mubr.bf16.gmra.mrb[0].mxu0 %v4597
    %v4636 = vpop.f32.mrb[0].mxu0
    %v4637 = vadd.f32 0.0, %v4636
    %v4638 = vpop.f32.mrb[0].mxu0
    %v4639 = vpop.f32.mrb[0].mxu0
    %v4640 = vpop.f32.mrb[0].mxu0
    %4641 = vdwg.mxu0
    %v4642 = vadd.f32 %v4526, %v4637
    %s4643 = scalar_lea.vmem [#allocation2], 28
    %v4644 = vld [vmem:[%s4643] ss:$32 sm:$0x1]
    %v4645 = vld [vmem:[%s4643] ss:$32 sm:$0x2]
    %v4646 = vor.u32 %v4644, %v4645
    %v4647 = vpack.c.bf16 %v4646, %v4646
    %s4648 = scalar_lea.vmem %s5, 1792
    %v4649 = vld [vmem:[%s4648] sm:$0xf]
    %v4650 = vld [vmem:[%s4648 + $0x4] sm:$0xf]
    %v4651 = vld [vmem:[%s4648 + $0x8] sm:$0xf]
    %v4652 = vld [vmem:[%s4648 + $0xc] sm:$0xf]
    %v4653 = vld [vmem:[%s4648 + $0x10] sm:$0xf]
    %v4654 = vld [vmem:[%s4648 + $0x14] sm:$0xf]
    %v4655 = vld [vmem:[%s4648 + $0x18] sm:$0xf]
    %v4656 = vld [vmem:[%s4648 + $0x1c] sm:$0xf]
    %v4657 = vld [vmem:[%s4648 + $0x20] sm:$0xf]
    %v4658 = vld [vmem:[%s4648 + $0x24] sm:$0xf]
    %v4659 = vld [vmem:[%s4648 + $0x28] sm:$0xf]
    %v4660 = vld [vmem:[%s4648 + $0x2c] sm:$0xf]
    %v4661 = vld [vmem:[%s4648 + $0x30] sm:$0xf]
    %v4662 = vld [vmem:[%s4648 + $0x34] sm:$0xf]
    %v4663 = vld [vmem:[%s4648 + $0x38] sm:$0xf]
    %v4664 = vld [vmem:[%s4648 + $0x3c] sm:$0x3]
    %v4681 = vunpack.c.l.b16 %v4649
    %v4682 = vunpack.c.l.b16 %v4650
    %v4683 = vunpack.c.l.b16 %v4651
    %v4684 = vunpack.c.l.b16 %v4652
    %v4685 = vunpack.c.l.b16 %v4653
    %v4686 = vunpack.c.l.b16 %v4654
    %v4687 = vunpack.c.l.b16 %v4655
    %v4688 = vunpack.c.l.b16 %v4656
    %v4689 = vunpack.c.l.b16 %v4657
    %v4690 = vunpack.c.l.b16 %v4658
    %v4691 = vunpack.c.l.b16 %v4659
    %v4692 = vunpack.c.l.b16 %v4660
    %v4693 = vunpack.c.l.b16 %v4661
    %v4694 = vunpack.c.l.b16 %v4662
    %v4695 = vunpack.c.l.b16 %v4663
    %v4696 = vunpack.c.l.b16 %v4664
    %v4697 = vpack.c.b16 %v4682, %v4681
    %v4698 = vpack.c.b16 %v4684, %v4683
    %v4699 = vpack.c.b16 %v4686, %v4685
    %v4700 = vpack.c.b16 %v4688, %v4687
    %v4701 = vpack.c.b16 %v4690, %v4689
    %v4702 = vpack.c.b16 %v4692, %v4691
    %v4703 = vpack.c.b16 %v4694, %v4693
    %v4704 = vpack.c.b16 %v4696, %v4695
    %v4713 = vsel %vm783, %v4647, 0
    %v4716 = vand.u32 %v4704, %v1490
    %4718 = vmatprep.subr.bf16.mxu0 0
    %4719 = vmatpush1.bf16.msra.mxu0 %v4697
    %4720 = vmatprep.subr.bf16.mxu0 0
    %4721 = vmatpush1.bf16.msra.mxu0 %v4698
    %4722 = vmatprep.subr.bf16.mxu0 0
    %4723 = vmatpush1.bf16.msra.mxu0 %v4699
    %4724 = vmatprep.subr.bf16.mxu0 0
    %4725 = vmatpush1.bf16.msra.mxu0 %v4700
    %4726 = vmatprep.subr.bf16.mxu0 0
    %4727 = vmatpush1.bf16.msra.mxu0 %v4701
    %4728 = vmatprep.subr.bf16.mxu0 0
    %4729 = vmatpush1.bf16.msra.mxu0 %v4702
    %4730 = vmatprep.subr.bf16.mxu0 0
    %4731 = vmatpush1.bf16.msra.mxu0 %v4703
    %4732 = vmatprep.subr.bf16.mxu0 0
    %4733 = vmatpush1.bf16.msra.mxu0 %v4716
    %4734 = vmatprep.subr.bf16.mxu0 0
    %4735 = vmatpush1.bf16.msra.mxu0 0
    %4736 = vmatprep.subr.bf16.mxu0 0
    %4737 = vmatpush1.bf16.msra.mxu0 0
    %4738 = vmatprep.subr.bf16.mxu0 0
    %4739 = vmatpush1.bf16.msra.mxu0 0
    %4740 = vmatprep.subr.bf16.mxu0 0
    %4741 = vmatpush1.bf16.msra.mxu0 0
    %4742 = vmatprep.subr.bf16.mxu0 0
    %4743 = vmatpush1.bf16.msra.mxu0 0
    %4744 = vmatprep.subr.bf16.mxu0 0
    %4745 = vmatpush1.bf16.msra.mxu0 0
    %4746 = vmatprep.subr.bf16.mxu0 0
    %4747 = vmatpush1.bf16.msra.mxu0 0
    %4748 = vmatprep.subr.bf16.mxu0 0
    %4749 = vmatpush1.bf16.msra.mxu0 0
    %4750 = vmatprep.mubr.bf16.mxu0 0
    %4751 = vmatmul.mubr.bf16.gmra.mrb[0].mxu0 %v4713
    %v4752 = vpop.f32.mrb[0].mxu0
    %v4753 = vadd.f32 0.0, %v4752
    %v4754 = vpop.f32.mrb[0].mxu0
    %v4755 = vpop.f32.mrb[0].mxu0
    %v4756 = vpop.f32.mrb[0].mxu0
    %4757 = vdwg.mxu0
    %v4758 = vadd.f32 %v4642, %v4753
    %s4759 = scalar_lea.vmem [#allocation2], 29
    %v4760 = vld [vmem:[%s4759] ss:$32 sm:$0x1]
    %v4761 = vld [vmem:[%s4759] ss:$32 sm:$0x2]
    %v4762 = vor.u32 %v4760, %v4761
    %v4763 = vpack.c.bf16 %v4762, %v4762
    %s4764 = scalar_lea.vmem %s5, 1856
    %v4765 = vld [vmem:[%s4764] sm:$0xf]
    %v4766 = vld [vmem:[%s4764 + $0x4] sm:$0xf]
    %v4767 = vld [vmem:[%s4764 + $0x8] sm:$0xf]
    %v4768 = vld [vmem:[%s4764 + $0xc] sm:$0xf]
    %v4769 = vld [vmem:[%s4764 + $0x10] sm:$0xf]
    %v4770 = vld [vmem:[%s4764 + $0x14] sm:$0xf]
    %v4771 = vld [vmem:[%s4764 + $0x18] sm:$0xf]
    %v4772 = vld [vmem:[%s4764 + $0x1c] sm:$0xf]
    %v4773 = vld [vmem:[%s4764 + $0x20] sm:$0xf]
    %v4774 = vld [vmem:[%s4764 + $0x24] sm:$0xf]
    %v4775 = vld [vmem:[%s4764 + $0x28] sm:$0xf]
    %v4776 = vld [vmem:[%s4764 + $0x2c] sm:$0xf]
    %v4777 = vld [vmem:[%s4764 + $0x30] sm:$0xf]
    %v4778 = vld [vmem:[%s4764 + $0x34] sm:$0xf]
    %v4779 = vld [vmem:[%s4764 + $0x38] sm:$0xf]
    %v4780 = vld [vmem:[%s4764 + $0x3c] sm:$0x3]
    %v4797 = vunpack.c.l.b16 %v4765
    %v4798 = vunpack.c.l.b16 %v4766
    %v4799 = vunpack.c.l.b16 %v4767
    %v4800 = vunpack.c.l.b16 %v4768
    %v4801 = vunpack.c.l.b16 %v4769
    %v4802 = vunpack.c.l.b16 %v4770
    %v4803 = vunpack.c.l.b16 %v4771
    %v4804 = vunpack.c.l.b16 %v4772
    %v4805 = vunpack.c.l.b16 %v4773
    %v4806 = vunpack.c.l.b16 %v4774
    %v4807 = vunpack.c.l.b16 %v4775
    %v4808 = vunpack.c.l.b16 %v4776
    %v4809 = vunpack.c.l.b16 %v4777
    %v4810 = vunpack.c.l.b16 %v4778
    %v4811 = vunpack.c.l.b16 %v4779
    %v4812 = vunpack.c.l.b16 %v4780
    %v4813 = vpack.c.b16 %v4798, %v4797
    %v4814 = vpack.c.b16 %v4800, %v4799
    %v4815 = vpack.c.b16 %v4802, %v4801
    %v4816 = vpack.c.b16 %v4804, %v4803
    %v4817 = vpack.c.b16 %v4806, %v4805
    %v4818 = vpack.c.b16 %v4808, %v4807
    %v4819 = vpack.c.b16 %v4810, %v4809
    %v4820 = vpack.c.b16 %v4812, %v4811
    %v4829 = vsel %vm783, %v4763, 0
    %v4832 = vand.u32 %v4820, %v1490
    %4834 = vmatprep.subr.bf16.mxu0 0
    %4835 = vmatpush1.bf16.msra.mxu0 %v4813
    %4836 = vmatprep.subr.bf16.mxu0 0
    %4837 = vmatpush1.bf16.msra.mxu0 %v4814
    %4838 = vmatprep.subr.bf16.mxu0 0
    %4839 = vmatpush1.bf16.msra.mxu0 %v4815
    %4840 = vmatprep.subr.bf16.mxu0 0
    %4841 = vmatpush1.bf16.msra.mxu0 %v4816
    %4842 = vmatprep.subr.bf16.mxu0 0
    %4843 = vmatpush1.bf16.msra.mxu0 %v4817
    %4844 = vmatprep.subr.bf16.mxu0 0
    %4845 = vmatpush1.bf16.msra.mxu0 %v4818
    %4846 = vmatprep.subr.bf16.mxu0 0
    %4847 = vmatpush1.bf16.msra.mxu0 %v4819
    %4848 = vmatprep.subr.bf16.mxu0 0
    %4849 = vmatpush1.bf16.msra.mxu0 %v4832
    %4850 = vmatprep.subr.bf16.mxu0 0
    %4851 = vmatpush1.bf16.msra.mxu0 0
    %4852 = vmatprep.subr.bf16.mxu0 0
    %4853 = vmatpush1.bf16.msra.mxu0 0
    %4854 = vmatprep.subr.bf16.mxu0 0
    %4855 = vmatpush1.bf16.msra.mxu0 0
    %4856 = vmatprep.subr.bf16.mxu0 0
    %4857 = vmatpush1.bf16.msra.mxu0 0
    %4858 = vmatprep.subr.bf16.mxu0 0
    %4859 = vmatpush1.bf16.msra.mxu0 0
    %4860 = vmatprep.subr.bf16.mxu0 0
    %4861 = vmatpush1.bf16.msra.mxu0 0
    %4862 = vmatprep.subr.bf16.mxu0 0
    %4863 = vmatpush1.bf16.msra.mxu0 0
    %4864 = vmatprep.subr.bf16.mxu0 0
    %4865 = vmatpush1.bf16.msra.mxu0 0
    %4866 = vmatprep.mubr.bf16.mxu0 0
    %4867 = vmatmul.mubr.bf16.gmra.mrb[0].mxu0 %v4829
    %v4868 = vpop.f32.mrb[0].mxu0
    %v4869 = vadd.f32 0.0, %v4868
    %v4870 = vpop.f32.mrb[0].mxu0
    %v4871 = vpop.f32.mrb[0].mxu0
    %v4872 = vpop.f32.mrb[0].mxu0
    %4873 = vdwg.mxu0
    %v4874 = vadd.f32 %v4758, %v4869
    %s4875 = scalar_lea.vmem [#allocation2], 30
    %v4876 = vld [vmem:[%s4875] ss:$32 sm:$0x1]
    %v4877 = vld [vmem:[%s4875] ss:$32 sm:$0x2]
    %v4878 = vor.u32 %v4876, %v4877
    %v4879 = vpack.c.bf16 %v4878, %v4878
    %s4880 = scalar_lea.vmem %s5, 1920
    %v4881 = vld [vmem:[%s4880] sm:$0xf]
    %v4882 = vld [vmem:[%s4880 + $0x4] sm:$0xf]
    %v4883 = vld [vmem:[%s4880 + $0x8] sm:$0xf]
    %v4884 = vld [vmem:[%s4880 + $0xc] sm:$0xf]
    %v4885 = vld [vmem:[%s4880 + $0x10] sm:$0xf]
    %v4886 = vld [vmem:[%s4880 + $0x14] sm:$0xf]
    %v4887 = vld [vmem:[%s4880 + $0x18] sm:$0xf]
    %v4888 = vld [vmem:[%s4880 + $0x1c] sm:$0xf]
    %v4889 = vld [vmem:[%s4880 + $0x20] sm:$0xf]
    %v4890 = vld [vmem:[%s4880 + $0x24] sm:$0xf]
    %v4891 = vld [vmem:[%s4880 + $0x28] sm:$0xf]
    %v4892 = vld [vmem:[%s4880 + $0x2c] sm:$0xf]
    %v4893 = vld [vmem:[%s4880 + $0x30] sm:$0xf]
    %v4894 = vld [vmem:[%s4880 + $0x34] sm:$0xf]
    %v4895 = vld [vmem:[%s4880 + $0x38] sm:$0xf]
    %v4896 = vld [vmem:[%s4880 + $0x3c] sm:$0x3]
    %v4913 = vunpack.c.l.b16 %v4881
    %v4914 = vunpack.c.l.b16 %v4882
    %v4915 = vunpack.c.l.b16 %v4883
    %v4916 = vunpack.c.l.b16 %v4884
    %v4917 = vunpack.c.l.b16 %v4885
    %v4918 = vunpack.c.l.b16 %v4886
    %v4919 = vunpack.c.l.b16 %v4887
    %v4920 = vunpack.c.l.b16 %v4888
    %v4921 = vunpack.c.l.b16 %v4889
    %v4922 = vunpack.c.l.b16 %v4890
    %v4923 = vunpack.c.l.b16 %v4891
    %v4924 = vunpack.c.l.b16 %v4892
    %v4925 = vunpack.c.l.b16 %v4893
    %v4926 = vunpack.c.l.b16 %v4894
    %v4927 = vunpack.c.l.b16 %v4895
    %v4928 = vunpack.c.l.b16 %v4896
    %v4929 = vpack.c.b16 %v4914, %v4913
    %v4930 = vpack.c.b16 %v4916, %v4915
    %v4931 = vpack.c.b16 %v4918, %v4917
    %v4932 = vpack.c.b16 %v4920, %v4919
    %v4933 = vpack.c.b16 %v4922, %v4921
    %v4934 = vpack.c.b16 %v4924, %v4923
    %v4935 = vpack.c.b16 %v4926, %v4925
    %v4936 = vpack.c.b16 %v4928, %v4927
    %v4945 = vsel %vm783, %v4879, 0
    %v4948 = vand.u32 %v4936, %v1490
    %4950 = vmatprep.subr.bf16.mxu0 0
    %4951 = vmatpush1.bf16.msra.mxu0 %v4929
    %4952 = vmatprep.subr.bf16.mxu0 0
    %4953 = vmatpush1.bf16.msra.mxu0 %v4930
    %4954 = vmatprep.subr.bf16.mxu0 0
    %4955 = vmatpush1.bf16.msra.mxu0 %v4931
    %4956 = vmatprep.subr.bf16.mxu0 0
    %4957 = vmatpush1.bf16.msra.mxu0 %v4932
    %4958 = vmatprep.subr.bf16.mxu0 0
    %4959 = vmatpush1.bf16.msra.mxu0 %v4933
    %4960 = vmatprep.subr.bf16.mxu0 0
    %4961 = vmatpush1.bf16.msra.mxu0 %v4934
    %4962 = vmatprep.subr.bf16.mxu0 0
    %4963 = vmatpush1.bf16.msra.mxu0 %v4935
    %4964 = vmatprep.subr.bf16.mxu0 0
    %4965 = vmatpush1.bf16.msra.mxu0 %v4948
    %4966 = vmatprep.subr.bf16.mxu0 0
    %4967 = vmatpush1.bf16.msra.mxu0 0
    %4968 = vmatprep.subr.bf16.mxu0 0
    %4969 = vmatpush1.bf16.msra.mxu0 0
    %4970 = vmatprep.subr.bf16.mxu0 0
    %4971 = vmatpush1.bf16.msra.mxu0 0
    %4972 = vmatprep.subr.bf16.mxu0 0
    %4973 = vmatpush1.bf16.msra.mxu0 0
    %4974 = vmatprep.subr.bf16.mxu0 0
    %4975 = vmatpush1.bf16.msra.mxu0 0
    %4976 = vmatprep.subr.bf16.mxu0 0
    %4977 = vmatpush1.bf16.msra.mxu0 0
    %4978 = vmatprep.subr.bf16.mxu0 0
    %4979 = vmatpush1.bf16.msra.mxu0 0
    %4980 = vmatprep.subr.bf16.mxu0 0
    %4981 = vmatpush1.bf16.msra.mxu0 0
    %4982 = vmatprep.mubr.bf16.mxu0 0
    %4983 = vmatmul.mubr.bf16.gmra.mrb[0].mxu0 %v4945
    %v4984 = vpop.f32.mrb[0].mxu0
    %v4985 = vadd.f32 0.0, %v4984
    %v4986 = vpop.f32.mrb[0].mxu0
    %v4987 = vpop.f32.mrb[0].mxu0
    %v4988 = vpop.f32.mrb[0].mxu0
    %4989 = vdwg.mxu0
    %v4990 = vadd.f32 %v4874, %v4985
    %s4991 = scalar_lea.vmem [#allocation2], 31
    %v4992 = vld [vmem:[%s4991] ss:$32 sm:$0x1]
    %v4993 = vld [vmem:[%s4991] ss:$32 sm:$0x2]
    %v4994 = vor.u32 %v4992, %v4993
    %v4995 = vpack.c.bf16 %v4994, %v4994
    %s4996 = scalar_lea.vmem %s5, 1984
    %v4997 = vld [vmem:[%s4996] sm:$0xf]
    %v4998 = vld [vmem:[%s4996 + $0x4] sm:$0xf]
    %v4999 = vld [vmem:[%s4996 + $0x8] sm:$0xf]
    %v5000 = vld [vmem:[%s4996 + $0xc] sm:$0xf]
    %v5001 = vld [vmem:[%s4996 + $0x10] sm:$0xf]
    %v5002 = vld [vmem:[%s4996 + $0x14] sm:$0xf]
    %v5003 = vld [vmem:[%s4996 + $0x18] sm:$0xf]
    %v5004 = vld [vmem:[%s4996 + $0x1c] sm:$0xf]
    %v5005 = vld [vmem:[%s4996 + $0x20] sm:$0xf]
    %v5006 = vld [vmem:[%s4996 + $0x24] sm:$0xf]
    %v5007 = vld [vmem:[%s4996 + $0x28] sm:$0xf]
    %v5008 = vld [vmem:[%s4996 + $0x2c] sm:$0xf]
    %v5009 = vld [vmem:[%s4996 + $0x30] sm:$0xf]
    %v5010 = vld [vmem:[%s4996 + $0x34] sm:$0xf]
    %v5011 = vld [vmem:[%s4996 + $0x38] sm:$0xf]
    %v5012 = vld [vmem:[%s4996 + $0x3c] sm:$0x3]
    %v5029 = vunpack.c.l.b16 %v4997
    %v5030 = vunpack.c.l.b16 %v4998
    %v5031 = vunpack.c.l.b16 %v4999
    %v5032 = vunpack.c.l.b16 %v5000
    %v5033 = vunpack.c.l.b16 %v5001
    %v5034 = vunpack.c.l.b16 %v5002
    %v5035 = vunpack.c.l.b16 %v5003
    %v5036 = vunpack.c.l.b16 %v5004
    %v5037 = vunpack.c.l.b16 %v5005
    %v5038 = vunpack.c.l.b16 %v5006
    %v5039 = vunpack.c.l.b16 %v5007
    %v5040 = vunpack.c.l.b16 %v5008
    %v5041 = vunpack.c.l.b16 %v5009
    %v5042 = vunpack.c.l.b16 %v5010
    %v5043 = vunpack.c.l.b16 %v5011
    %v5044 = vunpack.c.l.b16 %v5012
    %v5045 = vpack.c.b16 %v5030, %v5029
    %v5046 = vpack.c.b16 %v5032, %v5031
    %v5047 = vpack.c.b16 %v5034, %v5033
    %v5048 = vpack.c.b16 %v5036, %v5035
    %v5049 = vpack.c.b16 %v5038, %v5037
    %v5050 = vpack.c.b16 %v5040, %v5039
    %v5051 = vpack.c.b16 %v5042, %v5041
    %v5052 = vpack.c.b16 %v5044, %v5043
    %v5061 = vsel %vm783, %v4995, 0
    %v5064 = vand.u32 %v5052, %v1490
    %5066 = vmatprep.subr.bf16.mxu0 0
    %5067 = vmatpush1.bf16.msra.mxu0 %v5045
    %5068 = vmatprep.subr.bf16.mxu0 0
    %5069 = vmatpush1.bf16.msra.mxu0 %v5046
    %5070 = vmatprep.subr.bf16.mxu0 0
    %5071 = vmatpush1.bf16.msra.mxu0 %v5047
    %5072 = vmatprep.subr.bf16.mxu0 0
    %5073 = vmatpush1.bf16.msra.mxu0 %v5048
    %5074 = vmatprep.subr.bf16.mxu0 0
    %5075 = vmatpush1.bf16.msra.mxu0 %v5049
    %5076 = vmatprep.subr.bf16.mxu0 0
    %5077 = vmatpush1.bf16.msra.mxu0 %v5050
    %5078 = vmatprep.subr.bf16.mxu0 0
    %5079 = vmatpush1.bf16.msra.mxu0 %v5051
    %5080 = vmatprep.subr.bf16.mxu0 0
    %5081 = vmatpush1.bf16.msra.mxu0 %v5064
    %5082 = vmatprep.subr.bf16.mxu0 0
    %5083 = vmatpush1.bf16.msra.mxu0 0
    %5084 = vmatprep.subr.bf16.mxu0 0
    %5085 = vmatpush1.bf16.msra.mxu0 0
    %5086 = vmatprep.subr.bf16.mxu0 0
    %5087 = vmatpush1.bf16.msra.mxu0 0
    %5088 = vmatprep.subr.bf16.mxu0 0
    %5089 = vmatpush1.bf16.msra.mxu0 0
    %5090 = vmatprep.subr.bf16.mxu0 0
    %5091 = vmatpush1.bf16.msra.mxu0 0
    %5092 = vmatprep.subr.bf16.mxu0 0
    %5093 = vmatpush1.bf16.msra.mxu0 0
    %5094 = vmatprep.subr.bf16.mxu0 0
    %5095 = vmatpush1.bf16.msra.mxu0 0
    %5096 = vmatprep.subr.bf16.mxu0 0
    %5097 = vmatpush1.bf16.msra.mxu0 0
    %5098 = vmatprep.mubr.bf16.mxu0 0
    %5099 = vmatmul.mubr.bf16.gmra.mrb[0].mxu0 %v5061
    %v5100 = vpop.f32.mrb[0].mxu0
    %v5101 = vadd.f32 0.0, %v5100
    %v5102 = vpop.f32.mrb[0].mxu0
    %v5103 = vpop.f32.mrb[0].mxu0
    %v5104 = vpop.f32.mrb[0].mxu0
    %5105 = vdwg.mxu0
    %v5106 = vadd.f32 %v4990, %v5101
    %v5107 = vld [vmem:[%s6] sm:$0x1]
    %v5109 = vlaneseq
    %v5110 = vshrl.u32 %v5109, 7
    %v5111 = vsub.s32 0, %v5110
    %v5112 = vrot.slane %v5107, %v5111
    %v5114 = vadd.f32 %v5106, %v5112
    %v5115 = vmax.f32 %v5114, 0.0
    %v5116 = vpack.c.bf16 %v5115, %v5115
    %v5117 = vld [vmem:[%s7] sm:$0xf]
    %v5118 = vld [vmem:[%s7 + $0x4] sm:$0xf]
    %v5119 = vld [vmem:[%s7 + $0x8] sm:$0xf]
    %v5120 = vld [vmem:[%s7 + $0xc] sm:$0xf]
    %v5121 = vld [vmem:[%s7 + $0x10] sm:$0xf]
    %v5122 = vld [vmem:[%s7 + $0x14] sm:$0xf]
    %v5123 = vld [vmem:[%s7 + $0x18] sm:$0xf]
    %v5124 = vld [vmem:[%s7 + $0x1c] sm:$0xf]
    %v5125 = vld [vmem:[%s7 + $0x20] sm:$0xf]
    %v5126 = vld [vmem:[%s7 + $0x24] sm:$0xf]
    %v5127 = vld [vmem:[%s7 + $0x28] sm:$0xf]
    %v5128 = vld [vmem:[%s7 + $0x2c] sm:$0xf]
    %v5129 = vld [vmem:[%s7 + $0x30] sm:$0xf]
    %v5130 = vld [vmem:[%s7 + $0x34] sm:$0xf]
    %v5131 = vld [vmem:[%s7 + $0x38] sm:$0xf]
    %v5132 = vld [vmem:[%s7 + $0x3c] sm:$0xf]
    %v5133 = vld [vmem:[%s8] sm:$0x1]
    %v5135 = vlaneseq
    %v5136 = vshrl.u32 %v5135, 7
    %v5137 = vsub.s32 0, %v5136
    %v5138 = vrot.slane %v5133, %v5137
    %v5156 = vunpack.c.l.b16 %v5117
    %v5157 = vunpack.c.l.b16 %v5118
    %v5158 = vunpack.c.l.b16 %v5119
    %v5159 = vunpack.c.l.b16 %v5120
    %v5160 = vunpack.c.l.b16 %v5121
    %v5161 = vunpack.c.l.b16 %v5122
    %v5162 = vunpack.c.l.b16 %v5123
    %v5163 = vunpack.c.l.b16 %v5124
    %v5164 = vunpack.c.l.b16 %v5125
    %v5165 = vunpack.c.l.b16 %v5126
    %v5166 = vunpack.c.l.b16 %v5127
    %v5167 = vunpack.c.l.b16 %v5128
    %v5168 = vunpack.c.l.b16 %v5129
    %v5169 = vunpack.c.l.b16 %v5130
    %v5170 = vunpack.c.l.b16 %v5131
    %v5171 = vunpack.c.l.b16 %v5132
    %v5172 = vpack.c.b16 %v5157, %v5156
    %v5173 = vpack.c.b16 %v5159, %v5158
    %v5174 = vpack.c.b16 %v5161, %v5160
    %v5175 = vpack.c.b16 %v5163, %v5162
    %v5176 = vpack.c.b16 %v5165, %v5164
    %v5177 = vpack.c.b16 %v5167, %v5166
    %v5178 = vpack.c.b16 %v5169, %v5168
    %v5179 = vpack.c.b16 %v5171, %v5170
    %5188 = vmatprep.subr.bf16.mxu0 0
    %5189 = vmatpush1.bf16.msra.mxu0 %v5172
    %5190 = vmatprep.subr.bf16.mxu0 0
    %5191 = vmatpush1.bf16.msra.mxu0 %v5173
    %5192 = vmatprep.subr.bf16.mxu0 0
    %5193 = vmatpush1.bf16.msra.mxu0 %v5174
    %5194 = vmatprep.subr.bf16.mxu0 0
    %5195 = vmatpush1.bf16.msra.mxu0 %v5175
    %5196 = vmatprep.subr.bf16.mxu0 0
    %5197 = vmatpush1.bf16.msra.mxu0 %v5176
    %5198 = vmatprep.subr.bf16.mxu0 0
    %5199 = vmatpush1.bf16.msra.mxu0 %v5177
    %5200 = vmatprep.subr.bf16.mxu0 0
    %5201 = vmatpush1.bf16.msra.mxu0 %v5178
    %5202 = vmatprep.subr.bf16.mxu0 0
    %5203 = vmatpush1.bf16.msra.mxu0 %v5179
    %5204 = vmatprep.subr.bf16.mxu0 0
    %5205 = vmatpush1.bf16.msra.mxu0 0
    %5206 = vmatprep.subr.bf16.mxu0 0
    %5207 = vmatpush1.bf16.msra.mxu0 0
    %5208 = vmatprep.subr.bf16.mxu0 0
    %5209 = vmatpush1.bf16.msra.mxu0 0
    %5210 = vmatprep.subr.bf16.mxu0 0
    %5211 = vmatpush1.bf16.msra.mxu0 0
    %5212 = vmatprep.subr.bf16.mxu0 0
    %5213 = vmatpush1.bf16.msra.mxu0 0
    %5214 = vmatprep.subr.bf16.mxu0 0
    %5215 = vmatpush1.bf16.msra.mxu0 0
    %5216 = vmatprep.subr.bf16.mxu0 0
    %5217 = vmatpush1.bf16.msra.mxu0 0
    %5218 = vmatprep.subr.bf16.mxu0 0
    %5219 = vmatpush1.bf16.msra.mxu0 0
    %5220 = vmatprep.mubr.bf16.mxu0 0
    %5221 = vmatmul.mubr.bf16.gmra.mrb[0].mxu0 %v5116
    %v5222 = vpop.f32.mrb[0].mxu0
    %v5223 = vadd.f32 %v5138, %v5222
    %v5224 = vpop.f32.mrb[0].mxu0
    %v5225 = vpop.f32.mrb[0].mxu0
    %v5226 = vpop.f32.mrb[0].mxu0
    %5227 = vdwg.mxu0
    %vm5228 = vcmask 41984
    %v5229 = vsel %vm5228, %v5223, -inf
    %5230 = vmax.xlane.f32.xlu0 %v5229
    %v5231 = vpop.xlane.xlu0 %5230
    %v5232 = vsub.f32 %v5223, %v5231
    %v5233 = vmul.f32 %v5232, 1.442695
    %v5234 = vpow.pop %v5233
    %v5235 = vsel %vm5228, %v5234, 0.0
    %5236 = vadd.xlane.f32.xlu0 %v5235
    %v5237 = vpop.xlane.xlu0 %5236
    %v5238 = vrcp.pop %v5237
    %v5239 = vmul.f32 %v5234, %v5238
    %5240 = vst.msk [vmem:[#allocation3] sm:$0x3] %vm5228, %v5239
    // Predicated region
    $region38: #{har_cnn_forward.1} parent=1 // pred_check
      _
    $region39: #{har_cnn_forward.1} parent=1 // pred_check_branch
      %5242 = sbr.rel (0) target = $region41
    $region40: #{har_cnn_forward.1} parent=1 // pred_region
      %s5244 = ssub.s32 32, 32
      %5245 = vsyncadd [#allocation4], %s5244
      %s5247 = sshll.u32 [#allocation3], 4
      %s5248 = int_to_ptr.vmem [resolvable:$true] %s5247
      %5250 = dma.vmem_to_hbm [thread:$0]  %s5248, 32, %s9, [#allocation4]
    $region41: #{har_cnn_forward.1} parent=1 // pred_fallthru
      _
    // Predicated region
    $region42: #{har_cnn_forward.1} parent=1 // pred_check
      _
    $region43: #{har_cnn_forward.1} parent=1 // pred_check_branch
      %5252 = sbr.rel (0) target = $region45
    $region44: #{har_cnn_forward.1} parent=1 // pred_region
      %5253 = dma.done [#allocation4], 32
    $region45: #{har_cnn_forward.1} parent=1 // pred_fallthru
      _
    %5254 = vsyncpa [#allocation4], 1

</llo_original>
